<compile_context>
chip_gen: v6e
topology: v6e:2x2x1
jax: 0.10.0
libtpu: 0.0.40
codegen_flags: <defaults>
</compile_context>

<pallas_src>
import functools

import jax
import jax.numpy as jnp
from jax.experimental import pallas as pl
from jax.experimental.pallas import tpu as pltpu


def _round_up(x, m):
    return ((x + m - 1) // m) * m


# ---------------------------------------------------------------------------
# Pallas kernel 1: M-tiled matmul + bias + ReLU (conv layers via im2col).
# ---------------------------------------------------------------------------
def _matmul_bias_relu_kernel(x_ref, w_ref, b_ref, o_ref):
    acc = jnp.dot(x_ref[...], w_ref[...], preferred_element_type=jnp.float32)
    y = jnp.maximum(acc + b_ref[...], 0.0)     # bias + ReLU epilogue in f32
    o_ref[...] = y.astype(o_ref.dtype)


def matmul_bias_relu(x, w, b, *, out_dtype=jnp.bfloat16, tm_max=128):
    """x: (M, K) bf16, w: (K, N) bf16, b: (N,) f32 -> (M, N) out_dtype.

    Tiled over M (multiple of 16 sublanes), weight block resident across the
    grid, f32 accumulation on the MXU.
    """
    M, K = x.shape
    N = w.shape[1]
    tm = tm_max if M >= tm_max else _round_up(M, 16)
    Mp = _round_up(M, tm)
    if Mp != M:
        x = jnp.pad(x, ((0, Mp - M), (0, 0)))

    cost = pl.CostEstimate(
        flops=2 * Mp * K * N,
        transcendentals=0,
        bytes_accessed=(Mp * K * x.dtype.itemsize
                        + K * N * w.dtype.itemsize
                        + Mp * N * jnp.dtype(out_dtype).itemsize
                        + N * 4),
    )
    out = pl.pallas_call(
        _matmul_bias_relu_kernel,
        out_shape=jax.ShapeDtypeStruct((Mp, N), out_dtype),
        grid=(Mp // tm,),
        in_specs=[
            pl.BlockSpec((tm, K), lambda i: (i, 0)),
            pl.BlockSpec((K, N), lambda i: (0, 0)),   # stays resident in VMEM
            pl.BlockSpec((1, N), lambda i: (0, 0)),
        ],
        out_specs=pl.BlockSpec((tm, N), lambda i: (i, 0)),
        compiler_params=pltpu.CompilerParams(dimension_semantics=("parallel",)),
        cost_estimate=cost,
    )(x, w, b.reshape(1, N))
    return out[:M] if Mp != M else out


# ---------------------------------------------------------------------------
# Pallas kernel 2: fused mu/log_var heads (one N=2z matmul) + LeakyReLU +
# reparameterization (z = eps * exp(lv/2) + mu) + KL reduction.
# ---------------------------------------------------------------------------
def _head_reparam_kl_kernel(x_ref, w_ref, b_ref, eps_ref, z_ref, kl_ref, *, z_size):
    y = jnp.dot(x_ref[...], w_ref[...], preferred_element_type=jnp.float32)
    y = y + b_ref[...]
    y = jnp.where(y >= 0.0, y, 0.01 * y)       # LeakyReLU (torch default 0.01)
    mu = y[:, :z_size]
    log_var = y[:, z_size:]
    sigma = jnp.exp(log_var * 0.5)
    z_ref[...] = (eps_ref[...] * sigma + mu).astype(z_ref.dtype)
    kl_ref[0, 0] = 0.5 * jnp.sum(jnp.exp(log_var) + mu * mu - 1.0 - log_var)


def head_reparam_kl(flat, w, b, eps, z_size):
    """flat: (B, 1024) bf16, w: (1024, 2z) bf16, b: (2z,) f32, eps: (B, z) f32."""
    B = flat.shape[0]
    N = w.shape[1]
    z, kl = pl.pallas_call(
        functools.partial(_head_reparam_kl_kernel, z_size=z_size),
        out_shape=(
            jax.ShapeDtypeStruct((B, z_size), jnp.float32),
            jax.ShapeDtypeStruct((1, 1), jnp.float32),
        ),
        in_specs=[
            pl.BlockSpec(memory_space=pltpu.MemorySpace.VMEM),
            pl.BlockSpec(memory_space=pltpu.MemorySpace.VMEM),
            pl.BlockSpec(memory_space=pltpu.MemorySpace.VMEM),
            pl.BlockSpec(memory_space=pltpu.MemorySpace.VMEM),
        ],
        out_specs=(
            pl.BlockSpec(memory_space=pltpu.MemorySpace.VMEM),
            pl.BlockSpec(memory_space=pltpu.MemorySpace.SMEM),
        ),
    )(flat, w, b.reshape(1, N), eps)
    return z, kl[0, 0]


# ---------------------------------------------------------------------------
# Glue: NHWC im2col (no per-layer layout transposes), conv wrapper,
# parameter init / one-time layout conversion, forward pass.
# ---------------------------------------------------------------------------
def _im2col_nhwc(x, kh, kw, stride):
    """x: (B, H, W, C) -> patches (B*Ho*Wo, kh*kw*C), K-order = (i*kw+j)*C + c."""
    B, H, W, C = x.shape
    Ho = (H - kh) // stride + 1
    Wo = (W - kw) // stride + 1
    cols = []
    for i in range(kh):
        for j in range(kw):
            cols.append(x[:, i:i + stride * Ho:stride, j:j + stride * Wo:stride, :])
    p = jnp.concatenate(cols, axis=-1)               # (B, Ho, Wo, kh*kw*C)
    # TODO(synk): patch extraction could move inside the Pallas kernel
    # (shift-and-accumulate matmuls) to avoid materializing patches in HBM.
    return p.reshape(B * Ho * Wo, kh * kw * C), Ho, Wo


def conv2d_relu_nhwc(x, wmat, b, stride=2, kh=4, kw=4):
    """x: (B,H,W,Cin) bf16, wmat: (kh*kw*Cin, Cout) bf16 -> (B,Ho,Wo,Cout) bf16."""
    B = x.shape[0]
    cout = wmat.shape[1]
    patches, Ho, Wo = _im2col_nhwc(x, kh, kw, stride)
    y = matmul_bias_relu(patches, wmat, b)
    return y.reshape(B, Ho, Wo, cout)


def init_params(key, z_size=32):
    """PyTorch-default-style uniform init, in the original torch layouts."""
    def uinit(key, shape, fan_in):
        bound = 1.0 / jnp.sqrt(fan_in)
        return jax.random.uniform(key, shape, jnp.float32, -bound, bound)

    ks = jax.random.split(key, 12)
    p = {}
    conv_defs = [(1, 32), (32, 64), (64, 128), (128, 256)]
    for idx, (cin, cout) in enumerate(conv_defs, start=1):
        fan_in = cin * 4 * 4
        p[f"conv{idx}_w"] = uinit(ks[2 * idx - 2], (cout, cin, 4, 4), fan_in)
        p[f"conv{idx}_b"] = uinit(ks[2 * idx - 1], (cout,), fan_in)
    p["mu_w"] = uinit(ks[8], (z_size, 1024), 1024)   # torch Linear: (out, in)
    p["mu_b"] = uinit(ks[9], (z_size,), 1024)
    p["lv_w"] = uinit(ks[10], (z_size, 1024), 1024)
    p["lv_b"] = uinit(ks[11], (z_size,), 1024)
    return p


def prepare_params(p, z_size=32):
    """One-time conversion of torch-layout params to kernel-ready layouts."""
    q = {}
    for idx in range(1, 5):
        w = p[f"conv{idx}_w"]                                   # (Cout, Cin, 4, 4)
        cout, cin, kh, kw = w.shape
        # K-order (i*kw+j)*Cin + c matches _im2col_nhwc.
        q[f"conv{idx}_w"] = (w.transpose(2, 3, 1, 0)
                             .reshape(kh * kw * cin, cout)
                             .astype(jnp.bfloat16))
        q[f"conv{idx}_b"] = p[f"conv{idx}_b"].astype(jnp.float32)

    # Torch Linear weights (z, 1024) consume the NCHW flatten (c*4 + h*2 + w);
    # we feed an NHWC flatten (h*512 + w*256 + c), so permute columns once and
    # fuse mu || log_var along the output dim (lane-dense N = 2*z).
    def to_nhwc_cols(w):
        return w.reshape(z_size, 256, 2, 2).transpose(0, 2, 3, 1).reshape(z_size, 1024)

    head_w = jnp.concatenate(
        [to_nhwc_cols(p["mu_w"]).T, to_nhwc_cols(p["lv_w"]).T], axis=1)
    q["head_w"] = head_w.astype(jnp.bfloat16)                   # (1024, 2*z)
    q["head_b"] = jnp.concatenate([p["mu_b"], p["lv_b"]]).astype(jnp.float32)
    return q


def encoder_forward(kernel_params, data_nchw, eps, z_size=32):
    # Single NCHW -> NHWC transpose at the input; bf16 for the MXU.
    x = jnp.transpose(data_nchw, (0, 2, 3, 1)).astype(jnp.bfloat16)
    x = conv2d_relu_nhwc(x, kernel_params["conv1_w"], kernel_params["conv1_b"])  # (B,31,31,32)
    x = conv2d_relu_nhwc(x, kernel_params["conv2_w"], kernel_params["conv2_b"])  # (B,14,14,64)
    x = conv2d_relu_nhwc(x, kernel_params["conv3_w"], kernel_params["conv3_b"])  # (B,6,6,128)
    x = conv2d_relu_nhwc(x, kernel_params["conv4_w"], kernel_params["conv4_b"])  # (B,2,2,256)
    flat = x.reshape(x.shape[0], 2 * 2 * 256)   # NHWC flatten; head_w columns permuted to match
    return head_reparam_kl(flat, kernel_params["head_w"], kernel_params["head_b"],
                           eps, z_size)


# Pure-JAX f32 reference (torch layouts) used only for a self-check in main.
def encoder_reference(p, data, eps, z_size=32):
    x = data
    for idx in range(1, 5):
        w = p[f"conv{idx}_w"]
        b = p[f"conv{idx}_b"]
        x = jax.lax.conv_general_dilated(
            x, w, window_strides=(2, 2), padding="VALID",
            dimension_numbers=("NCHW", "OIHW", "NCHW"))
        x = jnp.maximum(x + b[None, :, None, None], 0.0)
    flat = x.reshape(x.shape[0], -1)
    mu = flat @ p["mu_w"].T + p["mu_b"]
    mu = jnp.where(mu >= 0.0, mu, 0.01 * mu)
    lv = flat @ p["lv_w"].T + p["lv_b"]
    lv = jnp.where(lv >= 0.0, lv, 0.01 * lv)
    kl = 0.5 * jnp.sum(jnp.exp(lv) + mu ** 2 - 1.0 - lv)
    z = eps * jnp.exp(lv / 2.0) + mu
    return z, kl


if __name__ == "__main__":
    key = jax.random.PRNGKey(0)
    k_param, k_data, k_eps = jax.random.split(key, 3)

    B, z_size = 2, 32
    torch_params = init_params(k_param, z_size=z_size)
    kernel_params = prepare_params(torch_params, z_size=z_size)

    # The conv stack implies a 64x64 single-channel input
    # (64 -> 31 -> 14 -> 6 -> 2 spatial, giving the 2*2*256 flatten).
    data = jax.random.normal(k_data, (B, 1, 64, 64), dtype=jnp.float32)
    # TODO(synk): torch draws eps via randn_like inside forward; here it is an
    # explicit deterministic input (pass fresh noise per call for sampling).
    eps = jax.random.normal(k_eps, (B, z_size), dtype=jnp.float32)

    fwd = jax.jit(functools.partial(encoder_forward, z_size=z_size))
    z, kl_loss = fwd(kernel_params, data, eps)
    jax.block_until_ready((z, kl_loss))

    assert z.shape == (B, z_size) and z.dtype == jnp.float32
    assert kl_loss.shape == () and bool(jnp.isfinite(kl_loss))
    assert bool(jnp.all(jnp.isfinite(z)))

    # Loose numerical self-check vs. f32 reference (bf16 matmul drift expected).
    z_ref, kl_ref = encoder_reference(torch_params, data, eps, z_size=z_size)
    assert bool(jnp.allclose(z, z_ref, atol=5e-2, rtol=5e-2)), "z mismatch vs reference"
    assert abs(float(kl_loss) - float(kl_ref)) <= 5e-2 + 5e-2 * abs(float(kl_ref)), \
        "kl mismatch vs reference"

    print("KERNEL_OK")
</pallas_src>

<mosaic_0001>
module attributes {stable_mosaic.version = 11 : i64} {
  func.func @_matmul_bias_relu_kernel(%arg0: i32, %arg1: memref<128x16xbf16, #tpu.memory_space<vmem>>, %arg2: memref<16x32xbf16, #tpu.memory_space<vmem>>, %arg3: memref<1x32xf32, #tpu.memory_space<vmem>>, %arg4: memref<128x32xbf16, #tpu.memory_space<vmem>>) attributes {dimension_semantics = [#tpu.dimension_semantics<parallel>], iteration_bounds = array<i64: 16>, scalar_prefetch = 0 : i64, scratch_operands = 0 : i64, tpu.core_type = #tpu.core_type<tc>, window_params = [{transform_indices = @transform_0, window_bounds = array<i64: 128, 16>}, {pipeline_mode = #tpu.pipeline_mode<synchronous>, transform_indices = @transform_1, window_bounds = array<i64: 16, 32>}, {pipeline_mode = #tpu.pipeline_mode<synchronous>, transform_indices = @transform_2, window_bounds = array<i64: 1, 32>}, {transform_indices = @transform_3, window_bounds = array<i64: 128, 32>}]} {
    %c0 = arith.constant 0 : index
    %c0_0 = arith.constant 0 : index
    %0 = vector.load %arg1[%c0, %c0_0] : memref<128x16xbf16, #tpu.memory_space<vmem>>, vector<128x16xbf16>
    %c0_1 = arith.constant 0 : index
    %c0_2 = arith.constant 0 : index
    %1 = vector.load %arg2[%c0_1, %c0_2] : memref<16x32xbf16, #tpu.memory_space<vmem>>, vector<16x32xbf16>
    %cst = arith.constant dense<0.000000e+00> : vector<128x32xf32>
    %2 = tpu.matmul %0, %1, %cst {dimension_numbers = #tpu.dot_dimension_numbers<[1], [0], [0], [1], [0, 0, 1, 1], [], []>} : vector<128x16xbf16>, vector<16x32xbf16>, vector<128x32xf32> -> vector<128x32xf32>
    %c0_3 = arith.constant 0 : index
    %c0_4 = arith.constant 0 : index
    %3 = vector.load %arg3[%c0_3, %c0_4] : memref<1x32xf32, #tpu.memory_space<vmem>>, vector<1x32xf32>
    %4 = vector.broadcast %3 : vector<1x32xf32> to vector<128x32xf32>
    %5 = arith.addf %2, %4 : vector<128x32xf32>
    %cst_5 = arith.constant 0.000000e+00 : f32
    %6 = vector.broadcast %cst_5 : f32 to vector<128x32xf32>
    %7 = arith.maximumf %5, %6 : vector<128x32xf32>
    %8 = arith.truncf %7 : vector<128x32xf32> to vector<128x32xbf16>
    %c0_6 = arith.constant 0 : index
    %c0_7 = arith.constant 0 : index
    %9 = vector.load %arg4[%c0_6, %c0_7] : memref<128x32xbf16, #tpu.memory_space<vmem>>, vector<128x32xbf16>
    tpu.vector_store %arg4[%c0_6, %c0_7], %8 {strides = array<i32>} : memref<128x32xbf16, #tpu.memory_space<vmem>>, vector<128x32xbf16>,
    return
  }
  func.func @transform_0(%arg0: i32) -> (i32, i32) {
    %c0_i32 = arith.constant 0 : i32
    %c0_i32_0 = arith.constant 0 : i32
    return %arg0, %c0_i32 : i32, i32
  }
  func.func @transform_1(%arg0: i32) -> (i32, i32) {
    %c0_i32 = arith.constant 0 : i32
    %c0_i32_0 = arith.constant 0 : i32
    %c0_i32_1 = arith.constant 0 : i32
    return %c0_i32, %c0_i32_0 : i32, i32
  }
  func.func @transform_2(%arg0: i32) -> (i32, i32) {
    %c0_i32 = arith.constant 0 : i32
    %c0_i32_0 = arith.constant 0 : i32
    %c0_i32_1 = arith.constant 0 : i32
    return %c0_i32, %c0_i32_0 : i32, i32
  }
  func.func @transform_3(%arg0: i32) -> (i32, i32) {
    %c0_i32 = arith.constant 0 : i32
    %c0_i32_0 = arith.constant 0 : i32
    return %arg0, %c0_i32 : i32, i32
  }
}

module attributes {stable_mosaic.version = 11 : i64} {
  func.func @_matmul_bias_relu_kernel(%arg0: i32, %arg1: memref<128x512xbf16, #tpu.memory_space<vmem>>, %arg2: memref<512x64xbf16, #tpu.memory_space<vmem>>, %arg3: memref<1x64xf32, #tpu.memory_space<vmem>>, %arg4: memref<128x64xbf16, #tpu.memory_space<vmem>>) attributes {dimension_semantics = [#tpu.dimension_semantics<parallel>], iteration_bounds = array<i64: 4>, scalar_prefetch = 0 : i64, scratch_operands = 0 : i64, tpu.core_type = #tpu.core_type<tc>, window_params = [{transform_indices = @transform_0, window_bounds = array<i64: 128, 512>}, {pipeline_mode = #tpu.pipeline_mode<synchronous>, transform_indices = @transform_1, window_bounds = array<i64: 512, 64>}, {pipeline_mode = #tpu.pipeline_mode<synchronous>, transform_indices = @transform_2, window_bounds = array<i64: 1, 64>}, {transform_indices = @transform_3, window_bounds = array<i64: 128, 64>}]} {
    %c0 = arith.constant 0 : index
    %c0_0 = arith.constant 0 : index
    %0 = vector.load %arg1[%c0, %c0_0] : memref<128x512xbf16, #tpu.memory_space<vmem>>, vector<128x512xbf16>
    %c0_1 = arith.constant 0 : index
    %c0_2 = arith.constant 0 : index
    %1 = vector.load %arg2[%c0_1, %c0_2] : memref<512x64xbf16, #tpu.memory_space<vmem>>, vector<512x64xbf16>
    %cst = arith.constant dense<0.000000e+00> : vector<128x64xf32>
    %2 = tpu.matmul %0, %1, %cst {dimension_numbers = #tpu.dot_dimension_numbers<[1], [0], [0], [1], [0, 0, 1, 1], [], []>} : vector<128x512xbf16>, vector<512x64xbf16>, vector<128x64xf32> -> vector<128x64xf32>
    %c0_3 = arith.constant 0 : index
    %c0_4 = arith.constant 0 : index
    %3 = vector.load %arg3[%c0_3, %c0_4] : memref<1x64xf32, #tpu.memory_space<vmem>>, vector<1x64xf32>
    %4 = vector.broadcast %3 : vector<1x64xf32> to vector<128x64xf32>
    %5 = arith.addf %2, %4 : vector<128x64xf32>
    %cst_5 = arith.constant 0.000000e+00 : f32
    %6 = vector.broadcast %cst_5 : f32 to vector<128x64xf32>
    %7 = arith.maximumf %5, %6 : vector<128x64xf32>
    %8 = arith.truncf %7 : vector<128x64xf32> to vector<128x64xbf16>
    %c0_6 = arith.constant 0 : index
    %c0_7 = arith.constant 0 : index
    %9 = vector.load %arg4[%c0_6, %c0_7] : memref<128x64xbf16, #tpu.memory_space<vmem>>, vector<128x64xbf16>
    tpu.vector_store %arg4[%c0_6, %c0_7], %8 {strides = array<i32>} : memref<128x64xbf16, #tpu.memory_space<vmem>>, vector<128x64xbf16>,
    return
  }
  func.func @transform_0(%arg0: i32) -> (i32, i32) {
    %c0_i32 = arith.constant 0 : i32
    %c0_i32_0 = arith.constant 0 : i32
    return %arg0, %c0_i32 : i32, i32
  }
  func.func @transform_1(%arg0: i32) -> (i32, i32) {
    %c0_i32 = arith.constant 0 : i32
    %c0_i32_0 = arith.constant 0 : i32
    %c0_i32_1 = arith.constant 0 : i32
    return %c0_i32, %c0_i32_0 : i32, i32
  }
  func.func @transform_2(%arg0: i32) -> (i32, i32) {
    %c0_i32 = arith.constant 0 : i32
    %c0_i32_0 = arith.constant 0 : i32
    %c0_i32_1 = arith.constant 0 : i32
    return %c0_i32, %c0_i32_0 : i32, i32
  }
  func.func @transform_3(%arg0: i32) -> (i32, i32) {
    %c0_i32 = arith.constant 0 : i32
    %c0_i32_0 = arith.constant 0 : i32
    return %arg0, %c0_i32 : i32, i32
  }
}

module attributes {stable_mosaic.version = 11 : i64} {
  func.func @_matmul_bias_relu_kernel(%arg0: i32, %arg1: memref<80x1024xbf16, #tpu.memory_space<vmem>>, %arg2: memref<1024x128xbf16, #tpu.memory_space<vmem>>, %arg3: memref<1x128xf32, #tpu.memory_space<vmem>>, %arg4: memref<80x128xbf16, #tpu.memory_space<vmem>>) attributes {dimension_semantics = [#tpu.dimension_semantics<parallel>], iteration_bounds = array<i64: 1>, scalar_prefetch = 0 : i64, scratch_operands = 0 : i64, tpu.core_type = #tpu.core_type<tc>, window_params = [{transform_indices = @transform_0, window_bounds = array<i64: 80, 1024>}, {pipeline_mode = #tpu.pipeline_mode<synchronous>, transform_indices = @transform_1, window_bounds = array<i64: 1024, 128>}, {pipeline_mode = #tpu.pipeline_mode<synchronous>, transform_indices = @transform_2, window_bounds = array<i64: 1, 128>}, {transform_indices = @transform_3, window_bounds = array<i64: 80, 128>}]} {
    %c0 = arith.constant 0 : index
    %c0_0 = arith.constant 0 : index
    %0 = vector.load %arg1[%c0, %c0_0] : memref<80x1024xbf16, #tpu.memory_space<vmem>>, vector<80x1024xbf16>
    %c0_1 = arith.constant 0 : index
    %c0_2 = arith.constant 0 : index
    %1 = vector.load %arg2[%c0_1, %c0_2] : memref<1024x128xbf16, #tpu.memory_space<vmem>>, vector<1024x128xbf16>
    %cst = arith.constant dense<0.000000e+00> : vector<80x128xf32>
    %2 = tpu.matmul %0, %1, %cst {dimension_numbers = #tpu.dot_dimension_numbers<[1], [0], [0], [1], [0, 0, 1, 1], [], []>} : vector<80x1024xbf16>, vector<1024x128xbf16>, vector<80x128xf32> -> vector<80x128xf32>
    %c0_3 = arith.constant 0 : index
    %c0_4 = arith.constant 0 : index
    %3 = vector.load %arg3[%c0_3, %c0_4] : memref<1x128xf32, #tpu.memory_space<vmem>>, vector<1x128xf32>
    %4 = vector.broadcast %3 : vector<1x128xf32> to vector<80x128xf32>
    %5 = arith.addf %2, %4 : vector<80x128xf32>
    %cst_5 = arith.constant 0.000000e+00 : f32
    %6 = vector.broadcast %cst_5 : f32 to vector<80x128xf32>
    %7 = arith.maximumf %5, %6 : vector<80x128xf32>
    %8 = arith.truncf %7 : vector<80x128xf32> to vector<80x128xbf16>
    %c0_6 = arith.constant 0 : index
    %c0_7 = arith.constant 0 : index
    %9 = vector.load %arg4[%c0_6, %c0_7] : memref<80x128xbf16, #tpu.memory_space<vmem>>, vector<80x128xbf16>
    tpu.vector_store %arg4[%c0_6, %c0_7], %8 {strides = array<i32>} : memref<80x128xbf16, #tpu.memory_space<vmem>>, vector<80x128xbf16>,
    return
  }
  func.func @transform_0(%arg0: i32) -> (i32, i32) {
    %c0_i32 = arith.constant 0 : i32
    %c0_i32_0 = arith.constant 0 : i32
    return %arg0, %c0_i32 : i32, i32
  }
  func.func @transform_1(%arg0: i32) -> (i32, i32) {
    %c0_i32 = arith.constant 0 : i32
    %c0_i32_0 = arith.constant 0 : i32
    %c0_i32_1 = arith.constant 0 : i32
    return %c0_i32, %c0_i32_0 : i32, i32
  }
  func.func @transform_2(%arg0: i32) -> (i32, i32) {
    %c0_i32 = arith.constant 0 : i32
    %c0_i32_0 = arith.constant 0 : i32
    %c0_i32_1 = arith.constant 0 : i32
    return %c0_i32, %c0_i32_0 : i32, i32
  }
  func.func @transform_3(%arg0: i32) -> (i32, i32) {
    %c0_i32 = arith.constant 0 : i32
    %c0_i32_0 = arith.constant 0 : i32
    return %arg0, %c0_i32 : i32, i32
  }
}

module attributes {stable_mosaic.version = 11 : i64} {
  func.func @_head_reparam_kl_kernel(%arg0: memref<2x1024xbf16, #tpu.memory_space<vmem>>, %arg1: memref<1024x64xbf16, #tpu.memory_space<vmem>>, %arg2: memref<1x64xf32, #tpu.memory_space<vmem>>, %arg3: memref<2x32xf32, #tpu.memory_space<vmem>>, %arg4: memref<2x32xf32, #tpu.memory_space<vmem>>, %arg5: memref<1x1xf32, #tpu.memory_space<smem>>) attributes {dimension_semantics = [], scalar_prefetch = 0 : i64, scratch_operands = 0 : i64, tpu.core_type = #tpu.core_type<tc>} {
    %c0 = arith.constant 0 : index
    %c0_0 = arith.constant 0 : index
    %0 = vector.load %arg0[%c0, %c0_0] : memref<2x1024xbf16, #tpu.memory_space<vmem>>, vector<2x1024xbf16>
    %c0_1 = arith.constant 0 : index
    %c0_2 = arith.constant 0 : index
    %1 = vector.load %arg1[%c0_1, %c0_2] : memref<1024x64xbf16, #tpu.memory_space<vmem>>, vector<1024x64xbf16>
    %cst = arith.constant dense<0.000000e+00> : vector<2x64xf32>
    %2 = tpu.matmul %0, %1, %cst {dimension_numbers = #tpu.dot_dimension_numbers<[1], [0], [0], [1], [0, 0, 1, 1], [], []>} : vector<2x1024xbf16>, vector<1024x64xbf16>, vector<2x64xf32> -> vector<2x64xf32>
    %c0_3 = arith.constant 0 : index
    %c0_4 = arith.constant 0 : index
    %3 = vector.load %arg2[%c0_3, %c0_4] : memref<1x64xf32, #tpu.memory_space<vmem>>, vector<1x64xf32>
    %4 = vector.broadcast %3 : vector<1x64xf32> to vector<2x64xf32>
    %5 = arith.addf %2, %4 : vector<2x64xf32>
    %cst_5 = arith.constant 0.000000e+00 : f32
    %6 = vector.broadcast %cst_5 : f32 to vector<2x64xf32>
    %7 = arith.cmpf oge, %5, %6 : vector<2x64xf32>
    %cst_6 = arith.constant 0.00999999977 : f32
    %8 = vector.broadcast %cst_6 : f32 to vector<2x64xf32>
    %9 = arith.mulf %8, %5 : vector<2x64xf32>
    %10 = arith.select %7, %5, %9 : vector<2x64xi1>, vector<2x64xf32>
    %11 = vector.extract_strided_slice %10 {offsets = [0, 0], sizes = [2, 32], strides = [1, 1]} : vector<2x64xf32> to vector<2x32xf32>
    %12 = vector.extract_strided_slice %10 {offsets = [0, 32], sizes = [2, 32], strides = [1, 1]} : vector<2x64xf32> to vector<2x32xf32>
    %cst_7 = arith.constant 5.000000e-01 : f32
    %13 = vector.broadcast %cst_7 : f32 to vector<2x32xf32>
    %14 = arith.mulf %12, %13 : vector<2x32xf32>
    %15 = math.exp %14 : vector<2x32xf32>
    %c0_8 = arith.constant 0 : index
    %c0_9 = arith.constant 0 : index
    %16 = vector.load %arg3[%c0_8, %c0_9] : memref<2x32xf32, #tpu.memory_space<vmem>>, vector<2x32xf32>
    %17 = arith.mulf %16, %15 : vector<2x32xf32>
    %18 = arith.addf %17, %11 : vector<2x32xf32>
    %c0_10 = arith.constant 0 : index
    %c0_11 = arith.constant 0 : index
    %19 = vector.load %arg4[%c0_10, %c0_11] : memref<2x32xf32, #tpu.memory_space<vmem>>, vector<2x32xf32>
    tpu.vector_store %arg4[%c0_10, %c0_11], %18 {strides = array<i32>} : memref<2x32xf32, #tpu.memory_space<vmem>>, vector<2x32xf32>,
    %20 = math.exp %12 : vector<2x32xf32>
    %21 = arith.mulf %11, %11 : vector<2x32xf32>
    %22 = arith.addf %20, %21 : vector<2x32xf32>
    %cst_12 = arith.constant 1.000000e+00 : f32
    %23 = vector.broadcast %cst_12 : f32 to vector<2x32xf32>
    %24 = arith.subf %22, %23 : vector<2x32xf32>
    %25 = arith.subf %24, %12 : vector<2x32xf32>
    %26 = vector.shape_cast %25 : vector<2x32xf32> to vector<1x2x32xf32>
    %cst_13 = arith.constant dense<0.000000e+00> : vector<1xf32>
    %27 = vector.multi_reduction <add>, %26, %cst_13 [1, 2] : vector<1x2x32xf32> to vector<1xf32>
    %28 = vector.shape_cast %27 : vector<1xf32> to vector<1x1x1xf32>
    %29 = vector.extract %28[0, 0, 0] : f32 from vector<1x1x1xf32>
    %cst_14 = arith.constant 5.000000e-01 : f32
    %30 = arith.mulf %cst_14, %29 : f32
    %c0_15 = arith.constant 0 : index
    %c0_16 = arith.constant 0 : index
    %31 = memref.load %arg5[%c0_15, %c0_16] : memref<1x1xf32, #tpu.memory_space<smem>>
    memref.store %30, %arg5[%c0_15, %c0_16] : memref<1x1xf32, #tpu.memory_space<smem>>
    return
  }
}

module attributes {stable_mosaic.version = 11 : i64} {
  func.func @_matmul_bias_relu_kernel(%arg0: i32, %arg1: memref<16x2048xbf16, #tpu.memory_space<vmem>>, %arg2: memref<2048x256xbf16, #tpu.memory_space<vmem>>, %arg3: memref<1x256xf32, #tpu.memory_space<vmem>>, %arg4: memref<16x256xbf16, #tpu.memory_space<vmem>>) attributes {dimension_semantics = [#tpu.dimension_semantics<parallel>], iteration_bounds = array<i64: 1>, scalar_prefetch = 0 : i64, scratch_operands = 0 : i64, tpu.core_type = #tpu.core_type<tc>, window_params = [{transform_indices = @transform_0, window_bounds = array<i64: 16, 2048>}, {pipeline_mode = #tpu.pipeline_mode<synchronous>, transform_indices = @transform_1, window_bounds = array<i64: 2048, 256>}, {pipeline_mode = #tpu.pipeline_mode<synchronous>, transform_indices = @transform_2, window_bounds = array<i64: 1, 256>}, {transform_indices = @transform_3, window_bounds = array<i64: 16, 256>}]} {
    %c0 = arith.constant 0 : index
    %c0_0 = arith.constant 0 : index
    %0 = vector.load %arg1[%c0, %c0_0] : memref<16x2048xbf16, #tpu.memory_space<vmem>>, vector<16x2048xbf16>
    %c0_1 = arith.constant 0 : index
    %c0_2 = arith.constant 0 : index
    %1 = vector.load %arg2[%c0_1, %c0_2] : memref<2048x256xbf16, #tpu.memory_space<vmem>>, vector<2048x256xbf16>
    %cst = arith.constant dense<0.000000e+00> : vector<16x256xf32>
    %2 = tpu.matmul %0, %1, %cst {dimension_numbers = #tpu.dot_dimension_numbers<[1], [0], [0], [1], [0, 0, 1, 1], [], []>} : vector<16x2048xbf16>, vector<2048x256xbf16>, vector<16x256xf32> -> vector<16x256xf32>
    %c0_3 = arith.constant 0 : index
    %c0_4 = arith.constant 0 : index
    %3 = vector.load %arg3[%c0_3, %c0_4] : memref<1x256xf32, #tpu.memory_space<vmem>>, vector<1x256xf32>
    %4 = vector.broadcast %3 : vector<1x256xf32> to vector<16x256xf32>
    %5 = arith.addf %2, %4 : vector<16x256xf32>
    %cst_5 = arith.constant 0.000000e+00 : f32
    %6 = vector.broadcast %cst_5 : f32 to vector<16x256xf32>
    %7 = arith.maximumf %5, %6 : vector<16x256xf32>
    %8 = arith.truncf %7 : vector<16x256xf32> to vector<16x256xbf16>
    %c0_6 = arith.constant 0 : index
    %c0_7 = arith.constant 0 : index
    %9 = vector.load %arg4[%c0_6, %c0_7] : memref<16x256xbf16, #tpu.memory_space<vmem>>, vector<16x256xbf16>
    tpu.vector_store %arg4[%c0_6, %c0_7], %8 {strides = array<i32>} : memref<16x256xbf16, #tpu.memory_space<vmem>>, vector<16x256xbf16>,
    return
  }
  func.func @transform_0(%arg0: i32) -> (i32, i32) {
    %c0_i32 = arith.constant 0 : i32
    %c0_i32_0 = arith.constant 0 : i32
    return %arg0, %c0_i32 : i32, i32
  }
  func.func @transform_1(%arg0: i32) -> (i32, i32) {
    %c0_i32 = arith.constant 0 : i32
    %c0_i32_0 = arith.constant 0 : i32
    %c0_i32_1 = arith.constant 0 : i32
    return %c0_i32, %c0_i32_0 : i32, i32
  }
  func.func @transform_2(%arg0: i32) -> (i32, i32) {
    %c0_i32 = arith.constant 0 : i32
    %c0_i32_0 = arith.constant 0 : i32
    %c0_i32_1 = arith.constant 0 : i32
    return %c0_i32, %c0_i32_0 : i32, i32
  }
  func.func @transform_3(%arg0: i32) -> (i32, i32) {
    %c0_i32 = arith.constant 0 : i32
    %c0_i32_0 = arith.constant 0 : i32
    return %arg0, %c0_i32 : i32, i32
  }
}

</mosaic_0001>

<llo_original>
// kernel: encoder_forward.5
$region0: #{encoder_forward.5}
  #allocation0 [shape = 'u32[]', space=smem, size = 0x4, offset = 0x4, fixed_abs, tag = 'smem constant byte address 0x4 - core index']
  #allocation1 [shape = 'u32[144,128]{1,0:T(1,128)}', space=vmem, size = 0x12000, scoped, tag = 'internal scratch']
  %s0 = inlined_call_operand.vmem [shape: bf16[2048,16], index: 0, kind: input, shape index: {}]
  %s1 = inlined_call_operand.hbm [shape: bf16[16,32], index: 1, kind: input, shape index: {}]
  %s2 = inlined_call_operand.hbm [shape: f32[1,32], index: 2, kind: input, shape index: {}]
  %s3 = inlined_call_operand.vmem [shape: bf16[2048,32], index: 3, kind: output, shape index: {}]
  %s4 = sld [smem:[#allocation0]]
  $region53: #{encoder_forward.5} parent=0
    _
  %s6 = ssub.s32 1, %s4
  %s7 = scalar_select 0, %s6, %s4
  $region1: #{encoder_forward.5} parent=0
    #allocation2 [shape = 'u8[4096]{0}', space=vmem, size = 0x1000, scoped, tag = 'input window, operand 1, single buffered']
    #allocation3 [shape = 's32[2]{0}', space=sflag, size = 0x8, scoped, tag = 'scoped memory for encoder_forward.5']
    #allocation4 [shape = 'u8[512]{0}', space=vmem, size = 0x400, scoped, tag = 'input window, operand 2, single buffered']
    #allocation5 [shape = 's32[1]{0}', space=sflag, size = 0x4, scoped, tag = 'scoped memory for encoder_forward.5']
    %8 = vsyncpa [#allocation3], 0
    %9 = vsyncpa [#allocation5], 0
    loop: start=0, step=1, limit=18
    $region2: #{encoder_forward.5} parent=1 // loop_pre_header
      _
    $region3: #{encoder_forward.5} parent=1 // loop_header
      %s11 = sphi 0, %s15
      %p12 = scmp.ge.s32.totalorder %s11, 18
      %s21 = sphi 0, %s23
      %s24 = sphi 0, %s21
      %s25 = sphi 0, %s24
      %s41 = sphi 0, %s25
      %s45 = sphi 0, %s45
      %s47 = sphi 0, %s45
      %s48 = sphi 0, %s47
      %s62 = sphi 0, %s48
      %s66 = sphi 0, %s66
      %s68 = sphi 0, %s66
      %s69 = sphi 0, %s68
      %s83 = sphi 0, %s69
      %s89 = sphi 0, %s91
      %s92 = sphi 0, %s89
      %s93 = sphi 0, %s92
      %s109 = sphi 0, %s93
    $region4: #{encoder_forward.5} parent=1 // loop_header_branch
      %14 = sbr.rel (%p12) target = $region8
    $region5: #{encoder_forward.5} parent=1 // loop_body
      %s16 = ssub.s32 %s11, 1
      %s17 = ssub.s32 %s11, 2
      %s18 = sadd.s32 %s11, 1
      %s19 = ssub.s32 %s11, %s18
      %p20 = scmp.eq.s32.totalorder %s19, 0
      %s22 = sadd.s32 %s21, 1
      %s23 = scalar_select %p20, %s21, %s22
      %p26 = pneg %p20
      %p27 = scmp.eq.s32.totalorder %s11, 15
      %p28 = por %p26, %p27
      %p29 = scmp.ne.s32.totalorder %s21, %s24
      %p30 = scmp.eq.s32.totalorder %s11, 0
      %p31 = por %p29, %p30
      %p32 = scmp.ne.s32.totalorder %s21, %s24
      %p33 = scmp.eq.s32.totalorder %s16, 15
      %p34 = por %p32, %p33
      %p35 = scmp.ne.s32.totalorder %s24, %s25
      %p36 = scmp.eq.s32.totalorder %s16, 0
      %p37 = por %p35, %p36
      %p38 = scmp.ne.s32.totalorder %s24, %s25
      %p39 = scmp.eq.s32.totalorder %s17, 15
      %p40 = por %p38, %p39
      %p42 = scmp.ne.s32.totalorder %s25, %s41
      %p43 = scmp.eq.s32.totalorder %s17, 0
      %p44 = por %p42, %p43
      %s46 = sadd.s32 %s45, 1
      %p49 = scmp.eq.s32.totalorder %s11, 15
      %p50 = scmp.ne.s32.totalorder %s45, %s47
      %p51 = scmp.eq.s32.totalorder %s11, 0
      %p52 = por %p50, %p51
      %p53 = scmp.ne.s32.totalorder %s45, %s47
      %p54 = scmp.eq.s32.totalorder %s16, 15
      %p55 = por %p53, %p54
      %p56 = scmp.ne.s32.totalorder %s47, %s48
      %p57 = scmp.eq.s32.totalorder %s16, 0
      %p58 = por %p56, %p57
      %p59 = scmp.ne.s32.totalorder %s47, %s48
      %p60 = scmp.eq.s32.totalorder %s17, 15
      %p61 = por %p59, %p60
      %p63 = scmp.ne.s32.totalorder %s48, %s62
      %p64 = scmp.eq.s32.totalorder %s17, 0
      %p65 = por %p63, %p64
      %s67 = sadd.s32 %s66, 1
      %p70 = scmp.eq.s32.totalorder %s11, 15
      %p71 = scmp.ne.s32.totalorder %s66, %s68
      %p72 = scmp.eq.s32.totalorder %s11, 0
      %p73 = por %p71, %p72
      %p74 = scmp.ne.s32.totalorder %s66, %s68
      %p75 = scmp.eq.s32.totalorder %s16, 15
      %p76 = por %p74, %p75
      %p77 = scmp.ne.s32.totalorder %s68, %s69
      %p78 = scmp.eq.s32.totalorder %s16, 0
      %p79 = por %p77, %p78
      %p80 = scmp.ne.s32.totalorder %s68, %s69
      %p81 = scmp.eq.s32.totalorder %s17, 15
      %p82 = por %p80, %p81
      %p84 = scmp.ne.s32.totalorder %s69, %s83
      %p85 = scmp.eq.s32.totalorder %s17, 0
      %p86 = por %p84, %p85
      %s87 = ssub.s32 %s11, %s18
      %p88 = scmp.eq.s32.totalorder %s87, 0
      %s90 = sadd.s32 %s89, 1
      %s91 = scalar_select %p88, %s89, %s90
      %p94 = pneg %p88
      %p95 = scmp.eq.s32.totalorder %s11, 15
      %p96 = por %p94, %p95
      %p97 = scmp.ne.s32.totalorder %s89, %s92
      %p98 = scmp.eq.s32.totalorder %s11, 0
      %p99 = por %p97, %p98
      %p100 = scmp.ne.s32.totalorder %s89, %s92
      %p101 = scmp.eq.s32.totalorder %s16, 15
      %p102 = por %p100, %p101
      %p103 = scmp.ne.s32.totalorder %s92, %s93
      %p104 = scmp.eq.s32.totalorder %s16, 0
      %p105 = por %p103, %p104
      %p106 = scmp.ne.s32.totalorder %s92, %s93
      %p107 = scmp.eq.s32.totalorder %s17, 15
      %p108 = por %p106, %p107
      %p110 = scmp.ne.s32.totalorder %s93, %s109
      %p111 = scmp.eq.s32.totalorder %s17, 0
      %p112 = por %p110, %p111
      %p113 = scmp.le.s32.totalorder 1, %s11
      %p114 = scmp.lt.s32.totalorder %s11, 17
      %p115 = pnand %p113, %p114
      %p116 = pneg %p115
      // Predicated region
      $region9: #{encoder_forward.5} parent=5 // pred_check
        _
      $region10: #{encoder_forward.5} parent=5 // pred_check_branch
        %118 = sbr.rel (%p115) target = $region12
      $region11: #{encoder_forward.5} parent=5 // pred_region
        %s119 = ssub.s32 %s11, 1
        // Predicated region
        $region13: #{encoder_forward.5} parent=11 // pred_check
          %p120 = pneg %p58
        $region14: #{encoder_forward.5} parent=11 // pred_check_branch
          %122 = sbr.rel (%p120) target = $region16
        $region15: #{encoder_forward.5} parent=11 // pred_region
          %s124 = ssub.s32 128, 128
          %125 = vsyncadd [#allocation3], %s124
          %s126 = sshll.u32 [#allocation2], 4
          %s127 = int_to_ptr.vmem [resolvable:$true] %s126
          %132 = dma.hbm_to_vmem [thread:$0]  %s1, 128, %s127, [#allocation3], 64, 64, 4
        $region16: #{encoder_forward.5} parent=11 // pred_fallthru
          _
        // Predicated region
        $region17: #{encoder_forward.5} parent=11 // pred_check
          %p133 = pneg %p79
        $region18: #{encoder_forward.5} parent=11 // pred_check_branch
          %135 = sbr.rel (%p133) target = $region20
        $region19: #{encoder_forward.5} parent=11 // pred_region
          %s137 = ssub.s32 16, 16
          %138 = vsyncadd [#allocation5], %s137
          %s140 = sshll.u32 [#allocation4], 4
          %s141 = int_to_ptr.vmem [resolvable:$true] %s140
          %143 = dma.hbm_to_vmem [thread:$0]  %s2, 16, %s141, [#allocation5]
        $region20: #{encoder_forward.5} parent=11 // pred_fallthru
          _
      $region12: #{encoder_forward.5} parent=5 // pred_fallthru
        _
      %p144 = scmp.lt.s32.totalorder %s11, 16
      // Predicated region
      $region21: #{encoder_forward.5} parent=5 // pred_check
        %p145 = pneg %p144
      $region22: #{encoder_forward.5} parent=5 // pred_check_branch
        %147 = sbr.rel (%p145) target = $region24
      $region23: #{encoder_forward.5} parent=5 // pred_region
        // Predicated region
        $region25: #{encoder_forward.5} parent=23 // pred_check
          %p148 = pneg %p31
        $region26: #{encoder_forward.5} parent=23 // pred_check_branch
          %150 = sbr.rel (%p148) target = $region28
        $region27: #{encoder_forward.5} parent=23 // pred_region
          %s151 = smul.u32 16, %s11
          %p152 = scmp.lt.s32.totalorder %s151, 255
          %s153 = scalar_select %p152, %s151, 255
          %s154 = smul.addr %s153, 4
          %s155 = scalar_lea.vmem %s0, %s154
          %s156 = smul.u32 16, %s11
        $region28: #{encoder_forward.5} parent=23 // pred_fallthru
          _
      $region24: #{encoder_forward.5} parent=5 // pred_fallthru
        _
      %p157 = scmp.le.s32.totalorder 1, %s11
      %p158 = scmp.lt.s32.totalorder %s11, 17
      %p159 = pnand %p157, %p158
      %p160 = pneg %p159
      // Predicated region
      $region29: #{encoder_forward.5} parent=5 // pred_check
        _
      $region30: #{encoder_forward.5} parent=5 // pred_check_branch
        %162 = sbr.rel (%p159) target = $region32
      $region31: #{encoder_forward.5} parent=5 // pred_region
        %s163 = ssub.s32 %s11, 1
        // Predicated region
        $region33: #{encoder_forward.5} parent=31 // pred_check
          %p164 = pneg %p58
        $region34: #{encoder_forward.5} parent=31 // pred_check_branch
          %166 = sbr.rel (%p164) target = $region36
        $region35: #{encoder_forward.5} parent=31 // pred_region
          %167 = dma.done [#allocation3], 128
        $region36: #{encoder_forward.5} parent=31 // pred_fallthru
          _
        // Predicated region
        $region37: #{encoder_forward.5} parent=31 // pred_check
          %p168 = pneg %p79
        $region38: #{encoder_forward.5} parent=31 // pred_check_branch
          %170 = sbr.rel (%p168) target = $region40
        $region39: #{encoder_forward.5} parent=31 // pred_region
          %171 = dma.done [#allocation5], 16
        $region40: #{encoder_forward.5} parent=31 // pred_fallthru
          _
        %s172 = smul.u32 16, %s16
        %p173 = scmp.lt.s32.totalorder %s172, 255
        %s174 = scalar_select %p173, %s172, 255
        %s175 = smul.addr %s174, 4
        %s176 = scalar_lea.vmem %s0, %s175
        %p177 = pneg %p37
        %p178 = pneg %p34
        %p179 = pneg %p58
        %p180 = pneg %p55
        %p181 = pneg %p79
        %p182 = pneg %p76
        %p183 = pneg %p105
        %p184 = pneg %p102
        %s185 = smul.u32 16, %s16
        %p186 = scmp.lt.s32.totalorder %s185, 255
        %s187 = scalar_select %p186, %s185, 255
        %s188 = smul.addr %s187, 4
        %s189 = scalar_lea.vmem %s3, %s188
        %s190 = smul.u32 16, %s16
        %p191 = scmp.lt.s32.totalorder %s190, 255
        %s192 = scalar_select %p191, %s190, 255
        %s193 = smul.addr %s192, 4
        %s194 = scalar_lea.vmem %s0, %s193
        %s195 = smul.u32 16, %s16
        %s196 = smul.u32 16, %s16
        %p197 = scmp.lt.s32.totalorder %s196, 255
        %s198 = scalar_select %p197, %s196, 255
        %s199 = smul.addr %s198, 4
        %s200 = scalar_lea.vmem %s3, %s199
        %s201 = smul.u32 16, %s16
        %v203 = vld [vmem:[%s194] sm:$0xf]
        %v204 = vld [vmem:[%s194 + $0x4] sm:$0xf]
        %v205 = vld [vmem:[%s194 + $0x8] sm:$0xf]
        %v206 = vld [vmem:[%s194 + $0xc] sm:$0xf]
        %v207 = vld [vmem:[%s194 + $0x10] sm:$0xf]
        %v208 = vld [vmem:[%s194 + $0x14] sm:$0xf]
        %v209 = vld [vmem:[%s194 + $0x18] sm:$0xf]
        %v210 = vld [vmem:[%s194 + $0x1c] sm:$0xf]
        %v211 = vld [vmem:[%s194 + $0x20] sm:$0xf]
        %v212 = vld [vmem:[%s194 + $0x24] sm:$0xf]
        %v213 = vld [vmem:[%s194 + $0x28] sm:$0xf]
        %v214 = vld [vmem:[%s194 + $0x2c] sm:$0xf]
        %v215 = vld [vmem:[%s194 + $0x30] sm:$0xf]
        %v216 = vld [vmem:[%s194 + $0x34] sm:$0xf]
        %v217 = vld [vmem:[%s194 + $0x38] sm:$0xf]
        %v218 = vld [vmem:[%s194 + $0x3c] sm:$0xf]
        %v219 = vld [vmem:[#allocation2] sm:$0xf]
        %v220 = vld [vmem:[#allocation2 + $0x4] sm:$0xf]
        %v221 = vld [vmem:[#allocation4] sm:$0x1]
        %v223 = vlaneseq
        %v224 = vshrl.u32 %v223, 7
        %v225 = vsub.s32 0, %v224
        %v226 = vrot.slane %v221, %v225
        %v244 = vunpack.c.l.b16 %v203
        %v245 = vunpack.c.l.b16 %v204
        %v246 = vunpack.c.l.b16 %v205
        %v247 = vunpack.c.l.b16 %v206
        %v248 = vunpack.c.l.b16 %v207
        %v249 = vunpack.c.l.b16 %v208
        %v250 = vunpack.c.l.b16 %v209
        %v251 = vunpack.c.l.b16 %v210
        %v252 = vunpack.c.l.b16 %v211
        %v253 = vunpack.c.l.b16 %v212
        %v254 = vunpack.c.l.b16 %v213
        %v255 = vunpack.c.l.b16 %v214
        %v256 = vunpack.c.l.b16 %v215
        %v257 = vunpack.c.l.b16 %v216
        %v258 = vunpack.c.l.b16 %v217
        %v259 = vunpack.c.l.b16 %v218
        %v260 = vpack.c.b16 %v245, %v244
        %v261 = vpack.c.b16 %v247, %v246
        %v262 = vpack.c.b16 %v249, %v248
        %v263 = vpack.c.b16 %v251, %v250
        %v264 = vpack.c.b16 %v253, %v252
        %v265 = vpack.c.b16 %v255, %v254
        %v266 = vpack.c.b16 %v257, %v256
        %v267 = vpack.c.b16 %v259, %v258
        %v270 = vunpack.c.l.b16 %v219
        %v271 = vunpack.c.l.b16 %v220
        %v272 = vpack.c.b16 %v271, %v270
        %vm274 = vcmask 130048
        %v276 = vsel %vm274, %v260, 0
        %v279 = vsel %vm274, %v261, 0
        %v282 = vsel %vm274, %v262, 0
        %v285 = vsel %vm274, %v263, 0
        %v288 = vsel %vm274, %v264, 0
        %v291 = vsel %vm274, %v265, 0
        %v294 = vsel %vm274, %v266, 0
        %v297 = vsel %vm274, %v267, 0
        %299 = vmatprep.subr.bf16.mxu0 0
        %300 = vmatpush1.bf16.msra.mxu0 0
        %301 = vmatprep.subr.bf16.mxu0 0
        %302 = vmatpush1.bf16.msra.mxu0 0
        %303 = vmatprep.subr.bf16.mxu0 0
        %304 = vmatpush1.bf16.msra.mxu0 0
        %305 = vmatprep.subr.bf16.mxu0 0
        %306 = vmatpush1.bf16.msra.mxu0 0
        %307 = vmatprep.subr.bf16.mxu0 0
        %308 = vmatpush1.bf16.msra.mxu0 0
        %309 = vmatprep.subr.bf16.mxu0 0
        %310 = vmatpush1.bf16.msra.mxu0 0
        %311 = vmatprep.subr.bf16.mxu0 0
        %312 = vmatpush1.bf16.msra.mxu0 0
        %313 = vmatprep.subr.bf16.mxu0 0
        %314 = vmatpush1.bf16.msra.mxu0 %v272
        %315 = vmatprep.subr.bf16.mxu0 0
        %316 = vmatpush2.bf16.msra.mxu0 0
        %317 = vmatprep.subr.bf16.mxu0 0
        %318 = vmatpush2.bf16.msra.mxu0 0
        %319 = vmatprep.subr.bf16.mxu0 0
        %320 = vmatpush2.bf16.msra.mxu0 0
        %321 = vmatprep.subr.bf16.mxu0 0
        %322 = vmatpush2.bf16.msra.mxu0 0
        %323 = vmatprep.subr.bf16.mxu0 0
        %324 = vmatpush2.bf16.msra.mxu0 0
        %325 = vmatprep.subr.bf16.mxu0 0
        %326 = vmatpush2.bf16.msra.mxu0 0
        %327 = vmatprep.subr.bf16.mxu0 0
        %328 = vmatpush2.bf16.msra.mxu0 0
        %329 = vmatprep.subr.bf16.mxu0 0
        %330 = vmatpush2.bf16.msra.mxu0 0
        %331 = vmatprep.mubr.bf16.mxu0 0
        %332 = vmatmul.mubr.bf16.gmra.mxu0 %v276
        %v333 = vpop.f32.mrf.mxu0
        %v334 = vadd.f32 %v226, %v333
        %v335 = vpop.f32.mrf.mxu0
        %v336 = vpop.f32.mrf.mxu0
        %v337 = vadd.f32 %v226, %v336
        %v338 = vpop.f32.mrf.mxu0
        %339 = vmatprep.mubr.bf16.mxu0 0
        %340 = vmatmul.mubr.bf16.gmra.mxu0 %v279
        %v341 = vpop.f32.mrf.mxu0
        %v342 = vadd.f32 %v226, %v341
        %v343 = vpop.f32.mrf.mxu0
        %v344 = vpop.f32.mrf.mxu0
        %v345 = vadd.f32 %v226, %v344
        %v346 = vpop.f32.mrf.mxu0
        %347 = vmatprep.mubr.bf16.mxu0 0
        %348 = vmatmul.mubr.bf16.gmra.mxu0 %v282
        %v349 = vpop.f32.mrf.mxu0
        %v350 = vadd.f32 %v226, %v349
        %v351 = vpop.f32.mrf.mxu0
        %v352 = vpop.f32.mrf.mxu0
        %v353 = vadd.f32 %v226, %v352
        %v354 = vpop.f32.mrf.mxu0
        %355 = vmatprep.mubr.bf16.mxu0 0
        %356 = vmatmul.mubr.bf16.gmra.mxu0 %v285
        %v357 = vpop.f32.mrf.mxu0
        %v358 = vadd.f32 %v226, %v357
        %v359 = vpop.f32.mrf.mxu0
        %v360 = vpop.f32.mrf.mxu0
        %v361 = vadd.f32 %v226, %v360
        %v362 = vpop.f32.mrf.mxu0
        %363 = vmatprep.mubr.bf16.mxu0 0
        %364 = vmatmul.mubr.bf16.gmra.mxu0 %v288
        %v365 = vpop.f32.mrf.mxu0
        %v366 = vadd.f32 %v226, %v365
        %v367 = vpop.f32.mrf.mxu0
        %v368 = vpop.f32.mrf.mxu0
        %v369 = vadd.f32 %v226, %v368
        %v370 = vpop.f32.mrf.mxu0
        %371 = vmatprep.mubr.bf16.mxu0 0
        %372 = vmatmul.mubr.bf16.gmra.mxu0 %v291
        %v373 = vpop.f32.mrf.mxu0
        %v374 = vadd.f32 %v226, %v373
        %v375 = vpop.f32.mrf.mxu0
        %v376 = vpop.f32.mrf.mxu0
        %v377 = vadd.f32 %v226, %v376
        %v378 = vpop.f32.mrf.mxu0
        %379 = vmatprep.mubr.bf16.mxu0 0
        %380 = vmatmul.mubr.bf16.gmra.mxu0 %v294
        %v381 = vpop.f32.mrf.mxu0
        %v382 = vadd.f32 %v226, %v381
        %v383 = vpop.f32.mrf.mxu0
        %v384 = vpop.f32.mrf.mxu0
        %v385 = vadd.f32 %v226, %v384
        %v386 = vpop.f32.mrf.mxu0
        %387 = vmatprep.mubr.bf16.mxu0 0
        %388 = vmatmul.mubr.bf16.gmra.mxu0 %v297
        %v389 = vpop.f32.mrf.mxu0
        %v390 = vadd.f32 %v226, %v389
        %v391 = vpop.f32.mrf.mxu0
        %v392 = vpop.f32.mrf.mxu0
        %v393 = vadd.f32 %v226, %v392
        %v394 = vpop.f32.mrf.mxu0
        %395 = vdwg.mxu0
        %v396 = vmax.f32 %v334, 0.0
        %v397 = vmax.f32 %v337, 0.0
        %v398 = vmax.f32 %v342, 0.0
        %v399 = vmax.f32 %v345, 0.0
        %v400 = vmax.f32 %v350, 0.0
        %v401 = vmax.f32 %v353, 0.0
        %v402 = vmax.f32 %v358, 0.0
        %v403 = vmax.f32 %v361, 0.0
        %v404 = vmax.f32 %v366, 0.0
        %v405 = vmax.f32 %v369, 0.0
        %v406 = vmax.f32 %v374, 0.0
        %v407 = vmax.f32 %v377, 0.0
        %v408 = vmax.f32 %v382, 0.0
        %v409 = vmax.f32 %v385, 0.0
        %v410 = vmax.f32 %v390, 0.0
        %v411 = vmax.f32 %v393, 0.0
        %v412 = vpack.c.bf16 %v397, %v396
        %v413 = vpack.c.bf16 %v399, %v398
        %v414 = vpack.c.bf16 %v401, %v400
        %v415 = vpack.c.bf16 %v403, %v402
        %v416 = vpack.c.bf16 %v405, %v404
        %v417 = vpack.c.bf16 %v407, %v406
        %v418 = vpack.c.bf16 %v409, %v408
        %v419 = vpack.c.bf16 %v411, %v410
        %v428 = vunpack.c.l.b16 %v412
        %v429 = vunpack.c.h.b16 %v412
        %v430 = vunpack.c.l.b16 %v413
        %v431 = vunpack.c.h.b16 %v413
        %v432 = vunpack.c.l.b16 %v414
        %v433 = vunpack.c.h.b16 %v414
        %v434 = vunpack.c.l.b16 %v415
        %v435 = vunpack.c.h.b16 %v415
        %v436 = vunpack.c.l.b16 %v416
        %v437 = vunpack.c.h.b16 %v416
        %v438 = vunpack.c.l.b16 %v417
        %v439 = vunpack.c.h.b16 %v417
        %v440 = vunpack.c.l.b16 %v418
        %v441 = vunpack.c.h.b16 %v418
        %v442 = vunpack.c.l.b16 %v419
        %v443 = vunpack.c.h.b16 %v419
        %v444 = vpack.c.b16 %v428, %v428
        %v445 = vpack.c.b16 %v429, %v429
        %v446 = vpack.c.b16 %v430, %v430
        %v447 = vpack.c.b16 %v431, %v431
        %v448 = vpack.c.b16 %v432, %v432
        %v449 = vpack.c.b16 %v433, %v433
        %v450 = vpack.c.b16 %v434, %v434
        %v451 = vpack.c.b16 %v435, %v435
        %v452 = vpack.c.b16 %v436, %v436
        %v453 = vpack.c.b16 %v437, %v437
        %v454 = vpack.c.b16 %v438, %v438
        %v455 = vpack.c.b16 %v439, %v439
        %v456 = vpack.c.b16 %v440, %v440
        %v457 = vpack.c.b16 %v441, %v441
        %v458 = vpack.c.b16 %v442, %v442
        %v459 = vpack.c.b16 %v443, %v443
        %vm476 = vcmask 257024
        %477 = vst.msk [vmem:[%s200] sm:$0xf] %vm476, %v444
        %478 = vst.msk [vmem:[%s200 + $0x4] sm:$0xf] %vm476, %v445
        %479 = vst.msk [vmem:[%s200 + $0x8] sm:$0xf] %vm476, %v446
        %480 = vst.msk [vmem:[%s200 + $0xc] sm:$0xf] %vm476, %v447
        %481 = vst.msk [vmem:[%s200 + $0x10] sm:$0xf] %vm476, %v448
        %482 = vst.msk [vmem:[%s200 + $0x14] sm:$0xf] %vm476, %v449
        %483 = vst.msk [vmem:[%s200 + $0x18] sm:$0xf] %vm476, %v450
        %484 = vst.msk [vmem:[%s200 + $0x1c] sm:$0xf] %vm476, %v451
        %485 = vst.msk [vmem:[%s200 + $0x20] sm:$0xf] %vm476, %v452
        %486 = vst.msk [vmem:[%s200 + $0x24] sm:$0xf] %vm476, %v453
        %487 = vst.msk [vmem:[%s200 + $0x28] sm:$0xf] %vm476, %v454
        %488 = vst.msk [vmem:[%s200 + $0x2c] sm:$0xf] %vm476, %v455
        %489 = vst.msk [vmem:[%s200 + $0x30] sm:$0xf] %vm476, %v456
        %490 = vst.msk [vmem:[%s200 + $0x34] sm:$0xf] %vm476, %v457
        %491 = vst.msk [vmem:[%s200 + $0x38] sm:$0xf] %vm476, %v458
        %492 = vst.msk [vmem:[%s200 + $0x3c] sm:$0xf] %vm476, %v459
        %s493 = smul.u32 16, %s16
        %p494 = scmp.lt.s32.totalorder %s493, 255
        %s495 = scalar_select %p494, %s493, 255
        %s496 = smul.addr %s495, 4
        %s497 = scalar_lea.vmem %s3, %s496
        // Predicated region
        $region41: #{encoder_forward.5} parent=31 // pred_check
          %p498 = pneg %p102
        $region42: #{encoder_forward.5} parent=31 // pred_check_branch
          %500 = sbr.rel (%p498) target = $region44
        $region43: #{encoder_forward.5} parent=31 // pred_region
          %s501 = smul.u32 16, %s16
        $region44: #{encoder_forward.5} parent=31 // pred_fallthru
          _
      $region32: #{encoder_forward.5} parent=5 // pred_fallthru
        _
      %p502 = scmp.le.s32.totalorder 2, %s11
      // Predicated region
      $region45: #{encoder_forward.5} parent=5 // pred_check
        %p503 = pneg %p502
      $region46: #{encoder_forward.5} parent=5 // pred_check_branch
        %505 = sbr.rel (%p503) target = $region48
      $region47: #{encoder_forward.5} parent=5 // pred_region
        %s506 = ssub.s32 %s11, 2
        // Predicated region
        $region49: #{encoder_forward.5} parent=47 // pred_check
          %p507 = pneg %p108
        $region50: #{encoder_forward.5} parent=47 // pred_check_branch
          %509 = sbr.rel (%p507) target = $region52
        $region51: #{encoder_forward.5} parent=47 // pred_region
          %s510 = smul.u32 16, %s17
          %p511 = scmp.lt.s32.totalorder %s510, 255
          %s512 = scalar_select %p511, %s510, 255
          %s513 = smul.addr %s512, 4
          %s514 = scalar_lea.vmem %s3, %s513
        $region52: #{encoder_forward.5} parent=47 // pred_fallthru
          _
      $region48: #{encoder_forward.5} parent=5 // pred_fallthru
        _
    $region6: #{encoder_forward.5} parent=1 // loop_footer
      %s15 = sadd.s32 1, %s11
    $region7: #{encoder_forward.5} parent=1 // loop_footer_branch
      %10 = sbr.rel target = $region3
    $region8: #{encoder_forward.5} parent=1 // loop_exit
      _
    %515 = vsyncpa [#allocation3], 1
    %s516 = scalar_lea.sflag [#allocation3], 1
    %517 = vsyncpa %s516, 1
    %518 = vsyncpa [#allocation5], 1

// kernel: encoder_forward.6
$region0: #{encoder_forward.6}
  #allocation0 [shape = 'u32[]', space=smem, size = 0x4, offset = 0x4, fixed_abs, tag = 'smem constant byte address 0x4 - core index']
  #allocation1 [shape = 'u32[144,128]{1,0:T(1,128)}', space=vmem, size = 0x12000, scoped, tag = 'internal scratch']
  %s0 = inlined_call_operand.vmem [shape: bf16[512,512], index: 0, kind: input, shape index: {}]
  %s1 = inlined_call_operand.vmem [shape: bf16[512,64], index: 1, kind: input, shape index: {}]
  %s2 = inlined_call_operand.vmem [shape: f32[1,64], index: 2, kind: input, shape index: {}]
  %s3 = inlined_call_operand.vmem [shape: bf16[512,64], index: 3, kind: output, shape index: {}]
  %s4 = sld [smem:[#allocation0]]
  $region45: #{encoder_forward.6} parent=0
    _
  %s6 = ssub.s32 1, %s4
  %s7 = scalar_select 0, %s6, %s4
  loop: start=0, step=1, limit=6
  $region2: #{encoder_forward.6} parent=0 // loop_pre_header
    _
  $region3: #{encoder_forward.6} parent=0 // loop_header
    %s9 = sphi 0, %s13
    %p10 = scmp.ge.s32.totalorder %s9, 6
    %s19 = sphi 0, %s21
    %s22 = sphi 0, %s19
    %s23 = sphi 0, %s22
    %s39 = sphi 0, %s23
    %s43 = sphi 0, %s43
    %s45 = sphi 0, %s43
    %s46 = sphi 0, %s45
    %s60 = sphi 0, %s46
    %s64 = sphi 0, %s64
    %s66 = sphi 0, %s64
    %s67 = sphi 0, %s66
    %s81 = sphi 0, %s67
    %s87 = sphi 0, %s89
    %s90 = sphi 0, %s87
    %s91 = sphi 0, %s90
    %s107 = sphi 0, %s91
  $region4: #{encoder_forward.6} parent=0 // loop_header_branch
    %12 = sbr.rel (%p10) target = $region8
  $region5: #{encoder_forward.6} parent=0 // loop_body
    %s14 = ssub.s32 %s9, 1
    %s15 = ssub.s32 %s9, 2
    %s16 = sadd.s32 %s9, 1
    %s17 = ssub.s32 %s9, %s16
    %p18 = scmp.eq.s32.totalorder %s17, 0
    %s20 = sadd.s32 %s19, 1
    %s21 = scalar_select %p18, %s19, %s20
    %p24 = pneg %p18
    %p25 = scmp.eq.s32.totalorder %s9, 3
    %p26 = por %p24, %p25
    %p27 = scmp.ne.s32.totalorder %s19, %s22
    %p28 = scmp.eq.s32.totalorder %s9, 0
    %p29 = por %p27, %p28
    %p30 = scmp.ne.s32.totalorder %s19, %s22
    %p31 = scmp.eq.s32.totalorder %s14, 3
    %p32 = por %p30, %p31
    %p33 = scmp.ne.s32.totalorder %s22, %s23
    %p34 = scmp.eq.s32.totalorder %s14, 0
    %p35 = por %p33, %p34
    %p36 = scmp.ne.s32.totalorder %s22, %s23
    %p37 = scmp.eq.s32.totalorder %s15, 3
    %p38 = por %p36, %p37
    %p40 = scmp.ne.s32.totalorder %s23, %s39
    %p41 = scmp.eq.s32.totalorder %s15, 0
    %p42 = por %p40, %p41
    %s44 = sadd.s32 %s43, 1
    %p47 = scmp.eq.s32.totalorder %s9, 3
    %p48 = scmp.ne.s32.totalorder %s43, %s45
    %p49 = scmp.eq.s32.totalorder %s9, 0
    %p50 = por %p48, %p49
    %p51 = scmp.ne.s32.totalorder %s43, %s45
    %p52 = scmp.eq.s32.totalorder %s14, 3
    %p53 = por %p51, %p52
    %p54 = scmp.ne.s32.totalorder %s45, %s46
    %p55 = scmp.eq.s32.totalorder %s14, 0
    %p56 = por %p54, %p55
    %p57 = scmp.ne.s32.totalorder %s45, %s46
    %p58 = scmp.eq.s32.totalorder %s15, 3
    %p59 = por %p57, %p58
    %p61 = scmp.ne.s32.totalorder %s46, %s60
    %p62 = scmp.eq.s32.totalorder %s15, 0
    %p63 = por %p61, %p62
    %s65 = sadd.s32 %s64, 1
    %p68 = scmp.eq.s32.totalorder %s9, 3
    %p69 = scmp.ne.s32.totalorder %s64, %s66
    %p70 = scmp.eq.s32.totalorder %s9, 0
    %p71 = por %p69, %p70
    %p72 = scmp.ne.s32.totalorder %s64, %s66
    %p73 = scmp.eq.s32.totalorder %s14, 3
    %p74 = por %p72, %p73
    %p75 = scmp.ne.s32.totalorder %s66, %s67
    %p76 = scmp.eq.s32.totalorder %s14, 0
    %p77 = por %p75, %p76
    %p78 = scmp.ne.s32.totalorder %s66, %s67
    %p79 = scmp.eq.s32.totalorder %s15, 3
    %p80 = por %p78, %p79
    %p82 = scmp.ne.s32.totalorder %s67, %s81
    %p83 = scmp.eq.s32.totalorder %s15, 0
    %p84 = por %p82, %p83
    %s85 = ssub.s32 %s9, %s16
    %p86 = scmp.eq.s32.totalorder %s85, 0
    %s88 = sadd.s32 %s87, 1
    %s89 = scalar_select %p86, %s87, %s88
    %p92 = pneg %p86
    %p93 = scmp.eq.s32.totalorder %s9, 3
    %p94 = por %p92, %p93
    %p95 = scmp.ne.s32.totalorder %s87, %s90
    %p96 = scmp.eq.s32.totalorder %s9, 0
    %p97 = por %p95, %p96
    %p98 = scmp.ne.s32.totalorder %s87, %s90
    %p99 = scmp.eq.s32.totalorder %s14, 3
    %p100 = por %p98, %p99
    %p101 = scmp.ne.s32.totalorder %s90, %s91
    %p102 = scmp.eq.s32.totalorder %s14, 0
    %p103 = por %p101, %p102
    %p104 = scmp.ne.s32.totalorder %s90, %s91
    %p105 = scmp.eq.s32.totalorder %s15, 3
    %p106 = por %p104, %p105
    %p108 = scmp.ne.s32.totalorder %s91, %s107
    %p109 = scmp.eq.s32.totalorder %s15, 0
    %p110 = por %p108, %p109
    %p111 = scmp.le.s32.totalorder 1, %s9
    %p112 = scmp.lt.s32.totalorder %s9, 5
    %p113 = pnand %p111, %p112
    %p114 = pneg %p113
    // Predicated region
    $region9: #{encoder_forward.6} parent=5 // pred_check
      _
    $region10: #{encoder_forward.6} parent=5 // pred_check_branch
      %116 = sbr.rel (%p113) target = $region12
    $region11: #{encoder_forward.6} parent=5 // pred_region
      %s117 = ssub.s32 %s9, 1
      // Predicated region
      $region13: #{encoder_forward.6} parent=11 // pred_check
        %p118 = pneg %p56
      $region14: #{encoder_forward.6} parent=11 // pred_check_branch
        %120 = sbr.rel (%p118) target = $region16
      $region15: #{encoder_forward.6} parent=11 // pred_region
        _
      $region16: #{encoder_forward.6} parent=11 // pred_fallthru
        _
      // Predicated region
      $region17: #{encoder_forward.6} parent=11 // pred_check
        %p121 = pneg %p77
      $region18: #{encoder_forward.6} parent=11 // pred_check_branch
        %123 = sbr.rel (%p121) target = $region20
      $region19: #{encoder_forward.6} parent=11 // pred_region
        _
      $region20: #{encoder_forward.6} parent=11 // pred_fallthru
        _
    $region12: #{encoder_forward.6} parent=5 // pred_fallthru
      _
    %p124 = scmp.lt.s32.totalorder %s9, 4
    // Predicated region
    $region21: #{encoder_forward.6} parent=5 // pred_check
      %p125 = pneg %p124
    $region22: #{encoder_forward.6} parent=5 // pred_check_branch
      %127 = sbr.rel (%p125) target = $region24
    $region23: #{encoder_forward.6} parent=5 // pred_region
      // Predicated region
      $region25: #{encoder_forward.6} parent=23 // pred_check
        %p128 = pneg %p29
      $region26: #{encoder_forward.6} parent=23 // pred_check_branch
        %130 = sbr.rel (%p128) target = $region28
      $region27: #{encoder_forward.6} parent=23 // pred_region
        %s131 = smul.u32 16, %s9
        %p132 = scmp.lt.s32.totalorder %s131, 63
        %s133 = scalar_select %p132, %s131, 63
        %s134 = smul.addr %s133, 4
        %s135 = smul.addr %s134, 4
        %s136 = scalar_lea.vmem %s0, %s135
        %s137 = smul.u32 16, %s9
      $region28: #{encoder_forward.6} parent=23 // pred_fallthru
        _
    $region24: #{encoder_forward.6} parent=5 // pred_fallthru
      _
    %p138 = scmp.le.s32.totalorder 1, %s9
    %p139 = scmp.lt.s32.totalorder %s9, 5
    %p140 = pnand %p138, %p139
    %p141 = pneg %p140
    // Predicated region
    $region29: #{encoder_forward.6} parent=5 // pred_check
      _
    $region30: #{encoder_forward.6} parent=5 // pred_check_branch
      %143 = sbr.rel (%p140) target = $region32
    $region31: #{encoder_forward.6} parent=5 // pred_region
      %s144 = ssub.s32 %s9, 1
      %s145 = smul.u32 16, %s14
      %p146 = scmp.lt.s32.totalorder %s145, 63
      %s147 = scalar_select %p146, %s145, 63
      %s148 = smul.addr %s147, 4
      %s149 = smul.addr %s148, 4
      %s150 = scalar_lea.vmem %s0, %s149
      %p151 = pneg %p35
      %p152 = pneg %p32
      %p153 = pneg %p56
      %p154 = pneg %p53
      %p155 = pneg %p77
      %p156 = pneg %p74
      %p157 = pneg %p103
      %p158 = pneg %p100
      %s159 = smul.u32 16, %s14
      %p160 = scmp.lt.s32.totalorder %s159, 63
      %s161 = scalar_select %p160, %s159, 63
      %s162 = smul.addr %s161, 4
      %s163 = scalar_lea.vmem %s3, %s162
      %s164 = smul.u32 16, %s14
      %p165 = scmp.lt.s32.totalorder %s164, 63
      %s166 = scalar_select %p165, %s164, 63
      %s167 = smul.addr %s166, 4
      %s168 = smul.addr %s167, 4
      %s169 = scalar_lea.vmem %s0, %s168
      %s170 = smul.u32 16, %s14
      %s171 = smul.u32 16, %s14
      %p172 = scmp.lt.s32.totalorder %s171, 63
      %s173 = scalar_select %p172, %s171, 63
      %s174 = smul.addr %s173, 4
      %s175 = scalar_lea.vmem %s3, %s174
      %s176 = smul.u32 16, %s14
      %v178 = vld [vmem:[%s169] sm:$0xff]
      %v179 = vld [vmem:[%s169 + $0x8] sm:$0xff]
      %v180 = vld [vmem:[%s169 + $0x10] sm:$0xff]
      %v181 = vld [vmem:[%s169 + $0x18] sm:$0xff]
      %v182 = vld [vmem:[%s169 + $0x20] sm:$0xff]
      %v183 = vld [vmem:[%s169 + $0x28] sm:$0xff]
      %v184 = vld [vmem:[%s169 + $0x30] sm:$0xff]
      %v185 = vld [vmem:[%s169 + $0x38] sm:$0xff]
      %v186 = vld [vmem:[%s169 + $0x40] sm:$0xff]
      %v187 = vld [vmem:[%s169 + $0x48] sm:$0xff]
      %v188 = vld [vmem:[%s169 + $0x50] sm:$0xff]
      %v189 = vld [vmem:[%s169 + $0x58] sm:$0xff]
      %v190 = vld [vmem:[%s169 + $0x60] sm:$0xff]
      %v191 = vld [vmem:[%s169 + $0x68] sm:$0xff]
      %v192 = vld [vmem:[%s169 + $0x70] sm:$0xff]
      %v193 = vld [vmem:[%s169 + $0x78] sm:$0xff]
      %v194 = vld [vmem:[%s169 + $0x80] sm:$0xff]
      %v195 = vld [vmem:[%s169 + $0x88] sm:$0xff]
      %v196 = vld [vmem:[%s169 + $0x90] sm:$0xff]
      %v197 = vld [vmem:[%s169 + $0x98] sm:$0xff]
      %v198 = vld [vmem:[%s169 + $0xa0] sm:$0xff]
      %v199 = vld [vmem:[%s169 + $0xa8] sm:$0xff]
      %v200 = vld [vmem:[%s169 + $0xb0] sm:$0xff]
      %v201 = vld [vmem:[%s169 + $0xb8] sm:$0xff]
      %v202 = vld [vmem:[%s169 + $0xc0] sm:$0xff]
      %v203 = vld [vmem:[%s169 + $0xc8] sm:$0xff]
      %v204 = vld [vmem:[%s169 + $0xd0] sm:$0xff]
      %v205 = vld [vmem:[%s169 + $0xd8] sm:$0xff]
      %v206 = vld [vmem:[%s169 + $0xe0] sm:$0xff]
      %v207 = vld [vmem:[%s169 + $0xe8] sm:$0xff]
      %v208 = vld [vmem:[%s169 + $0xf0] sm:$0xff]
      %v209 = vld [vmem:[%s169 + $0xf8] sm:$0xff]
      %v210 = vld [vmem:[%s1] sm:$0xf]
      %v211 = vld [vmem:[%s1 + $0x4] sm:$0xf]
      %v212 = vld [vmem:[%s1 + $0x8] sm:$0xf]
      %v213 = vld [vmem:[%s1 + $0xc] sm:$0xf]
      %v214 = vld [vmem:[%s1 + $0x10] sm:$0xf]
      %v215 = vld [vmem:[%s1 + $0x14] sm:$0xf]
      %v216 = vld [vmem:[%s1 + $0x18] sm:$0xf]
      %v217 = vld [vmem:[%s1 + $0x1c] sm:$0xf]
      %v218 = vld [vmem:[%s1 + $0x20] sm:$0xf]
      %v219 = vld [vmem:[%s1 + $0x24] sm:$0xf]
      %v220 = vld [vmem:[%s1 + $0x28] sm:$0xf]
      %v221 = vld [vmem:[%s1 + $0x2c] sm:$0xf]
      %v222 = vld [vmem:[%s1 + $0x30] sm:$0xf]
      %v223 = vld [vmem:[%s1 + $0x34] sm:$0xf]
      %v224 = vld [vmem:[%s1 + $0x38] sm:$0xf]
      %v225 = vld [vmem:[%s1 + $0x3c] sm:$0xf]
      %v226 = vld [vmem:[%s1 + $0x40] sm:$0xf]
      %v227 = vld [vmem:[%s1 + $0x44] sm:$0xf]
      %v228 = vld [vmem:[%s1 + $0x48] sm:$0xf]
      %v229 = vld [vmem:[%s1 + $0x4c] sm:$0xf]
      %v230 = vld [vmem:[%s1 + $0x50] sm:$0xf]
      %v231 = vld [vmem:[%s1 + $0x54] sm:$0xf]
      %v232 = vld [vmem:[%s1 + $0x58] sm:$0xf]
      %v233 = vld [vmem:[%s1 + $0x5c] sm:$0xf]
      %v234 = vld [vmem:[%s1 + $0x60] sm:$0xf]
      %v235 = vld [vmem:[%s1 + $0x64] sm:$0xf]
      %v236 = vld [vmem:[%s1 + $0x68] sm:$0xf]
      %v237 = vld [vmem:[%s1 + $0x6c] sm:$0xf]
      %v238 = vld [vmem:[%s1 + $0x70] sm:$0xf]
      %v239 = vld [vmem:[%s1 + $0x74] sm:$0xf]
      %v240 = vld [vmem:[%s1 + $0x78] sm:$0xf]
      %v241 = vld [vmem:[%s1 + $0x7c] sm:$0xf]
      %v242 = vld [vmem:[%s1 + $0x80] sm:$0xf]
      %v243 = vld [vmem:[%s1 + $0x84] sm:$0xf]
      %v244 = vld [vmem:[%s1 + $0x88] sm:$0xf]
      %v245 = vld [vmem:[%s1 + $0x8c] sm:$0xf]
      %v246 = vld [vmem:[%s1 + $0x90] sm:$0xf]
      %v247 = vld [vmem:[%s1 + $0x94] sm:$0xf]
      %v248 = vld [vmem:[%s1 + $0x98] sm:$0xf]
      %v249 = vld [vmem:[%s1 + $0x9c] sm:$0xf]
      %v250 = vld [vmem:[%s1 + $0xa0] sm:$0xf]
      %v251 = vld [vmem:[%s1 + $0xa4] sm:$0xf]
      %v252 = vld [vmem:[%s1 + $0xa8] sm:$0xf]
      %v253 = vld [vmem:[%s1 + $0xac] sm:$0xf]
      %v254 = vld [vmem:[%s1 + $0xb0] sm:$0xf]
      %v255 = vld [vmem:[%s1 + $0xb4] sm:$0xf]
      %v256 = vld [vmem:[%s1 + $0xb8] sm:$0xf]
      %v257 = vld [vmem:[%s1 + $0xbc] sm:$0xf]
      %v258 = vld [vmem:[%s1 + $0xc0] sm:$0xf]
      %v259 = vld [vmem:[%s1 + $0xc4] sm:$0xf]
      %v260 = vld [vmem:[%s1 + $0xc8] sm:$0xf]
      %v261 = vld [vmem:[%s1 + $0xcc] sm:$0xf]
      %v262 = vld [vmem:[%s1 + $0xd0] sm:$0xf]
      %v263 = vld [vmem:[%s1 + $0xd4] sm:$0xf]
      %v264 = vld [vmem:[%s1 + $0xd8] sm:$0xf]
      %v265 = vld [vmem:[%s1 + $0xdc] sm:$0xf]
      %v266 = vld [vmem:[%s1 + $0xe0] sm:$0xf]
      %v267 = vld [vmem:[%s1 + $0xe4] sm:$0xf]
      %v268 = vld [vmem:[%s1 + $0xe8] sm:$0xf]
      %v269 = vld [vmem:[%s1 + $0xec] sm:$0xf]
      %v270 = vld [vmem:[%s1 + $0xf0] sm:$0xf]
      %v271 = vld [vmem:[%s1 + $0xf4] sm:$0xf]
      %v272 = vld [vmem:[%s1 + $0xf8] sm:$0xf]
      %v273 = vld [vmem:[%s1 + $0xfc] sm:$0xf]
      %v274 = vld [vmem:[%s2] sm:$0x1]
      %v276 = vlaneseq
      %v277 = vshrl.u32 %v276, 7
      %v278 = vsub.s32 0, %v277
      %v279 = vrot.slane %v274, %v278
      %v313 = vunpack.c.l.b16 %v178
      %v314 = vunpack.c.h.b16 %v178
      %v315 = vunpack.c.l.b16 %v179
      %v316 = vunpack.c.h.b16 %v179
      %v317 = vunpack.c.l.b16 %v180
      %v318 = vunpack.c.h.b16 %v180
      %v319 = vunpack.c.l.b16 %v181
      %v320 = vunpack.c.h.b16 %v181
      %v321 = vunpack.c.l.b16 %v182
      %v322 = vunpack.c.h.b16 %v182
      %v323 = vunpack.c.l.b16 %v183
      %v324 = vunpack.c.h.b16 %v183
      %v325 = vunpack.c.l.b16 %v184
      %v326 = vunpack.c.h.b16 %v184
      %v327 = vunpack.c.l.b16 %v185
      %v328 = vunpack.c.h.b16 %v185
      %v329 = vunpack.c.l.b16 %v186
      %v330 = vunpack.c.h.b16 %v186
      %v331 = vunpack.c.l.b16 %v187
      %v332 = vunpack.c.h.b16 %v187
      %v333 = vunpack.c.l.b16 %v188
      %v334 = vunpack.c.h.b16 %v188
      %v335 = vunpack.c.l.b16 %v189
      %v336 = vunpack.c.h.b16 %v189
      %v337 = vunpack.c.l.b16 %v190
      %v338 = vunpack.c.h.b16 %v190
      %v339 = vunpack.c.l.b16 %v191
      %v340 = vunpack.c.h.b16 %v191
      %v341 = vunpack.c.l.b16 %v192
      %v342 = vunpack.c.h.b16 %v192
      %v343 = vunpack.c.l.b16 %v193
      %v344 = vunpack.c.h.b16 %v193
      %v345 = vunpack.c.l.b16 %v194
      %v346 = vunpack.c.h.b16 %v194
      %v347 = vunpack.c.l.b16 %v195
      %v348 = vunpack.c.h.b16 %v195
      %v349 = vunpack.c.l.b16 %v196
      %v350 = vunpack.c.h.b16 %v196
      %v351 = vunpack.c.l.b16 %v197
      %v352 = vunpack.c.h.b16 %v197
      %v353 = vunpack.c.l.b16 %v198
      %v354 = vunpack.c.h.b16 %v198
      %v355 = vunpack.c.l.b16 %v199
      %v356 = vunpack.c.h.b16 %v199
      %v357 = vunpack.c.l.b16 %v200
      %v358 = vunpack.c.h.b16 %v200
      %v359 = vunpack.c.l.b16 %v201
      %v360 = vunpack.c.h.b16 %v201
      %v361 = vunpack.c.l.b16 %v202
      %v362 = vunpack.c.h.b16 %v202
      %v363 = vunpack.c.l.b16 %v203
      %v364 = vunpack.c.h.b16 %v203
      %v365 = vunpack.c.l.b16 %v204
      %v366 = vunpack.c.h.b16 %v204
      %v367 = vunpack.c.l.b16 %v205
      %v368 = vunpack.c.h.b16 %v205
      %v369 = vunpack.c.l.b16 %v206
      %v370 = vunpack.c.h.b16 %v206
      %v371 = vunpack.c.l.b16 %v207
      %v372 = vunpack.c.h.b16 %v207
      %v373 = vunpack.c.l.b16 %v208
      %v374 = vunpack.c.h.b16 %v208
      %v375 = vunpack.c.l.b16 %v209
      %v376 = vunpack.c.h.b16 %v209
      %v377 = vpack.c.b16 %v317, %v313
      %v378 = vpack.c.b16 %v318, %v314
      %v379 = vpack.c.b16 %v319, %v315
      %v380 = vpack.c.b16 %v320, %v316
      %v381 = vpack.c.b16 %v325, %v321
      %v382 = vpack.c.b16 %v326, %v322
      %v383 = vpack.c.b16 %v327, %v323
      %v384 = vpack.c.b16 %v328, %v324
      %v385 = vpack.c.b16 %v333, %v329
      %v386 = vpack.c.b16 %v334, %v330
      %v387 = vpack.c.b16 %v335, %v331
      %v388 = vpack.c.b16 %v336, %v332
      %v389 = vpack.c.b16 %v341, %v337
      %v390 = vpack.c.b16 %v342, %v338
      %v391 = vpack.c.b16 %v343, %v339
      %v392 = vpack.c.b16 %v344, %v340
      %v393 = vpack.c.b16 %v349, %v345
      %v394 = vpack.c.b16 %v350, %v346
      %v395 = vpack.c.b16 %v351, %v347
      %v396 = vpack.c.b16 %v352, %v348
      %v397 = vpack.c.b16 %v357, %v353
      %v398 = vpack.c.b16 %v358, %v354
      %v399 = vpack.c.b16 %v359, %v355
      %v400 = vpack.c.b16 %v360, %v356
      %v401 = vpack.c.b16 %v365, %v361
      %v402 = vpack.c.b16 %v366, %v362
      %v403 = vpack.c.b16 %v367, %v363
      %v404 = vpack.c.b16 %v368, %v364
      %v405 = vpack.c.b16 %v373, %v369
      %v406 = vpack.c.b16 %v374, %v370
      %v407 = vpack.c.b16 %v375, %v371
      %v408 = vpack.c.b16 %v376, %v372
      %v505 = vunpack.c.l.b16 %v210
      %v506 = vunpack.c.l.b16 %v211
      %v507 = vunpack.c.l.b16 %v212
      %v508 = vunpack.c.l.b16 %v213
      %v509 = vunpack.c.l.b16 %v214
      %v510 = vunpack.c.l.b16 %v215
      %v511 = vunpack.c.l.b16 %v216
      %v512 = vunpack.c.l.b16 %v217
      %v513 = vunpack.c.l.b16 %v218
      %v514 = vunpack.c.l.b16 %v219
      %v515 = vunpack.c.l.b16 %v220
      %v516 = vunpack.c.l.b16 %v221
      %v517 = vunpack.c.l.b16 %v222
      %v518 = vunpack.c.l.b16 %v223
      %v519 = vunpack.c.l.b16 %v224
      %v520 = vunpack.c.l.b16 %v225
      %v521 = vunpack.c.l.b16 %v226
      %v522 = vunpack.c.l.b16 %v227
      %v523 = vunpack.c.l.b16 %v228
      %v524 = vunpack.c.l.b16 %v229
      %v525 = vunpack.c.l.b16 %v230
      %v526 = vunpack.c.l.b16 %v231
      %v527 = vunpack.c.l.b16 %v232
      %v528 = vunpack.c.l.b16 %v233
      %v529 = vunpack.c.l.b16 %v234
      %v530 = vunpack.c.l.b16 %v235
      %v531 = vunpack.c.l.b16 %v236
      %v532 = vunpack.c.l.b16 %v237
      %v533 = vunpack.c.l.b16 %v238
      %v534 = vunpack.c.l.b16 %v239
      %v535 = vunpack.c.l.b16 %v240
      %v536 = vunpack.c.l.b16 %v241
      %v537 = vunpack.c.l.b16 %v242
      %v538 = vunpack.c.l.b16 %v243
      %v539 = vunpack.c.l.b16 %v244
      %v540 = vunpack.c.l.b16 %v245
      %v541 = vunpack.c.l.b16 %v246
      %v542 = vunpack.c.l.b16 %v247
      %v543 = vunpack.c.l.b16 %v248
      %v544 = vunpack.c.l.b16 %v249
      %v545 = vunpack.c.l.b16 %v250
      %v546 = vunpack.c.l.b16 %v251
      %v547 = vunpack.c.l.b16 %v252
      %v548 = vunpack.c.l.b16 %v253
      %v549 = vunpack.c.l.b16 %v254
      %v550 = vunpack.c.l.b16 %v255
      %v551 = vunpack.c.l.b16 %v256
      %v552 = vunpack.c.l.b16 %v257
      %v553 = vunpack.c.l.b16 %v258
      %v554 = vunpack.c.l.b16 %v259
      %v555 = vunpack.c.l.b16 %v260
      %v556 = vunpack.c.l.b16 %v261
      %v557 = vunpack.c.l.b16 %v262
      %v558 = vunpack.c.l.b16 %v263
      %v559 = vunpack.c.l.b16 %v264
      %v560 = vunpack.c.l.b16 %v265
      %v561 = vunpack.c.l.b16 %v266
      %v562 = vunpack.c.l.b16 %v267
      %v563 = vunpack.c.l.b16 %v268
      %v564 = vunpack.c.l.b16 %v269
      %v565 = vunpack.c.l.b16 %v270
      %v566 = vunpack.c.l.b16 %v271
      %v567 = vunpack.c.l.b16 %v272
      %v568 = vunpack.c.l.b16 %v273
      %v569 = vpack.c.b16 %v506, %v505
      %v570 = vpack.c.b16 %v508, %v507
      %v571 = vpack.c.b16 %v510, %v509
      %v572 = vpack.c.b16 %v512, %v511
      %v573 = vpack.c.b16 %v514, %v513
      %v574 = vpack.c.b16 %v516, %v515
      %v575 = vpack.c.b16 %v518, %v517
      %v576 = vpack.c.b16 %v520, %v519
      %v577 = vpack.c.b16 %v522, %v521
      %v578 = vpack.c.b16 %v524, %v523
      %v579 = vpack.c.b16 %v526, %v525
      %v580 = vpack.c.b16 %v528, %v527
      %v581 = vpack.c.b16 %v530, %v529
      %v582 = vpack.c.b16 %v532, %v531
      %v583 = vpack.c.b16 %v534, %v533
      %v584 = vpack.c.b16 %v536, %v535
      %v585 = vpack.c.b16 %v538, %v537
      %v586 = vpack.c.b16 %v540, %v539
      %v587 = vpack.c.b16 %v542, %v541
      %v588 = vpack.c.b16 %v544, %v543
      %v589 = vpack.c.b16 %v546, %v545
      %v590 = vpack.c.b16 %v548, %v547
      %v591 = vpack.c.b16 %v550, %v549
      %v592 = vpack.c.b16 %v552, %v551
      %v593 = vpack.c.b16 %v554, %v553
      %v594 = vpack.c.b16 %v556, %v555
      %v595 = vpack.c.b16 %v558, %v557
      %v596 = vpack.c.b16 %v560, %v559
      %v597 = vpack.c.b16 %v562, %v561
      %v598 = vpack.c.b16 %v564, %v563
      %v599 = vpack.c.b16 %v566, %v565
      %v600 = vpack.c.b16 %v568, %v567
      %633 = vmatprep.subr.bf16.mxu0 0
      %634 = vmatpush1.bf16.msra.mxu0 %v576
      %635 = vmatprep.subr.bf16.mxu0 0
      %636 = vmatpush1.bf16.msra.mxu0 %v575
      %637 = vmatprep.subr.bf16.mxu0 0
      %638 = vmatpush1.bf16.msra.mxu0 %v574
      %639 = vmatprep.subr.bf16.mxu0 0
      %640 = vmatpush1.bf16.msra.mxu0 %v573
      %641 = vmatprep.subr.bf16.mxu0 0
      %642 = vmatpush1.bf16.msra.mxu0 %v572
      %643 = vmatprep.subr.bf16.mxu0 0
      %644 = vmatpush1.bf16.msra.mxu0 %v571
      %645 = vmatprep.subr.bf16.mxu0 0
      %646 = vmatpush1.bf16.msra.mxu0 %v570
      %647 = vmatprep.subr.bf16.mxu0 0
      %648 = vmatpush1.bf16.msra.mxu0 %v569
      %649 = vmatprep.subr.bf16.mxu0 0
      %650 = vmatpush2.bf16.msra.mxu0 %v584
      %651 = vmatprep.subr.bf16.mxu0 0
      %652 = vmatpush2.bf16.msra.mxu0 %v583
      %653 = vmatprep.subr.bf16.mxu0 0
      %654 = vmatpush2.bf16.msra.mxu0 %v582
      %655 = vmatprep.subr.bf16.mxu0 0
      %656 = vmatpush2.bf16.msra.mxu0 %v581
      %657 = vmatprep.subr.bf16.mxu0 0
      %658 = vmatpush2.bf16.msra.mxu0 %v580
      %659 = vmatprep.subr.bf16.mxu0 0
      %660 = vmatpush2.bf16.msra.mxu0 %v579
      %661 = vmatprep.subr.bf16.mxu0 0
      %662 = vmatpush2.bf16.msra.mxu0 %v578
      %663 = vmatprep.subr.bf16.mxu0 0
      %664 = vmatpush2.bf16.msra.mxu0 %v577
      %665 = vmatprep.mubr.bf16.mxu0 %v378
      %666 = vmatmul.mubr.bf16.gmra.mxu0 %v377
      %v667 = vpop.f32.mrf.mxu0
      %v668 = vadd.f32 %v279, %v667
      %v669 = vpop.f32.mrf.mxu0
      %v670 = vpop.f32.mrf.mxu0
      %v671 = vadd.f32 %v279, %v670
      %v672 = vpop.f32.mrf.mxu0
      %673 = vmatprep.mubr.bf16.mxu0 %v382
      %674 = vmatmul.mubr.bf16.gmra.mxu0 %v381
      %v675 = vpop.f32.mrf.mxu0
      %v676 = vadd.f32 %v279, %v675
      %v677 = vpop.f32.mrf.mxu0
      %v678 = vpop.f32.mrf.mxu0
      %v679 = vadd.f32 %v279, %v678
      %v680 = vpop.f32.mrf.mxu0
      %681 = vmatprep.mubr.bf16.mxu0 %v386
      %682 = vmatmul.mubr.bf16.gmra.mxu0 %v385
      %v683 = vpop.f32.mrf.mxu0
      %v684 = vadd.f32 %v279, %v683
      %v685 = vpop.f32.mrf.mxu0
      %v686 = vpop.f32.mrf.mxu0
      %v687 = vadd.f32 %v279, %v686
      %v688 = vpop.f32.mrf.mxu0
      %689 = vmatprep.mubr.bf16.mxu0 %v390
      %690 = vmatmul.mubr.bf16.gmra.mxu0 %v389
      %v691 = vpop.f32.mrf.mxu0
      %v692 = vadd.f32 %v279, %v691
      %v693 = vpop.f32.mrf.mxu0
      %v694 = vpop.f32.mrf.mxu0
      %v695 = vadd.f32 %v279, %v694
      %v696 = vpop.f32.mrf.mxu0
      %697 = vmatprep.mubr.bf16.mxu0 %v394
      %698 = vmatmul.mubr.bf16.gmra.mxu0 %v393
      %v699 = vpop.f32.mrf.mxu0
      %v700 = vadd.f32 %v279, %v699
      %v701 = vpop.f32.mrf.mxu0
      %v702 = vpop.f32.mrf.mxu0
      %v703 = vadd.f32 %v279, %v702
      %v704 = vpop.f32.mrf.mxu0
      %705 = vmatprep.mubr.bf16.mxu0 %v398
      %706 = vmatmul.mubr.bf16.gmra.mxu0 %v397
      %v707 = vpop.f32.mrf.mxu0
      %v708 = vadd.f32 %v279, %v707
      %v709 = vpop.f32.mrf.mxu0
      %v710 = vpop.f32.mrf.mxu0
      %v711 = vadd.f32 %v279, %v710
      %v712 = vpop.f32.mrf.mxu0
      %713 = vmatprep.mubr.bf16.mxu0 %v402
      %714 = vmatmul.mubr.bf16.gmra.mxu0 %v401
      %v715 = vpop.f32.mrf.mxu0
      %v716 = vadd.f32 %v279, %v715
      %v717 = vpop.f32.mrf.mxu0
      %v718 = vpop.f32.mrf.mxu0
      %v719 = vadd.f32 %v279, %v718
      %v720 = vpop.f32.mrf.mxu0
      %721 = vmatprep.mubr.bf16.mxu0 %v406
      %722 = vmatmul.mubr.bf16.gmra.mxu0 %v405
      %v723 = vpop.f32.mrf.mxu0
      %v724 = vadd.f32 %v279, %v723
      %v725 = vpop.f32.mrf.mxu0
      %v726 = vpop.f32.mrf.mxu0
      %v727 = vadd.f32 %v279, %v726
      %v728 = vpop.f32.mrf.mxu0
      %729 = vdwg.mxu0
      %730 = vmatprep.subr.bf16.mxu0 0
      %731 = vmatpush1.bf16.msra.mxu0 %v592
      %732 = vmatprep.subr.bf16.mxu0 0
      %733 = vmatpush1.bf16.msra.mxu0 %v591
      %734 = vmatprep.subr.bf16.mxu0 0
      %735 = vmatpush1.bf16.msra.mxu0 %v590
      %736 = vmatprep.subr.bf16.mxu0 0
      %737 = vmatpush1.bf16.msra.mxu0 %v589
      %738 = vmatprep.subr.bf16.mxu0 0
      %739 = vmatpush1.bf16.msra.mxu0 %v588
      %740 = vmatprep.subr.bf16.mxu0 0
      %741 = vmatpush1.bf16.msra.mxu0 %v587
      %742 = vmatprep.subr.bf16.mxu0 0
      %743 = vmatpush1.bf16.msra.mxu0 %v586
      %744 = vmatprep.subr.bf16.mxu0 0
      %745 = vmatpush1.bf16.msra.mxu0 %v585
      %746 = vmatprep.subr.bf16.mxu0 0
      %747 = vmatpush2.bf16.msra.mxu0 %v600
      %748 = vmatprep.subr.bf16.mxu0 0
      %749 = vmatpush2.bf16.msra.mxu0 %v599
      %750 = vmatprep.subr.bf16.mxu0 0
      %751 = vmatpush2.bf16.msra.mxu0 %v598
      %752 = vmatprep.subr.bf16.mxu0 0
      %753 = vmatpush2.bf16.msra.mxu0 %v597
      %754 = vmatprep.subr.bf16.mxu0 0
      %755 = vmatpush2.bf16.msra.mxu0 %v596
      %756 = vmatprep.subr.bf16.mxu0 0
      %757 = vmatpush2.bf16.msra.mxu0 %v595
      %758 = vmatprep.subr.bf16.mxu0 0
      %759 = vmatpush2.bf16.msra.mxu0 %v594
      %760 = vmatprep.subr.bf16.mxu0 0
      %761 = vmatpush2.bf16.msra.mxu0 %v593
      %762 = vmatprep.mubr.bf16.mxu0 %v380
      %763 = vmatmul.mubr.bf16.gmra.mxu0 %v379
      %v764 = vpop.f32.mrf.mxu0
      %v765 = vadd.f32 %v668, %v764
      %v766 = vpop.f32.mrf.mxu0
      %v767 = vpop.f32.mrf.mxu0
      %v768 = vadd.f32 %v671, %v767
      %v769 = vpop.f32.mrf.mxu0
      %770 = vmatprep.mubr.bf16.mxu0 %v384
      %771 = vmatmul.mubr.bf16.gmra.mxu0 %v383
      %v772 = vpop.f32.mrf.mxu0
      %v773 = vadd.f32 %v676, %v772
      %v774 = vpop.f32.mrf.mxu0
      %v775 = vpop.f32.mrf.mxu0
      %v776 = vadd.f32 %v679, %v775
      %v777 = vpop.f32.mrf.mxu0
      %778 = vmatprep.mubr.bf16.mxu0 %v388
      %779 = vmatmul.mubr.bf16.gmra.mxu0 %v387
      %v780 = vpop.f32.mrf.mxu0
      %v781 = vadd.f32 %v684, %v780
      %v782 = vpop.f32.mrf.mxu0
      %v783 = vpop.f32.mrf.mxu0
      %v784 = vadd.f32 %v687, %v783
      %v785 = vpop.f32.mrf.mxu0
      %786 = vmatprep.mubr.bf16.mxu0 %v392
      %787 = vmatmul.mubr.bf16.gmra.mxu0 %v391
      %v788 = vpop.f32.mrf.mxu0
      %v789 = vadd.f32 %v692, %v788
      %v790 = vpop.f32.mrf.mxu0
      %v791 = vpop.f32.mrf.mxu0
      %v792 = vadd.f32 %v695, %v791
      %v793 = vpop.f32.mrf.mxu0
      %794 = vmatprep.mubr.bf16.mxu0 %v396
      %795 = vmatmul.mubr.bf16.gmra.mxu0 %v395
      %v796 = vpop.f32.mrf.mxu0
      %v797 = vadd.f32 %v700, %v796
      %v798 = vpop.f32.mrf.mxu0
      %v799 = vpop.f32.mrf.mxu0
      %v800 = vadd.f32 %v703, %v799
      %v801 = vpop.f32.mrf.mxu0
      %802 = vmatprep.mubr.bf16.mxu0 %v400
      %803 = vmatmul.mubr.bf16.gmra.mxu0 %v399
      %v804 = vpop.f32.mrf.mxu0
      %v805 = vadd.f32 %v708, %v804
      %v806 = vpop.f32.mrf.mxu0
      %v807 = vpop.f32.mrf.mxu0
      %v808 = vadd.f32 %v711, %v807
      %v809 = vpop.f32.mrf.mxu0
      %810 = vmatprep.mubr.bf16.mxu0 %v404
      %811 = vmatmul.mubr.bf16.gmra.mxu0 %v403
      %v812 = vpop.f32.mrf.mxu0
      %v813 = vadd.f32 %v716, %v812
      %v814 = vpop.f32.mrf.mxu0
      %v815 = vpop.f32.mrf.mxu0
      %v816 = vadd.f32 %v719, %v815
      %v817 = vpop.f32.mrf.mxu0
      %818 = vmatprep.mubr.bf16.mxu0 %v408
      %819 = vmatmul.mubr.bf16.gmra.mxu0 %v407
      %v820 = vpop.f32.mrf.mxu0
      %v821 = vadd.f32 %v724, %v820
      %v822 = vpop.f32.mrf.mxu0
      %v823 = vpop.f32.mrf.mxu0
      %v824 = vadd.f32 %v727, %v823
      %v825 = vpop.f32.mrf.mxu0
      %826 = vdwg.mxu0
      %v827 = vmax.f32 %v765, 0.0
      %v828 = vmax.f32 %v768, 0.0
      %v829 = vmax.f32 %v773, 0.0
      %v830 = vmax.f32 %v776, 0.0
      %v831 = vmax.f32 %v781, 0.0
      %v832 = vmax.f32 %v784, 0.0
      %v833 = vmax.f32 %v789, 0.0
      %v834 = vmax.f32 %v792, 0.0
      %v835 = vmax.f32 %v797, 0.0
      %v836 = vmax.f32 %v800, 0.0
      %v837 = vmax.f32 %v805, 0.0
      %v838 = vmax.f32 %v808, 0.0
      %v839 = vmax.f32 %v813, 0.0
      %v840 = vmax.f32 %v816, 0.0
      %v841 = vmax.f32 %v821, 0.0
      %v842 = vmax.f32 %v824, 0.0
      %v843 = vpack.c.bf16 %v828, %v827
      %v844 = vpack.c.bf16 %v830, %v829
      %v845 = vpack.c.bf16 %v832, %v831
      %v846 = vpack.c.bf16 %v834, %v833
      %v847 = vpack.c.bf16 %v836, %v835
      %v848 = vpack.c.bf16 %v838, %v837
      %v849 = vpack.c.bf16 %v840, %v839
      %v850 = vpack.c.bf16 %v842, %v841
      %v859 = vunpack.c.l.b16 %v843
      %v860 = vunpack.c.h.b16 %v843
      %v861 = vunpack.c.l.b16 %v844
      %v862 = vunpack.c.h.b16 %v844
      %v863 = vunpack.c.l.b16 %v845
      %v864 = vunpack.c.h.b16 %v845
      %v865 = vunpack.c.l.b16 %v846
      %v866 = vunpack.c.h.b16 %v846
      %v867 = vunpack.c.l.b16 %v847
      %v868 = vunpack.c.h.b16 %v847
      %v869 = vunpack.c.l.b16 %v848
      %v870 = vunpack.c.h.b16 %v848
      %v871 = vunpack.c.l.b16 %v849
      %v872 = vunpack.c.h.b16 %v849
      %v873 = vunpack.c.l.b16 %v850
      %v874 = vunpack.c.h.b16 %v850
      %v875 = vpack.c.b16 %v859, %v859
      %v876 = vpack.c.b16 %v860, %v860
      %v877 = vpack.c.b16 %v861, %v861
      %v878 = vpack.c.b16 %v862, %v862
      %v879 = vpack.c.b16 %v863, %v863
      %v880 = vpack.c.b16 %v864, %v864
      %v881 = vpack.c.b16 %v865, %v865
      %v882 = vpack.c.b16 %v866, %v866
      %v883 = vpack.c.b16 %v867, %v867
      %v884 = vpack.c.b16 %v868, %v868
      %v885 = vpack.c.b16 %v869, %v869
      %v886 = vpack.c.b16 %v870, %v870
      %v887 = vpack.c.b16 %v871, %v871
      %v888 = vpack.c.b16 %v872, %v872
      %v889 = vpack.c.b16 %v873, %v873
      %v890 = vpack.c.b16 %v874, %v874
      %vm907 = vcmask 519168
      %908 = vst.msk [vmem:[%s175] sm:$0xf] %vm907, %v875
      %909 = vst.msk [vmem:[%s175 + $0x4] sm:$0xf] %vm907, %v876
      %910 = vst.msk [vmem:[%s175 + $0x8] sm:$0xf] %vm907, %v877
      %911 = vst.msk [vmem:[%s175 + $0xc] sm:$0xf] %vm907, %v878
      %912 = vst.msk [vmem:[%s175 + $0x10] sm:$0xf] %vm907, %v879
      %913 = vst.msk [vmem:[%s175 + $0x14] sm:$0xf] %vm907, %v880
      %914 = vst.msk [vmem:[%s175 + $0x18] sm:$0xf] %vm907, %v881
      %915 = vst.msk [vmem:[%s175 + $0x1c] sm:$0xf] %vm907, %v882
      %916 = vst.msk [vmem:[%s175 + $0x20] sm:$0xf] %vm907, %v883
      %917 = vst.msk [vmem:[%s175 + $0x24] sm:$0xf] %vm907, %v884
      %918 = vst.msk [vmem:[%s175 + $0x28] sm:$0xf] %vm907, %v885
      %919 = vst.msk [vmem:[%s175 + $0x2c] sm:$0xf] %vm907, %v886
      %920 = vst.msk [vmem:[%s175 + $0x30] sm:$0xf] %vm907, %v887
      %921 = vst.msk [vmem:[%s175 + $0x34] sm:$0xf] %vm907, %v888
      %922 = vst.msk [vmem:[%s175 + $0x38] sm:$0xf] %vm907, %v889
      %923 = vst.msk [vmem:[%s175 + $0x3c] sm:$0xf] %vm907, %v890
      %s924 = smul.u32 16, %s14
      %p925 = scmp.lt.s32.totalorder %s924, 63
      %s926 = scalar_select %p925, %s924, 63
      %s927 = smul.addr %s926, 4
      %s928 = scalar_lea.vmem %s3, %s927
      // Predicated region
      $region33: #{encoder_forward.6} parent=31 // pred_check
        %p929 = pneg %p100
      $region34: #{encoder_forward.6} parent=31 // pred_check_branch
        %931 = sbr.rel (%p929) target = $region36
      $region35: #{encoder_forward.6} parent=31 // pred_region
        %s932 = smul.u32 16, %s14
      $region36: #{encoder_forward.6} parent=31 // pred_fallthru
        _
    $region32: #{encoder_forward.6} parent=5 // pred_fallthru
      _
    %p933 = scmp.le.s32.totalorder 2, %s9
    // Predicated region
    $region37: #{encoder_forward.6} parent=5 // pred_check
      %p934 = pneg %p933
    $region38: #{encoder_forward.6} parent=5 // pred_check_branch
      %936 = sbr.rel (%p934) target = $region40
    $region39: #{encoder_forward.6} parent=5 // pred_region
      %s937 = ssub.s32 %s9, 2
      // Predicated region
      $region41: #{encoder_forward.6} parent=39 // pred_check
        %p938 = pneg %p106
      $region42: #{encoder_forward.6} parent=39 // pred_check_branch
        %940 = sbr.rel (%p938) target = $region44
      $region43: #{encoder_forward.6} parent=39 // pred_region
        %s941 = smul.u32 16, %s15
        %p942 = scmp.lt.s32.totalorder %s941, 63
        %s943 = scalar_select %p942, %s941, 63
        %s944 = smul.addr %s943, 4
        %s945 = scalar_lea.vmem %s3, %s944
      $region44: #{encoder_forward.6} parent=39 // pred_fallthru
        _
    $region40: #{encoder_forward.6} parent=5 // pred_fallthru
      _
  $region6: #{encoder_forward.6} parent=0 // loop_footer
    %s13 = sadd.s32 1, %s9
  $region7: #{encoder_forward.6} parent=0 // loop_footer_branch
    %8 = sbr.rel target = $region3
  $region8: #{encoder_forward.6} parent=0 // loop_exit
    _

// kernel: encoder_forward.7
$region0: #{encoder_forward.7}
  #allocation0 [shape = 'u32[]', space=smem, size = 0x4, offset = 0x4, fixed_abs, tag = 'smem constant byte address 0x4 - core index']
  #allocation1 [shape = 'u32[144,128]{1,0:T(1,128)}', space=vmem, size = 0x12000, scoped, tag = 'internal scratch']
  %s0 = inlined_call_operand.vmem [shape: bf16[80,1024], index: 0, kind: input, shape index: {}]
  %s1 = inlined_call_operand.vmem [shape: bf16[1024,128], index: 1, kind: input, shape index: {}]
  %s2 = inlined_call_operand.vmem [shape: f32[1,128], index: 2, kind: input, shape index: {}]
  %s3 = inlined_call_operand.vmem [shape: bf16[80,128], index: 3, kind: output, shape index: {}]
  %s4 = sld [smem:[#allocation0]]
  $region22: #{encoder_forward.7} parent=0
    _
  %s6 = ssub.s32 1, %s4
  %s7 = scalar_select 0, %s6, %s4
  // Predicated region
  $region2: #{encoder_forward.7} parent=0 // pred_check
    _
  $region3: #{encoder_forward.7} parent=0 // pred_check_branch
    %9 = sbr.rel (0) target = $region5
  $region4: #{encoder_forward.7} parent=0 // pred_region
    _
  $region5: #{encoder_forward.7} parent=0 // pred_fallthru
    _
  // Predicated region
  $region6: #{encoder_forward.7} parent=0 // pred_check
    _
  $region7: #{encoder_forward.7} parent=0 // pred_check_branch
    %11 = sbr.rel (0) target = $region9
  $region8: #{encoder_forward.7} parent=0 // pred_region
    _
  $region9: #{encoder_forward.7} parent=0 // pred_fallthru
    _
  // Predicated region
  $region10: #{encoder_forward.7} parent=0 // pred_check
    _
  $region11: #{encoder_forward.7} parent=0 // pred_check_branch
    %13 = sbr.rel (0) target = $region13
  $region12: #{encoder_forward.7} parent=0 // pred_region
    _
  $region13: #{encoder_forward.7} parent=0 // pred_fallthru
    _
  %v15 = vld [vmem:[%s0] sm:$0xff]
  %v16 = vld [vmem:[%s0 + $0x8] sm:$0xff]
  %v17 = vld [vmem:[%s0 + $0x10] sm:$0xff]
  %v18 = vld [vmem:[%s0 + $0x18] sm:$0xff]
  %v19 = vld [vmem:[%s0 + $0x20] sm:$0xff]
  %v20 = vld [vmem:[%s0 + $0x28] sm:$0xff]
  %v21 = vld [vmem:[%s0 + $0x30] sm:$0xff]
  %v22 = vld [vmem:[%s0 + $0x38] sm:$0xff]
  %v23 = vld [vmem:[%s0 + $0x40] sm:$0xff]
  %v24 = vld [vmem:[%s0 + $0x48] sm:$0xff]
  %v25 = vld [vmem:[%s0 + $0x50] sm:$0xff]
  %v26 = vld [vmem:[%s0 + $0x58] sm:$0xff]
  %v27 = vld [vmem:[%s0 + $0x60] sm:$0xff]
  %v28 = vld [vmem:[%s0 + $0x68] sm:$0xff]
  %v29 = vld [vmem:[%s0 + $0x70] sm:$0xff]
  %v30 = vld [vmem:[%s0 + $0x78] sm:$0xff]
  %v31 = vld [vmem:[%s0 + $0x80] sm:$0xff]
  %v32 = vld [vmem:[%s0 + $0x88] sm:$0xff]
  %v33 = vld [vmem:[%s0 + $0x90] sm:$0xff]
  %v34 = vld [vmem:[%s0 + $0x98] sm:$0xff]
  %v35 = vld [vmem:[%s0 + $0xa0] sm:$0xff]
  %v36 = vld [vmem:[%s0 + $0xa8] sm:$0xff]
  %v37 = vld [vmem:[%s0 + $0xb0] sm:$0xff]
  %v38 = vld [vmem:[%s0 + $0xb8] sm:$0xff]
  %v39 = vld [vmem:[%s0 + $0xc0] sm:$0xff]
  %v40 = vld [vmem:[%s0 + $0xc8] sm:$0xff]
  %v41 = vld [vmem:[%s0 + $0xd0] sm:$0xff]
  %v42 = vld [vmem:[%s0 + $0xd8] sm:$0xff]
  %v43 = vld [vmem:[%s0 + $0xe0] sm:$0xff]
  %v44 = vld [vmem:[%s0 + $0xe8] sm:$0xff]
  %v45 = vld [vmem:[%s0 + $0xf0] sm:$0xff]
  %v46 = vld [vmem:[%s0 + $0xf8] sm:$0xff]
  %v47 = vld [vmem:[%s0 + $0x100] sm:$0xff]
  %v48 = vld [vmem:[%s0 + $0x108] sm:$0xff]
  %v49 = vld [vmem:[%s0 + $0x110] sm:$0xff]
  %v50 = vld [vmem:[%s0 + $0x118] sm:$0xff]
  %v51 = vld [vmem:[%s0 + $0x120] sm:$0xff]
  %v52 = vld [vmem:[%s0 + $0x128] sm:$0xff]
  %v53 = vld [vmem:[%s0 + $0x130] sm:$0xff]
  %v54 = vld [vmem:[%s0 + $0x138] sm:$0xff]
  %v55 = vld [vmem:[%s1] sm:$0xf]
  %v56 = vld [vmem:[%s1 + $0x4] sm:$0xf]
  %v57 = vld [vmem:[%s1 + $0x8] sm:$0xf]
  %v58 = vld [vmem:[%s1 + $0xc] sm:$0xf]
  %v59 = vld [vmem:[%s1 + $0x10] sm:$0xf]
  %v60 = vld [vmem:[%s1 + $0x14] sm:$0xf]
  %v61 = vld [vmem:[%s1 + $0x18] sm:$0xf]
  %v62 = vld [vmem:[%s1 + $0x1c] sm:$0xf]
  %v63 = vld [vmem:[%s1 + $0x20] sm:$0xf]
  %v64 = vld [vmem:[%s1 + $0x24] sm:$0xf]
  %v65 = vld [vmem:[%s1 + $0x28] sm:$0xf]
  %v66 = vld [vmem:[%s1 + $0x2c] sm:$0xf]
  %v67 = vld [vmem:[%s1 + $0x30] sm:$0xf]
  %v68 = vld [vmem:[%s1 + $0x34] sm:$0xf]
  %v69 = vld [vmem:[%s1 + $0x38] sm:$0xf]
  %v70 = vld [vmem:[%s1 + $0x3c] sm:$0xf]
  %v71 = vld [vmem:[%s1 + $0x40] sm:$0xf]
  %v72 = vld [vmem:[%s1 + $0x44] sm:$0xf]
  %v73 = vld [vmem:[%s1 + $0x48] sm:$0xf]
  %v74 = vld [vmem:[%s1 + $0x4c] sm:$0xf]
  %v75 = vld [vmem:[%s1 + $0x50] sm:$0xf]
  %v76 = vld [vmem:[%s1 + $0x54] sm:$0xf]
  %v77 = vld [vmem:[%s1 + $0x58] sm:$0xf]
  %v78 = vld [vmem:[%s1 + $0x5c] sm:$0xf]
  %v79 = vld [vmem:[%s1 + $0x60] sm:$0xf]
  %v80 = vld [vmem:[%s1 + $0x64] sm:$0xf]
  %v81 = vld [vmem:[%s1 + $0x68] sm:$0xf]
  %v82 = vld [vmem:[%s1 + $0x6c] sm:$0xf]
  %v83 = vld [vmem:[%s1 + $0x70] sm:$0xf]
  %v84 = vld [vmem:[%s1 + $0x74] sm:$0xf]
  %v85 = vld [vmem:[%s1 + $0x78] sm:$0xf]
  %v86 = vld [vmem:[%s1 + $0x7c] sm:$0xf]
  %v87 = vld [vmem:[%s1 + $0x80] sm:$0xf]
  %v88 = vld [vmem:[%s1 + $0x84] sm:$0xf]
  %v89 = vld [vmem:[%s1 + $0x88] sm:$0xf]
  %v90 = vld [vmem:[%s1 + $0x8c] sm:$0xf]
  %v91 = vld [vmem:[%s1 + $0x90] sm:$0xf]
  %v92 = vld [vmem:[%s1 + $0x94] sm:$0xf]
  %v93 = vld [vmem:[%s1 + $0x98] sm:$0xf]
  %v94 = vld [vmem:[%s1 + $0x9c] sm:$0xf]
  %v95 = vld [vmem:[%s1 + $0xa0] sm:$0xf]
  %v96 = vld [vmem:[%s1 + $0xa4] sm:$0xf]
  %v97 = vld [vmem:[%s1 + $0xa8] sm:$0xf]
  %v98 = vld [vmem:[%s1 + $0xac] sm:$0xf]
  %v99 = vld [vmem:[%s1 + $0xb0] sm:$0xf]
  %v100 = vld [vmem:[%s1 + $0xb4] sm:$0xf]
  %v101 = vld [vmem:[%s1 + $0xb8] sm:$0xf]
  %v102 = vld [vmem:[%s1 + $0xbc] sm:$0xf]
  %v103 = vld [vmem:[%s1 + $0xc0] sm:$0xf]
  %v104 = vld [vmem:[%s1 + $0xc4] sm:$0xf]
  %v105 = vld [vmem:[%s1 + $0xc8] sm:$0xf]
  %v106 = vld [vmem:[%s1 + $0xcc] sm:$0xf]
  %v107 = vld [vmem:[%s1 + $0xd0] sm:$0xf]
  %v108 = vld [vmem:[%s1 + $0xd4] sm:$0xf]
  %v109 = vld [vmem:[%s1 + $0xd8] sm:$0xf]
  %v110 = vld [vmem:[%s1 + $0xdc] sm:$0xf]
  %v111 = vld [vmem:[%s1 + $0xe0] sm:$0xf]
  %v112 = vld [vmem:[%s1 + $0xe4] sm:$0xf]
  %v113 = vld [vmem:[%s1 + $0xe8] sm:$0xf]
  %v114 = vld [vmem:[%s1 + $0xec] sm:$0xf]
  %v115 = vld [vmem:[%s1 + $0xf0] sm:$0xf]
  %v116 = vld [vmem:[%s1 + $0xf4] sm:$0xf]
  %v117 = vld [vmem:[%s1 + $0xf8] sm:$0xf]
  %v118 = vld [vmem:[%s1 + $0xfc] sm:$0xf]
  %v119 = vld [vmem:[%s1 + $0x100] sm:$0xf]
  %v120 = vld [vmem:[%s1 + $0x104] sm:$0xf]
  %v121 = vld [vmem:[%s1 + $0x108] sm:$0xf]
  %v122 = vld [vmem:[%s1 + $0x10c] sm:$0xf]
  %v123 = vld [vmem:[%s1 + $0x110] sm:$0xf]
  %v124 = vld [vmem:[%s1 + $0x114] sm:$0xf]
  %v125 = vld [vmem:[%s1 + $0x118] sm:$0xf]
  %v126 = vld [vmem:[%s1 + $0x11c] sm:$0xf]
  %v127 = vld [vmem:[%s1 + $0x120] sm:$0xf]
  %v128 = vld [vmem:[%s1 + $0x124] sm:$0xf]
  %v129 = vld [vmem:[%s1 + $0x128] sm:$0xf]
  %v130 = vld [vmem:[%s1 + $0x12c] sm:$0xf]
  %v131 = vld [vmem:[%s1 + $0x130] sm:$0xf]
  %v132 = vld [vmem:[%s1 + $0x134] sm:$0xf]
  %v133 = vld [vmem:[%s1 + $0x138] sm:$0xf]
  %v134 = vld [vmem:[%s1 + $0x13c] sm:$0xf]
  %v135 = vld [vmem:[%s1 + $0x140] sm:$0xf]
  %v136 = vld [vmem:[%s1 + $0x144] sm:$0xf]
  %v137 = vld [vmem:[%s1 + $0x148] sm:$0xf]
  %v138 = vld [vmem:[%s1 + $0x14c] sm:$0xf]
  %v139 = vld [vmem:[%s1 + $0x150] sm:$0xf]
  %v140 = vld [vmem:[%s1 + $0x154] sm:$0xf]
  %v141 = vld [vmem:[%s1 + $0x158] sm:$0xf]
  %v142 = vld [vmem:[%s1 + $0x15c] sm:$0xf]
  %v143 = vld [vmem:[%s1 + $0x160] sm:$0xf]
  %v144 = vld [vmem:[%s1 + $0x164] sm:$0xf]
  %v145 = vld [vmem:[%s1 + $0x168] sm:$0xf]
  %v146 = vld [vmem:[%s1 + $0x16c] sm:$0xf]
  %v147 = vld [vmem:[%s1 + $0x170] sm:$0xf]
  %v148 = vld [vmem:[%s1 + $0x174] sm:$0xf]
  %v149 = vld [vmem:[%s1 + $0x178] sm:$0xf]
  %v150 = vld [vmem:[%s1 + $0x17c] sm:$0xf]
  %v151 = vld [vmem:[%s1 + $0x180] sm:$0xf]
  %v152 = vld [vmem:[%s1 + $0x184] sm:$0xf]
  %v153 = vld [vmem:[%s1 + $0x188] sm:$0xf]
  %v154 = vld [vmem:[%s1 + $0x18c] sm:$0xf]
  %v155 = vld [vmem:[%s1 + $0x190] sm:$0xf]
  %v156 = vld [vmem:[%s1 + $0x194] sm:$0xf]
  %v157 = vld [vmem:[%s1 + $0x198] sm:$0xf]
  %v158 = vld [vmem:[%s1 + $0x19c] sm:$0xf]
  %v159 = vld [vmem:[%s1 + $0x1a0] sm:$0xf]
  %v160 = vld [vmem:[%s1 + $0x1a4] sm:$0xf]
  %v161 = vld [vmem:[%s1 + $0x1a8] sm:$0xf]
  %v162 = vld [vmem:[%s1 + $0x1ac] sm:$0xf]
  %v163 = vld [vmem:[%s1 + $0x1b0] sm:$0xf]
  %v164 = vld [vmem:[%s1 + $0x1b4] sm:$0xf]
  %v165 = vld [vmem:[%s1 + $0x1b8] sm:$0xf]
  %v166 = vld [vmem:[%s1 + $0x1bc] sm:$0xf]
  %v167 = vld [vmem:[%s1 + $0x1c0] sm:$0xf]
  %v168 = vld [vmem:[%s1 + $0x1c4] sm:$0xf]
  %v169 = vld [vmem:[%s1 + $0x1c8] sm:$0xf]
  %v170 = vld [vmem:[%s1 + $0x1cc] sm:$0xf]
  %v171 = vld [vmem:[%s1 + $0x1d0] sm:$0xf]
  %v172 = vld [vmem:[%s1 + $0x1d4] sm:$0xf]
  %v173 = vld [vmem:[%s1 + $0x1d8] sm:$0xf]
  %v174 = vld [vmem:[%s1 + $0x1dc] sm:$0xf]
  %v175 = vld [vmem:[%s1 + $0x1e0] sm:$0xf]
  %v176 = vld [vmem:[%s1 + $0x1e4] sm:$0xf]
  %v177 = vld [vmem:[%s1 + $0x1e8] sm:$0xf]
  %v178 = vld [vmem:[%s1 + $0x1ec] sm:$0xf]
  %v179 = vld [vmem:[%s1 + $0x1f0] sm:$0xf]
  %v180 = vld [vmem:[%s1 + $0x1f4] sm:$0xf]
  %v181 = vld [vmem:[%s1 + $0x1f8] sm:$0xf]
  %v182 = vld [vmem:[%s1 + $0x1fc] sm:$0xf]
  %v183 = vld [vmem:[%s2] sm:$0x1]
  %v185 = vlaneseq
  %v186 = vshrl.u32 %v185, 7
  %v187 = vsub.s32 0, %v186
  %v188 = vrot.slane %v183, %v187
  %v230 = vunpack.c.l.b16 %v15
  %v231 = vunpack.c.h.b16 %v15
  %v232 = vunpack.c.l.b16 %v16
  %v233 = vunpack.c.h.b16 %v16
  %v234 = vunpack.c.l.b16 %v17
  %v235 = vunpack.c.h.b16 %v17
  %v236 = vunpack.c.l.b16 %v18
  %v237 = vunpack.c.h.b16 %v18
  %v238 = vunpack.c.l.b16 %v19
  %v239 = vunpack.c.h.b16 %v19
  %v240 = vunpack.c.l.b16 %v20
  %v241 = vunpack.c.h.b16 %v20
  %v242 = vunpack.c.l.b16 %v21
  %v243 = vunpack.c.h.b16 %v21
  %v244 = vunpack.c.l.b16 %v22
  %v245 = vunpack.c.h.b16 %v22
  %v246 = vunpack.c.l.b16 %v23
  %v247 = vunpack.c.h.b16 %v23
  %v248 = vunpack.c.l.b16 %v24
  %v249 = vunpack.c.h.b16 %v24
  %v250 = vunpack.c.l.b16 %v25
  %v251 = vunpack.c.h.b16 %v25
  %v252 = vunpack.c.l.b16 %v26
  %v253 = vunpack.c.h.b16 %v26
  %v254 = vunpack.c.l.b16 %v27
  %v255 = vunpack.c.h.b16 %v27
  %v256 = vunpack.c.l.b16 %v28
  %v257 = vunpack.c.h.b16 %v28
  %v258 = vunpack.c.l.b16 %v29
  %v259 = vunpack.c.h.b16 %v29
  %v260 = vunpack.c.l.b16 %v30
  %v261 = vunpack.c.h.b16 %v30
  %v262 = vunpack.c.l.b16 %v31
  %v263 = vunpack.c.h.b16 %v31
  %v264 = vunpack.c.l.b16 %v32
  %v265 = vunpack.c.h.b16 %v32
  %v266 = vunpack.c.l.b16 %v33
  %v267 = vunpack.c.h.b16 %v33
  %v268 = vunpack.c.l.b16 %v34
  %v269 = vunpack.c.h.b16 %v34
  %v270 = vunpack.c.l.b16 %v35
  %v271 = vunpack.c.h.b16 %v35
  %v272 = vunpack.c.l.b16 %v36
  %v273 = vunpack.c.h.b16 %v36
  %v274 = vunpack.c.l.b16 %v37
  %v275 = vunpack.c.h.b16 %v37
  %v276 = vunpack.c.l.b16 %v38
  %v277 = vunpack.c.h.b16 %v38
  %v278 = vunpack.c.l.b16 %v39
  %v279 = vunpack.c.h.b16 %v39
  %v280 = vunpack.c.l.b16 %v40
  %v281 = vunpack.c.h.b16 %v40
  %v282 = vunpack.c.l.b16 %v41
  %v283 = vunpack.c.h.b16 %v41
  %v284 = vunpack.c.l.b16 %v42
  %v285 = vunpack.c.h.b16 %v42
  %v286 = vunpack.c.l.b16 %v43
  %v287 = vunpack.c.h.b16 %v43
  %v288 = vunpack.c.l.b16 %v44
  %v289 = vunpack.c.h.b16 %v44
  %v290 = vunpack.c.l.b16 %v45
  %v291 = vunpack.c.h.b16 %v45
  %v292 = vunpack.c.l.b16 %v46
  %v293 = vunpack.c.h.b16 %v46
  %v294 = vunpack.c.l.b16 %v47
  %v295 = vunpack.c.h.b16 %v47
  %v296 = vunpack.c.l.b16 %v48
  %v297 = vunpack.c.h.b16 %v48
  %v298 = vunpack.c.l.b16 %v49
  %v299 = vunpack.c.h.b16 %v49
  %v300 = vunpack.c.l.b16 %v50
  %v301 = vunpack.c.h.b16 %v50
  %v302 = vunpack.c.l.b16 %v51
  %v303 = vunpack.c.h.b16 %v51
  %v304 = vunpack.c.l.b16 %v52
  %v305 = vunpack.c.h.b16 %v52
  %v306 = vunpack.c.l.b16 %v53
  %v307 = vunpack.c.h.b16 %v53
  %v308 = vunpack.c.l.b16 %v54
  %v309 = vunpack.c.h.b16 %v54
  %v310 = vpack.c.b16 %v238, %v230
  %v311 = vpack.c.b16 %v239, %v231
  %v312 = vpack.c.b16 %v240, %v232
  %v313 = vpack.c.b16 %v241, %v233
  %v314 = vpack.c.b16 %v242, %v234
  %v315 = vpack.c.b16 %v243, %v235
  %v316 = vpack.c.b16 %v244, %v236
  %v317 = vpack.c.b16 %v245, %v237
  %v318 = vpack.c.b16 %v254, %v246
  %v319 = vpack.c.b16 %v255, %v247
  %v320 = vpack.c.b16 %v256, %v248
  %v321 = vpack.c.b16 %v257, %v249
  %v322 = vpack.c.b16 %v258, %v250
  %v323 = vpack.c.b16 %v259, %v251
  %v324 = vpack.c.b16 %v260, %v252
  %v325 = vpack.c.b16 %v261, %v253
  %v326 = vpack.c.b16 %v270, %v262
  %v327 = vpack.c.b16 %v271, %v263
  %v328 = vpack.c.b16 %v272, %v264
  %v329 = vpack.c.b16 %v273, %v265
  %v330 = vpack.c.b16 %v274, %v266
  %v331 = vpack.c.b16 %v275, %v267
  %v332 = vpack.c.b16 %v276, %v268
  %v333 = vpack.c.b16 %v277, %v269
  %v334 = vpack.c.b16 %v286, %v278
  %v335 = vpack.c.b16 %v287, %v279
  %v336 = vpack.c.b16 %v288, %v280
  %v337 = vpack.c.b16 %v289, %v281
  %v338 = vpack.c.b16 %v290, %v282
  %v339 = vpack.c.b16 %v291, %v283
  %v340 = vpack.c.b16 %v292, %v284
  %v341 = vpack.c.b16 %v293, %v285
  %v342 = vpack.c.b16 %v302, %v294
  %v343 = vpack.c.b16 %v303, %v295
  %v344 = vpack.c.b16 %v304, %v296
  %v345 = vpack.c.b16 %v305, %v297
  %v346 = vpack.c.b16 %v306, %v298
  %v347 = vpack.c.b16 %v307, %v299
  %v348 = vpack.c.b16 %v308, %v300
  %v349 = vpack.c.b16 %v309, %v301
  %v518 = vunpack.c.l.b16 %v55
  %v519 = vunpack.c.l.b16 %v56
  %v520 = vunpack.c.l.b16 %v57
  %v521 = vunpack.c.l.b16 %v58
  %v522 = vunpack.c.l.b16 %v59
  %v523 = vunpack.c.l.b16 %v60
  %v524 = vunpack.c.l.b16 %v61
  %v525 = vunpack.c.l.b16 %v62
  %v526 = vunpack.c.l.b16 %v63
  %v527 = vunpack.c.l.b16 %v64
  %v528 = vunpack.c.l.b16 %v65
  %v529 = vunpack.c.l.b16 %v66
  %v530 = vunpack.c.l.b16 %v67
  %v531 = vunpack.c.l.b16 %v68
  %v532 = vunpack.c.l.b16 %v69
  %v533 = vunpack.c.l.b16 %v70
  %v534 = vunpack.c.l.b16 %v71
  %v535 = vunpack.c.l.b16 %v72
  %v536 = vunpack.c.l.b16 %v73
  %v537 = vunpack.c.l.b16 %v74
  %v538 = vunpack.c.l.b16 %v75
  %v539 = vunpack.c.l.b16 %v76
  %v540 = vunpack.c.l.b16 %v77
  %v541 = vunpack.c.l.b16 %v78
  %v542 = vunpack.c.l.b16 %v79
  %v543 = vunpack.c.l.b16 %v80
  %v544 = vunpack.c.l.b16 %v81
  %v545 = vunpack.c.l.b16 %v82
  %v546 = vunpack.c.l.b16 %v83
  %v547 = vunpack.c.l.b16 %v84
  %v548 = vunpack.c.l.b16 %v85
  %v549 = vunpack.c.l.b16 %v86
  %v550 = vunpack.c.l.b16 %v87
  %v551 = vunpack.c.l.b16 %v88
  %v552 = vunpack.c.l.b16 %v89
  %v553 = vunpack.c.l.b16 %v90
  %v554 = vunpack.c.l.b16 %v91
  %v555 = vunpack.c.l.b16 %v92
  %v556 = vunpack.c.l.b16 %v93
  %v557 = vunpack.c.l.b16 %v94
  %v558 = vunpack.c.l.b16 %v95
  %v559 = vunpack.c.l.b16 %v96
  %v560 = vunpack.c.l.b16 %v97
  %v561 = vunpack.c.l.b16 %v98
  %v562 = vunpack.c.l.b16 %v99
  %v563 = vunpack.c.l.b16 %v100
  %v564 = vunpack.c.l.b16 %v101
  %v565 = vunpack.c.l.b16 %v102
  %v566 = vunpack.c.l.b16 %v103
  %v567 = vunpack.c.l.b16 %v104
  %v568 = vunpack.c.l.b16 %v105
  %v569 = vunpack.c.l.b16 %v106
  %v570 = vunpack.c.l.b16 %v107
  %v571 = vunpack.c.l.b16 %v108
  %v572 = vunpack.c.l.b16 %v109
  %v573 = vunpack.c.l.b16 %v110
  %v574 = vunpack.c.l.b16 %v111
  %v575 = vunpack.c.l.b16 %v112
  %v576 = vunpack.c.l.b16 %v113
  %v577 = vunpack.c.l.b16 %v114
  %v578 = vunpack.c.l.b16 %v115
  %v579 = vunpack.c.l.b16 %v116
  %v580 = vunpack.c.l.b16 %v117
  %v581 = vunpack.c.l.b16 %v118
  %v582 = vunpack.c.l.b16 %v119
  %v583 = vunpack.c.l.b16 %v120
  %v584 = vunpack.c.l.b16 %v121
  %v585 = vunpack.c.l.b16 %v122
  %v586 = vunpack.c.l.b16 %v123
  %v587 = vunpack.c.l.b16 %v124
  %v588 = vunpack.c.l.b16 %v125
  %v589 = vunpack.c.l.b16 %v126
  %v590 = vunpack.c.l.b16 %v127
  %v591 = vunpack.c.l.b16 %v128
  %v592 = vunpack.c.l.b16 %v129
  %v593 = vunpack.c.l.b16 %v130
  %v594 = vunpack.c.l.b16 %v131
  %v595 = vunpack.c.l.b16 %v132
  %v596 = vunpack.c.l.b16 %v133
  %v597 = vunpack.c.l.b16 %v134
  %v598 = vunpack.c.l.b16 %v135
  %v599 = vunpack.c.l.b16 %v136
  %v600 = vunpack.c.l.b16 %v137
  %v601 = vunpack.c.l.b16 %v138
  %v602 = vunpack.c.l.b16 %v139
  %v603 = vunpack.c.l.b16 %v140
  %v604 = vunpack.c.l.b16 %v141
  %v605 = vunpack.c.l.b16 %v142
  %v606 = vunpack.c.l.b16 %v143
  %v607 = vunpack.c.l.b16 %v144
  %v608 = vunpack.c.l.b16 %v145
  %v609 = vunpack.c.l.b16 %v146
  %v610 = vunpack.c.l.b16 %v147
  %v611 = vunpack.c.l.b16 %v148
  %v612 = vunpack.c.l.b16 %v149
  %v613 = vunpack.c.l.b16 %v150
  %v614 = vunpack.c.l.b16 %v151
  %v615 = vunpack.c.l.b16 %v152
  %v616 = vunpack.c.l.b16 %v153
  %v617 = vunpack.c.l.b16 %v154
  %v618 = vunpack.c.l.b16 %v155
  %v619 = vunpack.c.l.b16 %v156
  %v620 = vunpack.c.l.b16 %v157
  %v621 = vunpack.c.l.b16 %v158
  %v622 = vunpack.c.l.b16 %v159
  %v623 = vunpack.c.l.b16 %v160
  %v624 = vunpack.c.l.b16 %v161
  %v625 = vunpack.c.l.b16 %v162
  %v626 = vunpack.c.l.b16 %v163
  %v627 = vunpack.c.l.b16 %v164
  %v628 = vunpack.c.l.b16 %v165
  %v629 = vunpack.c.l.b16 %v166
  %v630 = vunpack.c.l.b16 %v167
  %v631 = vunpack.c.l.b16 %v168
  %v632 = vunpack.c.l.b16 %v169
  %v633 = vunpack.c.l.b16 %v170
  %v634 = vunpack.c.l.b16 %v171
  %v635 = vunpack.c.l.b16 %v172
  %v636 = vunpack.c.l.b16 %v173
  %v637 = vunpack.c.l.b16 %v174
  %v638 = vunpack.c.l.b16 %v175
  %v639 = vunpack.c.l.b16 %v176
  %v640 = vunpack.c.l.b16 %v177
  %v641 = vunpack.c.l.b16 %v178
  %v642 = vunpack.c.l.b16 %v179
  %v643 = vunpack.c.l.b16 %v180
  %v644 = vunpack.c.l.b16 %v181
  %v645 = vunpack.c.l.b16 %v182
  %v646 = vpack.c.b16 %v519, %v518
  %v647 = vpack.c.b16 %v521, %v520
  %v648 = vpack.c.b16 %v523, %v522
  %v649 = vpack.c.b16 %v525, %v524
  %v650 = vpack.c.b16 %v527, %v526
  %v651 = vpack.c.b16 %v529, %v528
  %v652 = vpack.c.b16 %v531, %v530
  %v653 = vpack.c.b16 %v533, %v532
  %v654 = vpack.c.b16 %v535, %v534
  %v655 = vpack.c.b16 %v537, %v536
  %v656 = vpack.c.b16 %v539, %v538
  %v657 = vpack.c.b16 %v541, %v540
  %v658 = vpack.c.b16 %v543, %v542
  %v659 = vpack.c.b16 %v545, %v544
  %v660 = vpack.c.b16 %v547, %v546
  %v661 = vpack.c.b16 %v549, %v548
  %v662 = vpack.c.b16 %v551, %v550
  %v663 = vpack.c.b16 %v553, %v552
  %v664 = vpack.c.b16 %v555, %v554
  %v665 = vpack.c.b16 %v557, %v556
  %v666 = vpack.c.b16 %v559, %v558
  %v667 = vpack.c.b16 %v561, %v560
  %v668 = vpack.c.b16 %v563, %v562
  %v669 = vpack.c.b16 %v565, %v564
  %v670 = vpack.c.b16 %v567, %v566
  %v671 = vpack.c.b16 %v569, %v568
  %v672 = vpack.c.b16 %v571, %v570
  %v673 = vpack.c.b16 %v573, %v572
  %v674 = vpack.c.b16 %v575, %v574
  %v675 = vpack.c.b16 %v577, %v576
  %v676 = vpack.c.b16 %v579, %v578
  %v677 = vpack.c.b16 %v581, %v580
  %v678 = vpack.c.b16 %v583, %v582
  %v679 = vpack.c.b16 %v585, %v584
  %v680 = vpack.c.b16 %v587, %v586
  %v681 = vpack.c.b16 %v589, %v588
  %v682 = vpack.c.b16 %v591, %v590
  %v683 = vpack.c.b16 %v593, %v592
  %v684 = vpack.c.b16 %v595, %v594
  %v685 = vpack.c.b16 %v597, %v596
  %v686 = vpack.c.b16 %v599, %v598
  %v687 = vpack.c.b16 %v601, %v600
  %v688 = vpack.c.b16 %v603, %v602
  %v689 = vpack.c.b16 %v605, %v604
  %v690 = vpack.c.b16 %v607, %v606
  %v691 = vpack.c.b16 %v609, %v608
  %v692 = vpack.c.b16 %v611, %v610
  %v693 = vpack.c.b16 %v613, %v612
  %v694 = vpack.c.b16 %v615, %v614
  %v695 = vpack.c.b16 %v617, %v616
  %v696 = vpack.c.b16 %v619, %v618
  %v697 = vpack.c.b16 %v621, %v620
  %v698 = vpack.c.b16 %v623, %v622
  %v699 = vpack.c.b16 %v625, %v624
  %v700 = vpack.c.b16 %v627, %v626
  %v701 = vpack.c.b16 %v629, %v628
  %v702 = vpack.c.b16 %v631, %v630
  %v703 = vpack.c.b16 %v633, %v632
  %v704 = vpack.c.b16 %v635, %v634
  %v705 = vpack.c.b16 %v637, %v636
  %v706 = vpack.c.b16 %v639, %v638
  %v707 = vpack.c.b16 %v641, %v640
  %v708 = vpack.c.b16 %v643, %v642
  %v709 = vpack.c.b16 %v645, %v644
  %774 = vmatprep.subr.bf16.mxu0 0
  %775 = vmatpush1.bf16.msra.mxu0 %v653
  %776 = vmatprep.subr.bf16.mxu0 0
  %777 = vmatpush1.bf16.msra.mxu0 %v652
  %778 = vmatprep.subr.bf16.mxu0 0
  %779 = vmatpush1.bf16.msra.mxu0 %v651
  %780 = vmatprep.subr.bf16.mxu0 0
  %781 = vmatpush1.bf16.msra.mxu0 %v650
  %782 = vmatprep.subr.bf16.mxu0 0
  %783 = vmatpush1.bf16.msra.mxu0 %v649
  %784 = vmatprep.subr.bf16.mxu0 0
  %785 = vmatpush1.bf16.msra.mxu0 %v648
  %786 = vmatprep.subr.bf16.mxu0 0
  %787 = vmatpush1.bf16.msra.mxu0 %v647
  %788 = vmatprep.subr.bf16.mxu0 0
  %789 = vmatpush1.bf16.msra.mxu0 %v646
  %790 = vmatprep.subr.bf16.mxu0 0
  %791 = vmatpush2.bf16.msra.mxu0 %v661
  %792 = vmatprep.subr.bf16.mxu0 0
  %793 = vmatpush2.bf16.msra.mxu0 %v660
  %794 = vmatprep.subr.bf16.mxu0 0
  %795 = vmatpush2.bf16.msra.mxu0 %v659
  %796 = vmatprep.subr.bf16.mxu0 0
  %797 = vmatpush2.bf16.msra.mxu0 %v658
  %798 = vmatprep.subr.bf16.mxu0 0
  %799 = vmatpush2.bf16.msra.mxu0 %v657
  %800 = vmatprep.subr.bf16.mxu0 0
  %801 = vmatpush2.bf16.msra.mxu0 %v656
  %802 = vmatprep.subr.bf16.mxu0 0
  %803 = vmatpush2.bf16.msra.mxu0 %v655
  %804 = vmatprep.subr.bf16.mxu0 0
  %805 = vmatpush2.bf16.msra.mxu0 %v654
  %806 = vmatprep.mubr.bf16.mxu0 %v311
  %807 = vmatmul.mubr.bf16.gmra.mxu0 %v310
  %v808 = vpop.f32.mrf.mxu0
  %v809 = vadd.f32 %v188, %v808
  %v810 = vpop.f32.mrf.mxu0
  %v811 = vpop.f32.mrf.mxu0
  %v812 = vadd.f32 %v188, %v811
  %v813 = vpop.f32.mrf.mxu0
  %814 = vmatprep.mubr.bf16.mxu0 %v319
  %815 = vmatmul.mubr.bf16.gmra.mxu0 %v318
  %v816 = vpop.f32.mrf.mxu0
  %v817 = vadd.f32 %v188, %v816
  %v818 = vpop.f32.mrf.mxu0
  %v819 = vpop.f32.mrf.mxu0
  %v820 = vadd.f32 %v188, %v819
  %v821 = vpop.f32.mrf.mxu0
  %822 = vmatprep.mubr.bf16.mxu0 %v327
  %823 = vmatmul.mubr.bf16.gmra.mxu0 %v326
  %v824 = vpop.f32.mrf.mxu0
  %v825 = vadd.f32 %v188, %v824
  %v826 = vpop.f32.mrf.mxu0
  %v827 = vpop.f32.mrf.mxu0
  %v828 = vadd.f32 %v188, %v827
  %v829 = vpop.f32.mrf.mxu0
  %830 = vmatprep.mubr.bf16.mxu0 %v335
  %831 = vmatmul.mubr.bf16.gmra.mxu0 %v334
  %v832 = vpop.f32.mrf.mxu0
  %v833 = vadd.f32 %v188, %v832
  %v834 = vpop.f32.mrf.mxu0
  %v835 = vpop.f32.mrf.mxu0
  %v836 = vadd.f32 %v188, %v835
  %v837 = vpop.f32.mrf.mxu0
  %838 = vmatprep.mubr.bf16.mxu0 %v343
  %839 = vmatmul.mubr.bf16.gmra.mxu0 %v342
  %v840 = vpop.f32.mrf.mxu0
  %v841 = vadd.f32 %v188, %v840
  %v842 = vpop.f32.mrf.mxu0
  %v843 = vpop.f32.mrf.mxu0
  %v844 = vadd.f32 %v188, %v843
  %v845 = vpop.f32.mrf.mxu0
  %846 = vdwg.mxu0
  %847 = vmatprep.subr.bf16.mxu0 0
  %848 = vmatpush1.bf16.msra.mxu0 %v669
  %849 = vmatprep.subr.bf16.mxu0 0
  %850 = vmatpush1.bf16.msra.mxu0 %v668
  %851 = vmatprep.subr.bf16.mxu0 0
  %852 = vmatpush1.bf16.msra.mxu0 %v667
  %853 = vmatprep.subr.bf16.mxu0 0
  %854 = vmatpush1.bf16.msra.mxu0 %v666
  %855 = vmatprep.subr.bf16.mxu0 0
  %856 = vmatpush1.bf16.msra.mxu0 %v665
  %857 = vmatprep.subr.bf16.mxu0 0
  %858 = vmatpush1.bf16.msra.mxu0 %v664
  %859 = vmatprep.subr.bf16.mxu0 0
  %860 = vmatpush1.bf16.msra.mxu0 %v663
  %861 = vmatprep.subr.bf16.mxu0 0
  %862 = vmatpush1.bf16.msra.mxu0 %v662
  %863 = vmatprep.subr.bf16.mxu0 0
  %864 = vmatpush2.bf16.msra.mxu0 %v677
  %865 = vmatprep.subr.bf16.mxu0 0
  %866 = vmatpush2.bf16.msra.mxu0 %v676
  %867 = vmatprep.subr.bf16.mxu0 0
  %868 = vmatpush2.bf16.msra.mxu0 %v675
  %869 = vmatprep.subr.bf16.mxu0 0
  %870 = vmatpush2.bf16.msra.mxu0 %v674
  %871 = vmatprep.subr.bf16.mxu0 0
  %872 = vmatpush2.bf16.msra.mxu0 %v673
  %873 = vmatprep.subr.bf16.mxu0 0
  %874 = vmatpush2.bf16.msra.mxu0 %v672
  %875 = vmatprep.subr.bf16.mxu0 0
  %876 = vmatpush2.bf16.msra.mxu0 %v671
  %877 = vmatprep.subr.bf16.mxu0 0
  %878 = vmatpush2.bf16.msra.mxu0 %v670
  %879 = vmatprep.mubr.bf16.mxu0 %v313
  %880 = vmatmul.mubr.bf16.gmra.mxu0 %v312
  %v881 = vpop.f32.mrf.mxu0
  %v882 = vadd.f32 %v809, %v881
  %v883 = vpop.f32.mrf.mxu0
  %v884 = vpop.f32.mrf.mxu0
  %v885 = vadd.f32 %v812, %v884
  %v886 = vpop.f32.mrf.mxu0
  %887 = vmatprep.mubr.bf16.mxu0 %v321
  %888 = vmatmul.mubr.bf16.gmra.mxu0 %v320
  %v889 = vpop.f32.mrf.mxu0
  %v890 = vadd.f32 %v817, %v889
  %v891 = vpop.f32.mrf.mxu0
  %v892 = vpop.f32.mrf.mxu0
  %v893 = vadd.f32 %v820, %v892
  %v894 = vpop.f32.mrf.mxu0
  %895 = vmatprep.mubr.bf16.mxu0 %v329
  %896 = vmatmul.mubr.bf16.gmra.mxu0 %v328
  %v897 = vpop.f32.mrf.mxu0
  %v898 = vadd.f32 %v825, %v897
  %v899 = vpop.f32.mrf.mxu0
  %v900 = vpop.f32.mrf.mxu0
  %v901 = vadd.f32 %v828, %v900
  %v902 = vpop.f32.mrf.mxu0
  %903 = vmatprep.mubr.bf16.mxu0 %v337
  %904 = vmatmul.mubr.bf16.gmra.mxu0 %v336
  %v905 = vpop.f32.mrf.mxu0
  %v906 = vadd.f32 %v833, %v905
  %v907 = vpop.f32.mrf.mxu0
  %v908 = vpop.f32.mrf.mxu0
  %v909 = vadd.f32 %v836, %v908
  %v910 = vpop.f32.mrf.mxu0
  %911 = vmatprep.mubr.bf16.mxu0 %v345
  %912 = vmatmul.mubr.bf16.gmra.mxu0 %v344
  %v913 = vpop.f32.mrf.mxu0
  %v914 = vadd.f32 %v841, %v913
  %v915 = vpop.f32.mrf.mxu0
  %v916 = vpop.f32.mrf.mxu0
  %v917 = vadd.f32 %v844, %v916
  %v918 = vpop.f32.mrf.mxu0
  %919 = vdwg.mxu0
  %920 = vmatprep.subr.bf16.mxu0 0
  %921 = vmatpush1.bf16.msra.mxu0 %v685
  %922 = vmatprep.subr.bf16.mxu0 0
  %923 = vmatpush1.bf16.msra.mxu0 %v684
  %924 = vmatprep.subr.bf16.mxu0 0
  %925 = vmatpush1.bf16.msra.mxu0 %v683
  %926 = vmatprep.subr.bf16.mxu0 0
  %927 = vmatpush1.bf16.msra.mxu0 %v682
  %928 = vmatprep.subr.bf16.mxu0 0
  %929 = vmatpush1.bf16.msra.mxu0 %v681
  %930 = vmatprep.subr.bf16.mxu0 0
  %931 = vmatpush1.bf16.msra.mxu0 %v680
  %932 = vmatprep.subr.bf16.mxu0 0
  %933 = vmatpush1.bf16.msra.mxu0 %v679
  %934 = vmatprep.subr.bf16.mxu0 0
  %935 = vmatpush1.bf16.msra.mxu0 %v678
  %936 = vmatprep.subr.bf16.mxu0 0
  %937 = vmatpush2.bf16.msra.mxu0 %v693
  %938 = vmatprep.subr.bf16.mxu0 0
  %939 = vmatpush2.bf16.msra.mxu0 %v692
  %940 = vmatprep.subr.bf16.mxu0 0
  %941 = vmatpush2.bf16.msra.mxu0 %v691
  %942 = vmatprep.subr.bf16.mxu0 0
  %943 = vmatpush2.bf16.msra.mxu0 %v690
  %944 = vmatprep.subr.bf16.mxu0 0
  %945 = vmatpush2.bf16.msra.mxu0 %v689
  %946 = vmatprep.subr.bf16.mxu0 0
  %947 = vmatpush2.bf16.msra.mxu0 %v688
  %948 = vmatprep.subr.bf16.mxu0 0
  %949 = vmatpush2.bf16.msra.mxu0 %v687
  %950 = vmatprep.subr.bf16.mxu0 0
  %951 = vmatpush2.bf16.msra.mxu0 %v686
  %952 = vmatprep.mubr.bf16.mxu0 %v315
  %953 = vmatmul.mubr.bf16.gmra.mxu0 %v314
  %v954 = vpop.f32.mrf.mxu0
  %v955 = vadd.f32 %v882, %v954
  %v956 = vpop.f32.mrf.mxu0
  %v957 = vpop.f32.mrf.mxu0
  %v958 = vadd.f32 %v885, %v957
  %v959 = vpop.f32.mrf.mxu0
  %960 = vmatprep.mubr.bf16.mxu0 %v323
  %961 = vmatmul.mubr.bf16.gmra.mxu0 %v322
  %v962 = vpop.f32.mrf.mxu0
  %v963 = vadd.f32 %v890, %v962
  %v964 = vpop.f32.mrf.mxu0
  %v965 = vpop.f32.mrf.mxu0
  %v966 = vadd.f32 %v893, %v965
  %v967 = vpop.f32.mrf.mxu0
  %968 = vmatprep.mubr.bf16.mxu0 %v331
  %969 = vmatmul.mubr.bf16.gmra.mxu0 %v330
  %v970 = vpop.f32.mrf.mxu0
  %v971 = vadd.f32 %v898, %v970
  %v972 = vpop.f32.mrf.mxu0
  %v973 = vpop.f32.mrf.mxu0
  %v974 = vadd.f32 %v901, %v973
  %v975 = vpop.f32.mrf.mxu0
  %976 = vmatprep.mubr.bf16.mxu0 %v339
  %977 = vmatmul.mubr.bf16.gmra.mxu0 %v338
  %v978 = vpop.f32.mrf.mxu0
  %v979 = vadd.f32 %v906, %v978
  %v980 = vpop.f32.mrf.mxu0
  %v981 = vpop.f32.mrf.mxu0
  %v982 = vadd.f32 %v909, %v981
  %v983 = vpop.f32.mrf.mxu0
  %984 = vmatprep.mubr.bf16.mxu0 %v347
  %985 = vmatmul.mubr.bf16.gmra.mxu0 %v346
  %v986 = vpop.f32.mrf.mxu0
  %v987 = vadd.f32 %v914, %v986
  %v988 = vpop.f32.mrf.mxu0
  %v989 = vpop.f32.mrf.mxu0
  %v990 = vadd.f32 %v917, %v989
  %v991 = vpop.f32.mrf.mxu0
  %992 = vdwg.mxu0
  %993 = vmatprep.subr.bf16.mxu0 0
  %994 = vmatpush1.bf16.msra.mxu0 %v701
  %995 = vmatprep.subr.bf16.mxu0 0
  %996 = vmatpush1.bf16.msra.mxu0 %v700
  %997 = vmatprep.subr.bf16.mxu0 0
  %998 = vmatpush1.bf16.msra.mxu0 %v699
  %999 = vmatprep.subr.bf16.mxu0 0
  %1000 = vmatpush1.bf16.msra.mxu0 %v698
  %1001 = vmatprep.subr.bf16.mxu0 0
  %1002 = vmatpush1.bf16.msra.mxu0 %v697
  %1003 = vmatprep.subr.bf16.mxu0 0
  %1004 = vmatpush1.bf16.msra.mxu0 %v696
  %1005 = vmatprep.subr.bf16.mxu0 0
  %1006 = vmatpush1.bf16.msra.mxu0 %v695
  %1007 = vmatprep.subr.bf16.mxu0 0
  %1008 = vmatpush1.bf16.msra.mxu0 %v694
  %1009 = vmatprep.subr.bf16.mxu0 0
  %1010 = vmatpush2.bf16.msra.mxu0 %v709
  %1011 = vmatprep.subr.bf16.mxu0 0
  %1012 = vmatpush2.bf16.msra.mxu0 %v708
  %1013 = vmatprep.subr.bf16.mxu0 0
  %1014 = vmatpush2.bf16.msra.mxu0 %v707
  %1015 = vmatprep.subr.bf16.mxu0 0
  %1016 = vmatpush2.bf16.msra.mxu0 %v706
  %1017 = vmatprep.subr.bf16.mxu0 0
  %1018 = vmatpush2.bf16.msra.mxu0 %v705
  %1019 = vmatprep.subr.bf16.mxu0 0
  %1020 = vmatpush2.bf16.msra.mxu0 %v704
  %1021 = vmatprep.subr.bf16.mxu0 0
  %1022 = vmatpush2.bf16.msra.mxu0 %v703
  %1023 = vmatprep.subr.bf16.mxu0 0
  %1024 = vmatpush2.bf16.msra.mxu0 %v702
  %1025 = vmatprep.mubr.bf16.mxu0 %v317
  %1026 = vmatmul.mubr.bf16.gmra.mxu0 %v316
  %v1027 = vpop.f32.mrf.mxu0
  %v1028 = vadd.f32 %v955, %v1027
  %v1029 = vpop.f32.mrf.mxu0
  %v1030 = vpop.f32.mrf.mxu0
  %v1031 = vadd.f32 %v958, %v1030
  %v1032 = vpop.f32.mrf.mxu0
  %1033 = vmatprep.mubr.bf16.mxu0 %v325
  %1034 = vmatmul.mubr.bf16.gmra.mxu0 %v324
  %v1035 = vpop.f32.mrf.mxu0
  %v1036 = vadd.f32 %v963, %v1035
  %v1037 = vpop.f32.mrf.mxu0
  %v1038 = vpop.f32.mrf.mxu0
  %v1039 = vadd.f32 %v966, %v1038
  %v1040 = vpop.f32.mrf.mxu0
  %1041 = vmatprep.mubr.bf16.mxu0 %v333
  %1042 = vmatmul.mubr.bf16.gmra.mxu0 %v332
  %v1043 = vpop.f32.mrf.mxu0
  %v1044 = vadd.f32 %v971, %v1043
  %v1045 = vpop.f32.mrf.mxu0
  %v1046 = vpop.f32.mrf.mxu0
  %v1047 = vadd.f32 %v974, %v1046
  %v1048 = vpop.f32.mrf.mxu0
  %1049 = vmatprep.mubr.bf16.mxu0 %v341
  %1050 = vmatmul.mubr.bf16.gmra.mxu0 %v340
  %v1051 = vpop.f32.mrf.mxu0
  %v1052 = vadd.f32 %v979, %v1051
  %v1053 = vpop.f32.mrf.mxu0
  %v1054 = vpop.f32.mrf.mxu0
  %v1055 = vadd.f32 %v982, %v1054
  %v1056 = vpop.f32.mrf.mxu0
  %1057 = vmatprep.mubr.bf16.mxu0 %v349
  %1058 = vmatmul.mubr.bf16.gmra.mxu0 %v348
  %v1059 = vpop.f32.mrf.mxu0
  %v1060 = vadd.f32 %v987, %v1059
  %v1061 = vpop.f32.mrf.mxu0
  %v1062 = vpop.f32.mrf.mxu0
  %v1063 = vadd.f32 %v990, %v1062
  %v1064 = vpop.f32.mrf.mxu0
  %1065 = vdwg.mxu0
  %v1066 = vmax.f32 %v1028, 0.0
  %v1067 = vmax.f32 %v1031, 0.0
  %v1068 = vmax.f32 %v1036, 0.0
  %v1069 = vmax.f32 %v1039, 0.0
  %v1070 = vmax.f32 %v1044, 0.0
  %v1071 = vmax.f32 %v1047, 0.0
  %v1072 = vmax.f32 %v1052, 0.0
  %v1073 = vmax.f32 %v1055, 0.0
  %v1074 = vmax.f32 %v1060, 0.0
  %v1075 = vmax.f32 %v1063, 0.0
  %v1076 = vpack.c.bf16 %v1067, %v1066
  %v1077 = vpack.c.bf16 %v1069, %v1068
  %v1078 = vpack.c.bf16 %v1071, %v1070
  %v1079 = vpack.c.bf16 %v1073, %v1072
  %v1080 = vpack.c.bf16 %v1075, %v1074
  %v1086 = vunpack.c.l.b16 %v1076
  %v1087 = vunpack.c.h.b16 %v1076
  %v1088 = vunpack.c.l.b16 %v1077
  %v1089 = vunpack.c.h.b16 %v1077
  %v1090 = vunpack.c.l.b16 %v1078
  %v1091 = vunpack.c.h.b16 %v1078
  %v1092 = vunpack.c.l.b16 %v1079
  %v1093 = vunpack.c.h.b16 %v1079
  %v1094 = vunpack.c.l.b16 %v1080
  %v1095 = vunpack.c.h.b16 %v1080
  %v1096 = vpack.c.b16 %v1086, %v1086
  %v1097 = vpack.c.b16 %v1087, %v1087
  %v1098 = vpack.c.b16 %v1088, %v1088
  %v1099 = vpack.c.b16 %v1089, %v1089
  %v1100 = vpack.c.b16 %v1090, %v1090
  %v1101 = vpack.c.b16 %v1091, %v1091
  %v1102 = vpack.c.b16 %v1092, %v1092
  %v1103 = vpack.c.b16 %v1093, %v1093
  %v1104 = vpack.c.b16 %v1094, %v1094
  %v1105 = vpack.c.b16 %v1095, %v1095
  %1116 = vst [vmem:[%s3] sm:$0xf] %v1096
  %1117 = vst [vmem:[%s3 + $0x4] sm:$0xf] %v1097
  %1118 = vst [vmem:[%s3 + $0x8] sm:$0xf] %v1098
  %1119 = vst [vmem:[%s3 + $0xc] sm:$0xf] %v1099
  %1120 = vst [vmem:[%s3 + $0x10] sm:$0xf] %v1100
  %1121 = vst [vmem:[%s3 + $0x14] sm:$0xf] %v1101
  %1122 = vst [vmem:[%s3 + $0x18] sm:$0xf] %v1102
  %1123 = vst [vmem:[%s3 + $0x1c] sm:$0xf] %v1103
  %1124 = vst [vmem:[%s3 + $0x20] sm:$0xf] %v1104
  %1125 = vst [vmem:[%s3 + $0x24] sm:$0xf] %v1105
  // Predicated region
  $region14: #{encoder_forward.7} parent=0 // pred_check
    _
  $region15: #{encoder_forward.7} parent=0 // pred_check_branch
    %1127 = sbr.rel (0) target = $region17
  $region16: #{encoder_forward.7} parent=0 // pred_region
    _
  $region17: #{encoder_forward.7} parent=0 // pred_fallthru
    _
  // Predicated region
  $region18: #{encoder_forward.7} parent=0 // pred_check
    _
  $region19: #{encoder_forward.7} parent=0 // pred_check_branch
    %1129 = sbr.rel (0) target = $region21
  $region20: #{encoder_forward.7} parent=0 // pred_region
    _
  $region21: #{encoder_forward.7} parent=0 // pred_fallthru
    _

// kernel: encoder_forward.9
$region0: #{encoder_forward.9}
  #allocation0 [shape = 'u32[]', space=smem, size = 0x4, offset = 0x4, fixed_abs, tag = 'smem constant byte address 0x4 - core index']
  #allocation1 [shape = 'u32[144,128]{1,0:T(1,128)}', space=vmem, size = 0x12000, scoped, tag = 'internal scratch']
  %s0 = inlined_call_operand.vmem [shape: bf16[2,1024], index: 0, kind: input, shape index: {}]
  %s1 = inlined_call_operand.vmem [shape: bf16[1024,64], index: 1, kind: input, shape index: {}]
  %s2 = inlined_call_operand.vmem [shape: f32[1,64], index: 2, kind: input, shape index: {}]
  %s3 = inlined_call_operand.vmem [shape: f32[2,32], index: 3, kind: input, shape index: {}]
  %s4 = inlined_call_operand.hbm [shape: f32[2,32], index: 4, kind: output, shape index: {0}]
  %s5 = inlined_call_operand.hbm [shape: f32[1,1], index: 5, kind: output, shape index: {1}]
  %6 = xla_tuple %s4, %s5
  %s7 = sld [smem:[#allocation0]]
  $region34: #{encoder_forward.9} parent=0
    _
  %s9 = ssub.s32 1, %s7
  %s10 = scalar_select 0, %s9, %s7
  $region1: #{encoder_forward.9} parent=0
    #allocation2 [shape = 'u8[1024]{0}', space=vmem, size = 0x400, scoped, tag = 'output window, operand 0, single buffered']
    #allocation3 [shape = 's32[1]{0}', space=sflag, size = 0x4, scoped, tag = 'scoped memory for encoder_forward.9']
    #allocation4 [shape = 's32[1]{0}', space=sflag, size = 0x4, scoped, tag = 'scoped memory for encoder_forward.9']
    #allocation5 [shape = 'u8[512]{0}', space=smem, size = 0x200, scoped, tag = 'output window, operand 1, single buffered']
    %11 = vsyncpa [#allocation3], 0
    %12 = vsyncpa [#allocation4], 0
    // Predicated region
    $region2: #{encoder_forward.9} parent=1 // pred_check
      _
    $region3: #{encoder_forward.9} parent=1 // pred_check_branch
      %14 = sbr.rel (0) target = $region5
    $region4: #{encoder_forward.9} parent=1 // pred_region
      _
    $region5: #{encoder_forward.9} parent=1 // pred_fallthru
      _
    // Predicated region
    $region6: #{encoder_forward.9} parent=1 // pred_check
      _
    $region7: #{encoder_forward.9} parent=1 // pred_check_branch
      %16 = sbr.rel (0) target = $region9
    $region8: #{encoder_forward.9} parent=1 // pred_region
      _
    $region9: #{encoder_forward.9} parent=1 // pred_fallthru
      _
    // Predicated region
    $region10: #{encoder_forward.9} parent=1 // pred_check
      _
    $region11: #{encoder_forward.9} parent=1 // pred_check_branch
      %18 = sbr.rel (0) target = $region13
    $region12: #{encoder_forward.9} parent=1 // pred_region
      _
    $region13: #{encoder_forward.9} parent=1 // pred_fallthru
      _
    // Predicated region
    $region14: #{encoder_forward.9} parent=1 // pred_check
      _
    $region15: #{encoder_forward.9} parent=1 // pred_check_branch
      %20 = sbr.rel (0) target = $region17
    $region16: #{encoder_forward.9} parent=1 // pred_region
      _
    $region17: #{encoder_forward.9} parent=1 // pred_fallthru
      _
    %v22 = vld [vmem:[%s0] sm:$0xff]
    %v23 = vld [vmem:[%s1] sm:$0xf]
    %v24 = vld [vmem:[%s1 + $0x4] sm:$0xf]
    %v25 = vld [vmem:[%s1 + $0x8] sm:$0xf]
    %v26 = vld [vmem:[%s1 + $0xc] sm:$0xf]
    %v27 = vld [vmem:[%s1 + $0x10] sm:$0xf]
    %v28 = vld [vmem:[%s1 + $0x14] sm:$0xf]
    %v29 = vld [vmem:[%s1 + $0x18] sm:$0xf]
    %v30 = vld [vmem:[%s1 + $0x1c] sm:$0xf]
    %v31 = vld [vmem:[%s1 + $0x20] sm:$0xf]
    %v32 = vld [vmem:[%s1 + $0x24] sm:$0xf]
    %v33 = vld [vmem:[%s1 + $0x28] sm:$0xf]
    %v34 = vld [vmem:[%s1 + $0x2c] sm:$0xf]
    %v35 = vld [vmem:[%s1 + $0x30] sm:$0xf]
    %v36 = vld [vmem:[%s1 + $0x34] sm:$0xf]
    %v37 = vld [vmem:[%s1 + $0x38] sm:$0xf]
    %v38 = vld [vmem:[%s1 + $0x3c] sm:$0xf]
    %v39 = vld [vmem:[%s1 + $0x40] sm:$0xf]
    %v40 = vld [vmem:[%s1 + $0x44] sm:$0xf]
    %v41 = vld [vmem:[%s1 + $0x48] sm:$0xf]
    %v42 = vld [vmem:[%s1 + $0x4c] sm:$0xf]
    %v43 = vld [vmem:[%s1 + $0x50] sm:$0xf]
    %v44 = vld [vmem:[%s1 + $0x54] sm:$0xf]
    %v45 = vld [vmem:[%s1 + $0x58] sm:$0xf]
    %v46 = vld [vmem:[%s1 + $0x5c] sm:$0xf]
    %v47 = vld [vmem:[%s1 + $0x60] sm:$0xf]
    %v48 = vld [vmem:[%s1 + $0x64] sm:$0xf]
    %v49 = vld [vmem:[%s1 + $0x68] sm:$0xf]
    %v50 = vld [vmem:[%s1 + $0x6c] sm:$0xf]
    %v51 = vld [vmem:[%s1 + $0x70] sm:$0xf]
    %v52 = vld [vmem:[%s1 + $0x74] sm:$0xf]
    %v53 = vld [vmem:[%s1 + $0x78] sm:$0xf]
    %v54 = vld [vmem:[%s1 + $0x7c] sm:$0xf]
    %v55 = vld [vmem:[%s1 + $0x80] sm:$0xf]
    %v56 = vld [vmem:[%s1 + $0x84] sm:$0xf]
    %v57 = vld [vmem:[%s1 + $0x88] sm:$0xf]
    %v58 = vld [vmem:[%s1 + $0x8c] sm:$0xf]
    %v59 = vld [vmem:[%s1 + $0x90] sm:$0xf]
    %v60 = vld [vmem:[%s1 + $0x94] sm:$0xf]
    %v61 = vld [vmem:[%s1 + $0x98] sm:$0xf]
    %v62 = vld [vmem:[%s1 + $0x9c] sm:$0xf]
    %v63 = vld [vmem:[%s1 + $0xa0] sm:$0xf]
    %v64 = vld [vmem:[%s1 + $0xa4] sm:$0xf]
    %v65 = vld [vmem:[%s1 + $0xa8] sm:$0xf]
    %v66 = vld [vmem:[%s1 + $0xac] sm:$0xf]
    %v67 = vld [vmem:[%s1 + $0xb0] sm:$0xf]
    %v68 = vld [vmem:[%s1 + $0xb4] sm:$0xf]
    %v69 = vld [vmem:[%s1 + $0xb8] sm:$0xf]
    %v70 = vld [vmem:[%s1 + $0xbc] sm:$0xf]
    %v71 = vld [vmem:[%s1 + $0xc0] sm:$0xf]
    %v72 = vld [vmem:[%s1 + $0xc4] sm:$0xf]
    %v73 = vld [vmem:[%s1 + $0xc8] sm:$0xf]
    %v74 = vld [vmem:[%s1 + $0xcc] sm:$0xf]
    %v75 = vld [vmem:[%s1 + $0xd0] sm:$0xf]
    %v76 = vld [vmem:[%s1 + $0xd4] sm:$0xf]
    %v77 = vld [vmem:[%s1 + $0xd8] sm:$0xf]
    %v78 = vld [vmem:[%s1 + $0xdc] sm:$0xf]
    %v79 = vld [vmem:[%s1 + $0xe0] sm:$0xf]
    %v80 = vld [vmem:[%s1 + $0xe4] sm:$0xf]
    %v81 = vld [vmem:[%s1 + $0xe8] sm:$0xf]
    %v82 = vld [vmem:[%s1 + $0xec] sm:$0xf]
    %v83 = vld [vmem:[%s1 + $0xf0] sm:$0xf]
    %v84 = vld [vmem:[%s1 + $0xf4] sm:$0xf]
    %v85 = vld [vmem:[%s1 + $0xf8] sm:$0xf]
    %v86 = vld [vmem:[%s1 + $0xfc] sm:$0xf]
    %v87 = vld [vmem:[%s1 + $0x100] sm:$0xf]
    %v88 = vld [vmem:[%s1 + $0x104] sm:$0xf]
    %v89 = vld [vmem:[%s1 + $0x108] sm:$0xf]
    %v90 = vld [vmem:[%s1 + $0x10c] sm:$0xf]
    %v91 = vld [vmem:[%s1 + $0x110] sm:$0xf]
    %v92 = vld [vmem:[%s1 + $0x114] sm:$0xf]
    %v93 = vld [vmem:[%s1 + $0x118] sm:$0xf]
    %v94 = vld [vmem:[%s1 + $0x11c] sm:$0xf]
    %v95 = vld [vmem:[%s1 + $0x120] sm:$0xf]
    %v96 = vld [vmem:[%s1 + $0x124] sm:$0xf]
    %v97 = vld [vmem:[%s1 + $0x128] sm:$0xf]
    %v98 = vld [vmem:[%s1 + $0x12c] sm:$0xf]
    %v99 = vld [vmem:[%s1 + $0x130] sm:$0xf]
    %v100 = vld [vmem:[%s1 + $0x134] sm:$0xf]
    %v101 = vld [vmem:[%s1 + $0x138] sm:$0xf]
    %v102 = vld [vmem:[%s1 + $0x13c] sm:$0xf]
    %v103 = vld [vmem:[%s1 + $0x140] sm:$0xf]
    %v104 = vld [vmem:[%s1 + $0x144] sm:$0xf]
    %v105 = vld [vmem:[%s1 + $0x148] sm:$0xf]
    %v106 = vld [vmem:[%s1 + $0x14c] sm:$0xf]
    %v107 = vld [vmem:[%s1 + $0x150] sm:$0xf]
    %v108 = vld [vmem:[%s1 + $0x154] sm:$0xf]
    %v109 = vld [vmem:[%s1 + $0x158] sm:$0xf]
    %v110 = vld [vmem:[%s1 + $0x15c] sm:$0xf]
    %v111 = vld [vmem:[%s1 + $0x160] sm:$0xf]
    %v112 = vld [vmem:[%s1 + $0x164] sm:$0xf]
    %v113 = vld [vmem:[%s1 + $0x168] sm:$0xf]
    %v114 = vld [vmem:[%s1 + $0x16c] sm:$0xf]
    %v115 = vld [vmem:[%s1 + $0x170] sm:$0xf]
    %v116 = vld [vmem:[%s1 + $0x174] sm:$0xf]
    %v117 = vld [vmem:[%s1 + $0x178] sm:$0xf]
    %v118 = vld [vmem:[%s1 + $0x17c] sm:$0xf]
    %v119 = vld [vmem:[%s1 + $0x180] sm:$0xf]
    %v120 = vld [vmem:[%s1 + $0x184] sm:$0xf]
    %v121 = vld [vmem:[%s1 + $0x188] sm:$0xf]
    %v122 = vld [vmem:[%s1 + $0x18c] sm:$0xf]
    %v123 = vld [vmem:[%s1 + $0x190] sm:$0xf]
    %v124 = vld [vmem:[%s1 + $0x194] sm:$0xf]
    %v125 = vld [vmem:[%s1 + $0x198] sm:$0xf]
    %v126 = vld [vmem:[%s1 + $0x19c] sm:$0xf]
    %v127 = vld [vmem:[%s1 + $0x1a0] sm:$0xf]
    %v128 = vld [vmem:[%s1 + $0x1a4] sm:$0xf]
    %v129 = vld [vmem:[%s1 + $0x1a8] sm:$0xf]
    %v130 = vld [vmem:[%s1 + $0x1ac] sm:$0xf]
    %v131 = vld [vmem:[%s1 + $0x1b0] sm:$0xf]
    %v132 = vld [vmem:[%s1 + $0x1b4] sm:$0xf]
    %v133 = vld [vmem:[%s1 + $0x1b8] sm:$0xf]
    %v134 = vld [vmem:[%s1 + $0x1bc] sm:$0xf]
    %v135 = vld [vmem:[%s1 + $0x1c0] sm:$0xf]
    %v136 = vld [vmem:[%s1 + $0x1c4] sm:$0xf]
    %v137 = vld [vmem:[%s1 + $0x1c8] sm:$0xf]
    %v138 = vld [vmem:[%s1 + $0x1cc] sm:$0xf]
    %v139 = vld [vmem:[%s1 + $0x1d0] sm:$0xf]
    %v140 = vld [vmem:[%s1 + $0x1d4] sm:$0xf]
    %v141 = vld [vmem:[%s1 + $0x1d8] sm:$0xf]
    %v142 = vld [vmem:[%s1 + $0x1dc] sm:$0xf]
    %v143 = vld [vmem:[%s1 + $0x1e0] sm:$0xf]
    %v144 = vld [vmem:[%s1 + $0x1e4] sm:$0xf]
    %v145 = vld [vmem:[%s1 + $0x1e8] sm:$0xf]
    %v146 = vld [vmem:[%s1 + $0x1ec] sm:$0xf]
    %v147 = vld [vmem:[%s1 + $0x1f0] sm:$0xf]
    %v148 = vld [vmem:[%s1 + $0x1f4] sm:$0xf]
    %v149 = vld [vmem:[%s1 + $0x1f8] sm:$0xf]
    %v150 = vld [vmem:[%s1 + $0x1fc] sm:$0xf]
    %v151 = vld [vmem:[%s2] sm:$0x1]
    %v153 = vlaneseq
    %v154 = vshrl.u32 %v153, 7
    %v155 = vsub.s32 0, %v154
    %v156 = vrot.slane %v151, %v155
    %v159 = vcombine.high %v22, %v22
    %v161 = vunpack.c.l.s4 1966171168
    %v162 = vunpack.c.0.s8 %v161
    %v163 = vlaneseq
    %v164 = vshrl.u32 %v163, 7
    %v165 = vsub.s32 %v162, %v164
    %v166 = vrot.slane %v22, %v165
    %v168 = vunpack.c.l.s4 1966171168
    %v169 = vunpack.c.0.s8 %v168
    %v170 = vlaneseq
    %v171 = vshrl.u32 %v170, 7
    %v172 = vsub.s32 %v169, %v171
    %v173 = vrot.slane %v159, %v172
    %v174 = vcombine.high %v166, %v166
    %v175 = vcombine.high %v173, %v173
    %v177 = vunpack.c.l.s4 1966171168
    %v178 = vunpack.c.0.s8 %v177
    %v179 = vlaneseq
    %v180 = vshrl.u32 %v179, 7
    %v181 = vsub.s32 %v178, %v180
    %v182 = vrot.slane %v166, %v181
    %v184 = vunpack.c.l.s4 1966171168
    %v185 = vunpack.c.0.s8 %v184
    %v186 = vlaneseq
    %v187 = vshrl.u32 %v186, 7
    %v188 = vsub.s32 %v185, %v187
    %v189 = vrot.slane %v173, %v188
    %v191 = vunpack.c.l.s4 1966171168
    %v192 = vunpack.c.0.s8 %v191
    %v193 = vlaneseq
    %v194 = vshrl.u32 %v193, 7
    %v195 = vsub.s32 %v192, %v194
    %v196 = vrot.slane %v174, %v195
    %v198 = vunpack.c.l.s4 1966171168
    %v199 = vunpack.c.0.s8 %v198
    %v200 = vlaneseq
    %v201 = vshrl.u32 %v200, 7
    %v202 = vsub.s32 %v199, %v201
    %v203 = vrot.slane %v175, %v202
    %v204 = vcombine.high %v182, %v182
    %v205 = vcombine.high %v189, %v189
    %v206 = vcombine.high %v196, %v196
    %v207 = vcombine.high %v203, %v203
    %v344 = vunpack.c.l.b16 %v23
    %v345 = vunpack.c.l.b16 %v24
    %v346 = vunpack.c.l.b16 %v25
    %v347 = vunpack.c.l.b16 %v26
    %v348 = vunpack.c.l.b16 %v27
    %v349 = vunpack.c.l.b16 %v28
    %v350 = vunpack.c.l.b16 %v29
    %v351 = vunpack.c.l.b16 %v30
    %v352 = vunpack.c.l.b16 %v31
    %v353 = vunpack.c.l.b16 %v32
    %v354 = vunpack.c.l.b16 %v33
    %v355 = vunpack.c.l.b16 %v34
    %v356 = vunpack.c.l.b16 %v35
    %v357 = vunpack.c.l.b16 %v36
    %v358 = vunpack.c.l.b16 %v37
    %v359 = vunpack.c.l.b16 %v38
    %v360 = vunpack.c.l.b16 %v39
    %v361 = vunpack.c.l.b16 %v40
    %v362 = vunpack.c.l.b16 %v41
    %v363 = vunpack.c.l.b16 %v42
    %v364 = vunpack.c.l.b16 %v43
    %v365 = vunpack.c.l.b16 %v44
    %v366 = vunpack.c.l.b16 %v45
    %v367 = vunpack.c.l.b16 %v46
    %v368 = vunpack.c.l.b16 %v47
    %v369 = vunpack.c.l.b16 %v48
    %v370 = vunpack.c.l.b16 %v49
    %v371 = vunpack.c.l.b16 %v50
    %v372 = vunpack.c.l.b16 %v51
    %v373 = vunpack.c.l.b16 %v52
    %v374 = vunpack.c.l.b16 %v53
    %v375 = vunpack.c.l.b16 %v54
    %v376 = vunpack.c.l.b16 %v55
    %v377 = vunpack.c.l.b16 %v56
    %v378 = vunpack.c.l.b16 %v57
    %v379 = vunpack.c.l.b16 %v58
    %v380 = vunpack.c.l.b16 %v59
    %v381 = vunpack.c.l.b16 %v60
    %v382 = vunpack.c.l.b16 %v61
    %v383 = vunpack.c.l.b16 %v62
    %v384 = vunpack.c.l.b16 %v63
    %v385 = vunpack.c.l.b16 %v64
    %v386 = vunpack.c.l.b16 %v65
    %v387 = vunpack.c.l.b16 %v66
    %v388 = vunpack.c.l.b16 %v67
    %v389 = vunpack.c.l.b16 %v68
    %v390 = vunpack.c.l.b16 %v69
    %v391 = vunpack.c.l.b16 %v70
    %v392 = vunpack.c.l.b16 %v71
    %v393 = vunpack.c.l.b16 %v72
    %v394 = vunpack.c.l.b16 %v73
    %v395 = vunpack.c.l.b16 %v74
    %v396 = vunpack.c.l.b16 %v75
    %v397 = vunpack.c.l.b16 %v76
    %v398 = vunpack.c.l.b16 %v77
    %v399 = vunpack.c.l.b16 %v78
    %v400 = vunpack.c.l.b16 %v79
    %v401 = vunpack.c.l.b16 %v80
    %v402 = vunpack.c.l.b16 %v81
    %v403 = vunpack.c.l.b16 %v82
    %v404 = vunpack.c.l.b16 %v83
    %v405 = vunpack.c.l.b16 %v84
    %v406 = vunpack.c.l.b16 %v85
    %v407 = vunpack.c.l.b16 %v86
    %v408 = vunpack.c.l.b16 %v87
    %v409 = vunpack.c.l.b16 %v88
    %v410 = vunpack.c.l.b16 %v89
    %v411 = vunpack.c.l.b16 %v90
    %v412 = vunpack.c.l.b16 %v91
    %v413 = vunpack.c.l.b16 %v92
    %v414 = vunpack.c.l.b16 %v93
    %v415 = vunpack.c.l.b16 %v94
    %v416 = vunpack.c.l.b16 %v95
    %v417 = vunpack.c.l.b16 %v96
    %v418 = vunpack.c.l.b16 %v97
    %v419 = vunpack.c.l.b16 %v98
    %v420 = vunpack.c.l.b16 %v99
    %v421 = vunpack.c.l.b16 %v100
    %v422 = vunpack.c.l.b16 %v101
    %v423 = vunpack.c.l.b16 %v102
    %v424 = vunpack.c.l.b16 %v103
    %v425 = vunpack.c.l.b16 %v104
    %v426 = vunpack.c.l.b16 %v105
    %v427 = vunpack.c.l.b16 %v106
    %v428 = vunpack.c.l.b16 %v107
    %v429 = vunpack.c.l.b16 %v108
    %v430 = vunpack.c.l.b16 %v109
    %v431 = vunpack.c.l.b16 %v110
    %v432 = vunpack.c.l.b16 %v111
    %v433 = vunpack.c.l.b16 %v112
    %v434 = vunpack.c.l.b16 %v113
    %v435 = vunpack.c.l.b16 %v114
    %v436 = vunpack.c.l.b16 %v115
    %v437 = vunpack.c.l.b16 %v116
    %v438 = vunpack.c.l.b16 %v117
    %v439 = vunpack.c.l.b16 %v118
    %v440 = vunpack.c.l.b16 %v119
    %v441 = vunpack.c.l.b16 %v120
    %v442 = vunpack.c.l.b16 %v121
    %v443 = vunpack.c.l.b16 %v122
    %v444 = vunpack.c.l.b16 %v123
    %v445 = vunpack.c.l.b16 %v124
    %v446 = vunpack.c.l.b16 %v125
    %v447 = vunpack.c.l.b16 %v126
    %v448 = vunpack.c.l.b16 %v127
    %v449 = vunpack.c.l.b16 %v128
    %v450 = vunpack.c.l.b16 %v129
    %v451 = vunpack.c.l.b16 %v130
    %v452 = vunpack.c.l.b16 %v131
    %v453 = vunpack.c.l.b16 %v132
    %v454 = vunpack.c.l.b16 %v133
    %v455 = vunpack.c.l.b16 %v134
    %v456 = vunpack.c.l.b16 %v135
    %v457 = vunpack.c.l.b16 %v136
    %v458 = vunpack.c.l.b16 %v137
    %v459 = vunpack.c.l.b16 %v138
    %v460 = vunpack.c.l.b16 %v139
    %v461 = vunpack.c.l.b16 %v140
    %v462 = vunpack.c.l.b16 %v141
    %v463 = vunpack.c.l.b16 %v142
    %v464 = vunpack.c.l.b16 %v143
    %v465 = vunpack.c.l.b16 %v144
    %v466 = vunpack.c.l.b16 %v145
    %v467 = vunpack.c.l.b16 %v146
    %v468 = vunpack.c.l.b16 %v147
    %v469 = vunpack.c.l.b16 %v148
    %v470 = vunpack.c.l.b16 %v149
    %v471 = vunpack.c.l.b16 %v150
    %v472 = vpack.c.b16 %v345, %v344
    %v473 = vpack.c.b16 %v347, %v346
    %v474 = vpack.c.b16 %v349, %v348
    %v475 = vpack.c.b16 %v351, %v350
    %v476 = vpack.c.b16 %v353, %v352
    %v477 = vpack.c.b16 %v355, %v354
    %v478 = vpack.c.b16 %v357, %v356
    %v479 = vpack.c.b16 %v359, %v358
    %v480 = vpack.c.b16 %v361, %v360
    %v481 = vpack.c.b16 %v363, %v362
    %v482 = vpack.c.b16 %v365, %v364
    %v483 = vpack.c.b16 %v367, %v366
    %v484 = vpack.c.b16 %v369, %v368
    %v485 = vpack.c.b16 %v371, %v370
    %v486 = vpack.c.b16 %v373, %v372
    %v487 = vpack.c.b16 %v375, %v374
    %v488 = vpack.c.b16 %v377, %v376
    %v489 = vpack.c.b16 %v379, %v378
    %v490 = vpack.c.b16 %v381, %v380
    %v491 = vpack.c.b16 %v383, %v382
    %v492 = vpack.c.b16 %v385, %v384
    %v493 = vpack.c.b16 %v387, %v386
    %v494 = vpack.c.b16 %v389, %v388
    %v495 = vpack.c.b16 %v391, %v390
    %v496 = vpack.c.b16 %v393, %v392
    %v497 = vpack.c.b16 %v395, %v394
    %v498 = vpack.c.b16 %v397, %v396
    %v499 = vpack.c.b16 %v399, %v398
    %v500 = vpack.c.b16 %v401, %v400
    %v501 = vpack.c.b16 %v403, %v402
    %v502 = vpack.c.b16 %v405, %v404
    %v503 = vpack.c.b16 %v407, %v406
    %v504 = vpack.c.b16 %v409, %v408
    %v505 = vpack.c.b16 %v411, %v410
    %v506 = vpack.c.b16 %v413, %v412
    %v507 = vpack.c.b16 %v415, %v414
    %v508 = vpack.c.b16 %v417, %v416
    %v509 = vpack.c.b16 %v419, %v418
    %v510 = vpack.c.b16 %v421, %v420
    %v511 = vpack.c.b16 %v423, %v422
    %v512 = vpack.c.b16 %v425, %v424
    %v513 = vpack.c.b16 %v427, %v426
    %v514 = vpack.c.b16 %v429, %v428
    %v515 = vpack.c.b16 %v431, %v430
    %v516 = vpack.c.b16 %v433, %v432
    %v517 = vpack.c.b16 %v435, %v434
    %v518 = vpack.c.b16 %v437, %v436
    %v519 = vpack.c.b16 %v439, %v438
    %v520 = vpack.c.b16 %v441, %v440
    %v521 = vpack.c.b16 %v443, %v442
    %v522 = vpack.c.b16 %v445, %v444
    %v523 = vpack.c.b16 %v447, %v446
    %v524 = vpack.c.b16 %v449, %v448
    %v525 = vpack.c.b16 %v451, %v450
    %v526 = vpack.c.b16 %v453, %v452
    %v527 = vpack.c.b16 %v455, %v454
    %v528 = vpack.c.b16 %v457, %v456
    %v529 = vpack.c.b16 %v459, %v458
    %v530 = vpack.c.b16 %v461, %v460
    %v531 = vpack.c.b16 %v463, %v462
    %v532 = vpack.c.b16 %v465, %v464
    %v533 = vpack.c.b16 %v467, %v466
    %v534 = vpack.c.b16 %v469, %v468
    %v535 = vpack.c.b16 %v471, %v470
    %600 = vmatprep.subr.bf16.mxu0 0
    %601 = vmatpush1.bf16.msra.mxu0 %v479
    %602 = vmatprep.subr.bf16.mxu0 0
    %603 = vmatpush1.bf16.msra.mxu0 %v478
    %604 = vmatprep.subr.bf16.mxu0 0
    %605 = vmatpush1.bf16.msra.mxu0 %v477
    %606 = vmatprep.subr.bf16.mxu0 0
    %607 = vmatpush1.bf16.msra.mxu0 %v476
    %608 = vmatprep.subr.bf16.mxu0 0
    %609 = vmatpush1.bf16.msra.mxu0 %v475
    %610 = vmatprep.subr.bf16.mxu0 0
    %611 = vmatpush1.bf16.msra.mxu0 %v474
    %612 = vmatprep.subr.bf16.mxu0 0
    %613 = vmatpush1.bf16.msra.mxu0 %v473
    %614 = vmatprep.subr.bf16.mxu0 0
    %615 = vmatpush1.bf16.msra.mxu0 %v472
    %616 = vmatprep.subr.bf16.mxu0 0
    %617 = vmatpush2.bf16.msra.mxu0 %v487
    %618 = vmatprep.subr.bf16.mxu0 0
    %619 = vmatpush2.bf16.msra.mxu0 %v486
    %620 = vmatprep.subr.bf16.mxu0 0
    %621 = vmatpush2.bf16.msra.mxu0 %v485
    %622 = vmatprep.subr.bf16.mxu0 0
    %623 = vmatpush2.bf16.msra.mxu0 %v484
    %624 = vmatprep.subr.bf16.mxu0 0
    %625 = vmatpush2.bf16.msra.mxu0 %v483
    %626 = vmatprep.subr.bf16.mxu0 0
    %627 = vmatpush2.bf16.msra.mxu0 %v482
    %628 = vmatprep.subr.bf16.mxu0 0
    %629 = vmatpush2.bf16.msra.mxu0 %v481
    %630 = vmatprep.subr.bf16.mxu0 0
    %631 = vmatpush2.bf16.msra.mxu0 %v480
    %632 = vmatprep.mubr.bf16.mxu0 %v196
    %633 = vmatmul.mubr.bf16.gmra.mxu0 %v182
    %v634 = vpop.f32.mrf.mxu0
    %v635 = vadd.f32 %v156, %v634
    %v636 = vpop.f32.mrf.mxu0
    %v637 = vpop.f32.mrf.mxu0
    %v638 = vpop.f32.mrf.mxu0
    %639 = vdwg.mxu0
    %640 = vmatprep.subr.bf16.mxu0 0
    %641 = vmatpush1.bf16.msra.mxu0 %v495
    %642 = vmatprep.subr.bf16.mxu0 0
    %643 = vmatpush1.bf16.msra.mxu0 %v494
    %644 = vmatprep.subr.bf16.mxu0 0
    %645 = vmatpush1.bf16.msra.mxu0 %v493
    %646 = vmatprep.subr.bf16.mxu0 0
    %647 = vmatpush1.bf16.msra.mxu0 %v492
    %648 = vmatprep.subr.bf16.mxu0 0
    %649 = vmatpush1.bf16.msra.mxu0 %v491
    %650 = vmatprep.subr.bf16.mxu0 0
    %651 = vmatpush1.bf16.msra.mxu0 %v490
    %652 = vmatprep.subr.bf16.mxu0 0
    %653 = vmatpush1.bf16.msra.mxu0 %v489
    %654 = vmatprep.subr.bf16.mxu0 0
    %655 = vmatpush1.bf16.msra.mxu0 %v488
    %656 = vmatprep.subr.bf16.mxu0 0
    %657 = vmatpush2.bf16.msra.mxu0 %v503
    %658 = vmatprep.subr.bf16.mxu0 0
    %659 = vmatpush2.bf16.msra.mxu0 %v502
    %660 = vmatprep.subr.bf16.mxu0 0
    %661 = vmatpush2.bf16.msra.mxu0 %v501
    %662 = vmatprep.subr.bf16.mxu0 0
    %663 = vmatpush2.bf16.msra.mxu0 %v500
    %664 = vmatprep.subr.bf16.mxu0 0
    %665 = vmatpush2.bf16.msra.mxu0 %v499
    %666 = vmatprep.subr.bf16.mxu0 0
    %667 = vmatpush2.bf16.msra.mxu0 %v498
    %668 = vmatprep.subr.bf16.mxu0 0
    %669 = vmatpush2.bf16.msra.mxu0 %v497
    %670 = vmatprep.subr.bf16.mxu0 0
    %671 = vmatpush2.bf16.msra.mxu0 %v496
    %672 = vmatprep.mubr.bf16.mxu0 %v206
    %673 = vmatmul.mubr.bf16.gmra.mxu0 %v204
    %v674 = vpop.f32.mrf.mxu0
    %v675 = vadd.f32 %v635, %v674
    %v676 = vpop.f32.mrf.mxu0
    %v677 = vpop.f32.mrf.mxu0
    %v678 = vpop.f32.mrf.mxu0
    %679 = vdwg.mxu0
    %680 = vmatprep.subr.bf16.mxu0 0
    %681 = vmatpush1.bf16.msra.mxu0 %v511
    %682 = vmatprep.subr.bf16.mxu0 0
    %683 = vmatpush1.bf16.msra.mxu0 %v510
    %684 = vmatprep.subr.bf16.mxu0 0
    %685 = vmatpush1.bf16.msra.mxu0 %v509
    %686 = vmatprep.subr.bf16.mxu0 0
    %687 = vmatpush1.bf16.msra.mxu0 %v508
    %688 = vmatprep.subr.bf16.mxu0 0
    %689 = vmatpush1.bf16.msra.mxu0 %v507
    %690 = vmatprep.subr.bf16.mxu0 0
    %691 = vmatpush1.bf16.msra.mxu0 %v506
    %692 = vmatprep.subr.bf16.mxu0 0
    %693 = vmatpush1.bf16.msra.mxu0 %v505
    %694 = vmatprep.subr.bf16.mxu0 0
    %695 = vmatpush1.bf16.msra.mxu0 %v504
    %696 = vmatprep.subr.bf16.mxu0 0
    %697 = vmatpush2.bf16.msra.mxu0 %v519
    %698 = vmatprep.subr.bf16.mxu0 0
    %699 = vmatpush2.bf16.msra.mxu0 %v518
    %700 = vmatprep.subr.bf16.mxu0 0
    %701 = vmatpush2.bf16.msra.mxu0 %v517
    %702 = vmatprep.subr.bf16.mxu0 0
    %703 = vmatpush2.bf16.msra.mxu0 %v516
    %704 = vmatprep.subr.bf16.mxu0 0
    %705 = vmatpush2.bf16.msra.mxu0 %v515
    %706 = vmatprep.subr.bf16.mxu0 0
    %707 = vmatpush2.bf16.msra.mxu0 %v514
    %708 = vmatprep.subr.bf16.mxu0 0
    %709 = vmatpush2.bf16.msra.mxu0 %v513
    %710 = vmatprep.subr.bf16.mxu0 0
    %711 = vmatpush2.bf16.msra.mxu0 %v512
    %712 = vmatprep.mubr.bf16.mxu0 %v203
    %713 = vmatmul.mubr.bf16.gmra.mxu0 %v189
    %v714 = vpop.f32.mrf.mxu0
    %v715 = vadd.f32 %v675, %v714
    %v716 = vpop.f32.mrf.mxu0
    %v717 = vpop.f32.mrf.mxu0
    %v718 = vpop.f32.mrf.mxu0
    %719 = vdwg.mxu0
    %720 = vmatprep.subr.bf16.mxu0 0
    %721 = vmatpush1.bf16.msra.mxu0 %v527
    %722 = vmatprep.subr.bf16.mxu0 0
    %723 = vmatpush1.bf16.msra.mxu0 %v526
    %724 = vmatprep.subr.bf16.mxu0 0
    %725 = vmatpush1.bf16.msra.mxu0 %v525
    %726 = vmatprep.subr.bf16.mxu0 0
    %727 = vmatpush1.bf16.msra.mxu0 %v524
    %728 = vmatprep.subr.bf16.mxu0 0
    %729 = vmatpush1.bf16.msra.mxu0 %v523
    %730 = vmatprep.subr.bf16.mxu0 0
    %731 = vmatpush1.bf16.msra.mxu0 %v522
    %732 = vmatprep.subr.bf16.mxu0 0
    %733 = vmatpush1.bf16.msra.mxu0 %v521
    %734 = vmatprep.subr.bf16.mxu0 0
    %735 = vmatpush1.bf16.msra.mxu0 %v520
    %736 = vmatprep.subr.bf16.mxu0 0
    %737 = vmatpush2.bf16.msra.mxu0 %v535
    %738 = vmatprep.subr.bf16.mxu0 0
    %739 = vmatpush2.bf16.msra.mxu0 %v534
    %740 = vmatprep.subr.bf16.mxu0 0
    %741 = vmatpush2.bf16.msra.mxu0 %v533
    %742 = vmatprep.subr.bf16.mxu0 0
    %743 = vmatpush2.bf16.msra.mxu0 %v532
    %744 = vmatprep.subr.bf16.mxu0 0
    %745 = vmatpush2.bf16.msra.mxu0 %v531
    %746 = vmatprep.subr.bf16.mxu0 0
    %747 = vmatpush2.bf16.msra.mxu0 %v530
    %748 = vmatprep.subr.bf16.mxu0 0
    %749 = vmatpush2.bf16.msra.mxu0 %v529
    %750 = vmatprep.subr.bf16.mxu0 0
    %751 = vmatpush2.bf16.msra.mxu0 %v528
    %752 = vmatprep.mubr.bf16.mxu0 %v207
    %753 = vmatmul.mubr.bf16.gmra.mxu0 %v205
    %v754 = vpop.f32.mrf.mxu0
    %v755 = vadd.f32 %v715, %v754
    %v756 = vpop.f32.mrf.mxu0
    %v757 = vpop.f32.mrf.mxu0
    %v758 = vpop.f32.mrf.mxu0
    %759 = vdwg.mxu0
    %vm760 = vcmp.ge.f32.partialorder %v755, 0.0
    %v761 = vmul.f32 %v755, 0.01
    %v762 = vsel %vm760, %v755, %v761
    %v763 = vmul.f32 %v762, 0.5
    %v764 = vmul.f32 %v763, 1.442695
    %v765 = vpow.pop %v764
    %v766 = vld [vmem:[%s3] sm:$0x3]
    %768 = vrot.lane.b32.xlu0 %v765, 96
    %v769 = vpop.permute.xlu0 %768
    %v771 = vmul.f32 %v766, %v769
    %v772 = vadd.f32 %v771, %v762
    %vm773 = vcmask 254976
    %774 = vst.msk [vmem:[#allocation2] sm:$0x3] %vm773, %v772
    %v775 = vmul.f32 %v762, 1.442695
    %v776 = vpow.pop %v775
    %v777 = vmul.f32 %v762, %v762
    %779 = vrot.lane.b32.xlu0 %v777, 32
    %v780 = vpop.permute.xlu0 %779
    %v782 = vadd.f32 %v776, %v780
    %v783 = vsub.f32 %v782, 1.0
    %v784 = vsub.f32 %v783, %v762
    %786 = vrot.lane.b32.xlu0 %v784, 96
    %v787 = vpop.permute.xlu0 %786
    %v789 = vsel %vm773, %v787, 0.0
    %790 = vadd.xlane.f32.xlu0 %v789
    %v791 = vpop.xlane.xlu0 %790
    %v792 = vrot.slane %v791, 4
    %v793 = vadd.f32 %v791, %v792
    %v794 = vrot.slane %v793, 2
    %v795 = vadd.f32 %v793, %v794
    %v796 = vrot.slane %v795, 1
    %v797 = vadd.f32 %v795, %v796
    %s798 = vtos %v797
    %s799 = smul.f32 %s798, 0.5
    %s800 = scalar_lea.smem [#allocation5], 0
    %801 = sst [smem:[%s800]] %s799
    // Predicated region
    $region18: #{encoder_forward.9} parent=1 // pred_check
      _
    $region19: #{encoder_forward.9} parent=1 // pred_check_branch
      %803 = sbr.rel (0) target = $region21
    $region20: #{encoder_forward.9} parent=1 // pred_region
      %s805 = ssub.s32 32, 32
      %806 = vsyncadd [#allocation3], %s805
      %s808 = sshll.u32 [#allocation2], 4
      %s809 = int_to_ptr.vmem [resolvable:$true] %s808
      %811 = dma.vmem_to_hbm [thread:$0]  %s809, 32, %s4, [#allocation3]
    $region21: #{encoder_forward.9} parent=1 // pred_fallthru
      _
    // Predicated region
    $region22: #{encoder_forward.9} parent=1 // pred_check
      _
    $region23: #{encoder_forward.9} parent=1 // pred_check_branch
      %813 = sbr.rel (0) target = $region25
    $region24: #{encoder_forward.9} parent=1 // pred_region
      %s815 = ssub.s32 16, 16
      %816 = vsyncadd [#allocation4], %s815
      %819 = dma.smem_to_hbm [#allocation5], 16, %s5, [#allocation4]
    $region25: #{encoder_forward.9} parent=1 // pred_fallthru
      _
    // Predicated region
    $region26: #{encoder_forward.9} parent=1 // pred_check
      _
    $region27: #{encoder_forward.9} parent=1 // pred_check_branch
      %821 = sbr.rel (0) target = $region29
    $region28: #{encoder_forward.9} parent=1 // pred_region
      %822 = dma.done [#allocation3], 32
    $region29: #{encoder_forward.9} parent=1 // pred_fallthru
      _
    // Predicated region
    $region30: #{encoder_forward.9} parent=1 // pred_check
      _
    $region31: #{encoder_forward.9} parent=1 // pred_check_branch
      %824 = sbr.rel (0) target = $region33
    $region32: #{encoder_forward.9} parent=1 // pred_region
      %825 = dma.done [#allocation4], 16
    $region33: #{encoder_forward.9} parent=1 // pred_fallthru
      _
    %826 = sfence
    %827 = vsyncpa [#allocation3], 1
    %828 = vsyncpa [#allocation4], 1

// kernel: encoder_forward.8
$region0: #{encoder_forward.8}
  #allocation0 [shape = 'u32[]', space=smem, size = 0x4, offset = 0x4, fixed_abs, tag = 'smem constant byte address 0x4 - core index']
  #allocation1 [shape = 'u32[144,128]{1,0:T(1,128)}', space=vmem, size = 0x12000, scoped, tag = 'internal scratch']
  %s0 = inlined_call_operand.vmem [shape: bf16[16,2048], index: 0, kind: input, shape index: {}]
  %s1 = inlined_call_operand.vmem [shape: bf16[2048,256], index: 1, kind: input, shape index: {}]
  %s2 = inlined_call_operand.vmem [shape: f32[1,256], index: 2, kind: input, shape index: {}]
  %s3 = inlined_call_operand.vmem [shape: bf16[16,256], index: 3, kind: output, shape index: {}]
  %s4 = sld [smem:[#allocation0]]
  $region22: #{encoder_forward.8} parent=0
    _
  %s6 = ssub.s32 1, %s4
  %s7 = scalar_select 0, %s6, %s4
  // Predicated region
  $region2: #{encoder_forward.8} parent=0 // pred_check
    _
  $region3: #{encoder_forward.8} parent=0 // pred_check_branch
    %9 = sbr.rel (0) target = $region5
  $region4: #{encoder_forward.8} parent=0 // pred_region
    _
  $region5: #{encoder_forward.8} parent=0 // pred_fallthru
    _
  // Predicated region
  $region6: #{encoder_forward.8} parent=0 // pred_check
    _
  $region7: #{encoder_forward.8} parent=0 // pred_check_branch
    %11 = sbr.rel (0) target = $region9
  $region8: #{encoder_forward.8} parent=0 // pred_region
    _
  $region9: #{encoder_forward.8} parent=0 // pred_fallthru
    _
  // Predicated region
  $region10: #{encoder_forward.8} parent=0 // pred_check
    _
  $region11: #{encoder_forward.8} parent=0 // pred_check_branch
    %13 = sbr.rel (0) target = $region13
  $region12: #{encoder_forward.8} parent=0 // pred_region
    _
  $region13: #{encoder_forward.8} parent=0 // pred_fallthru
    _
  %v14 = vld [vmem:[%s0] sm:$0xff]
  %v15 = vld [vmem:[%s0 + $0x8] sm:$0xff]
  %v16 = vld [vmem:[%s0 + $0x10] sm:$0xff]
  %v17 = vld [vmem:[%s0 + $0x18] sm:$0xff]
  %v18 = vld [vmem:[%s0 + $0x20] sm:$0xff]
  %v19 = vld [vmem:[%s0 + $0x28] sm:$0xff]
  %v20 = vld [vmem:[%s0 + $0x30] sm:$0xff]
  %v21 = vld [vmem:[%s0 + $0x38] sm:$0xff]
  %v22 = vld [vmem:[%s0 + $0x40] sm:$0xff]
  %v23 = vld [vmem:[%s0 + $0x48] sm:$0xff]
  %v24 = vld [vmem:[%s0 + $0x50] sm:$0xff]
  %v25 = vld [vmem:[%s0 + $0x58] sm:$0xff]
  %v26 = vld [vmem:[%s0 + $0x60] sm:$0xff]
  %v27 = vld [vmem:[%s0 + $0x68] sm:$0xff]
  %v28 = vld [vmem:[%s0 + $0x70] sm:$0xff]
  %v29 = vld [vmem:[%s0 + $0x78] sm:$0xff]
  %v30 = vld [vmem:[%s1] sm:$0xff]
  %v31 = vld [vmem:[%s1 + $0x8] sm:$0xff]
  %v32 = vld [vmem:[%s1 + $0x10] sm:$0xff]
  %v33 = vld [vmem:[%s1 + $0x18] sm:$0xff]
  %v34 = vld [vmem:[%s1 + $0x20] sm:$0xff]
  %v35 = vld [vmem:[%s1 + $0x28] sm:$0xff]
  %v36 = vld [vmem:[%s1 + $0x30] sm:$0xff]
  %v37 = vld [vmem:[%s1 + $0x38] sm:$0xff]
  %v38 = vld [vmem:[%s1 + $0x40] sm:$0xff]
  %v39 = vld [vmem:[%s1 + $0x48] sm:$0xff]
  %v40 = vld [vmem:[%s1 + $0x50] sm:$0xff]
  %v41 = vld [vmem:[%s1 + $0x58] sm:$0xff]
  %v42 = vld [vmem:[%s1 + $0x60] sm:$0xff]
  %v43 = vld [vmem:[%s1 + $0x68] sm:$0xff]
  %v44 = vld [vmem:[%s1 + $0x70] sm:$0xff]
  %v45 = vld [vmem:[%s1 + $0x78] sm:$0xff]
  %v46 = vld [vmem:[%s1 + $0x80] sm:$0xff]
  %v47 = vld [vmem:[%s1 + $0x88] sm:$0xff]
  %v48 = vld [vmem:[%s1 + $0x90] sm:$0xff]
  %v49 = vld [vmem:[%s1 + $0x98] sm:$0xff]
  %v50 = vld [vmem:[%s1 + $0xa0] sm:$0xff]
  %v51 = vld [vmem:[%s1 + $0xa8] sm:$0xff]
  %v52 = vld [vmem:[%s1 + $0xb0] sm:$0xff]
  %v53 = vld [vmem:[%s1 + $0xb8] sm:$0xff]
  %v54 = vld [vmem:[%s1 + $0xc0] sm:$0xff]
  %v55 = vld [vmem:[%s1 + $0xc8] sm:$0xff]
  %v56 = vld [vmem:[%s1 + $0xd0] sm:$0xff]
  %v57 = vld [vmem:[%s1 + $0xd8] sm:$0xff]
  %v58 = vld [vmem:[%s1 + $0xe0] sm:$0xff]
  %v59 = vld [vmem:[%s1 + $0xe8] sm:$0xff]
  %v60 = vld [vmem:[%s1 + $0xf0] sm:$0xff]
  %v61 = vld [vmem:[%s1 + $0xf8] sm:$0xff]
  %v62 = vld [vmem:[%s1 + $0x100] sm:$0xff]
  %v63 = vld [vmem:[%s1 + $0x108] sm:$0xff]
  %v64 = vld [vmem:[%s1 + $0x110] sm:$0xff]
  %v65 = vld [vmem:[%s1 + $0x118] sm:$0xff]
  %v66 = vld [vmem:[%s1 + $0x120] sm:$0xff]
  %v67 = vld [vmem:[%s1 + $0x128] sm:$0xff]
  %v68 = vld [vmem:[%s1 + $0x130] sm:$0xff]
  %v69 = vld [vmem:[%s1 + $0x138] sm:$0xff]
  %v70 = vld [vmem:[%s1 + $0x140] sm:$0xff]
  %v71 = vld [vmem:[%s1 + $0x148] sm:$0xff]
  %v72 = vld [vmem:[%s1 + $0x150] sm:$0xff]
  %v73 = vld [vmem:[%s1 + $0x158] sm:$0xff]
  %v74 = vld [vmem:[%s1 + $0x160] sm:$0xff]
  %v75 = vld [vmem:[%s1 + $0x168] sm:$0xff]
  %v76 = vld [vmem:[%s1 + $0x170] sm:$0xff]
  %v77 = vld [vmem:[%s1 + $0x178] sm:$0xff]
  %v78 = vld [vmem:[%s1 + $0x180] sm:$0xff]
  %v79 = vld [vmem:[%s1 + $0x188] sm:$0xff]
  %v80 = vld [vmem:[%s1 + $0x190] sm:$0xff]
  %v81 = vld [vmem:[%s1 + $0x198] sm:$0xff]
  %v82 = vld [vmem:[%s1 + $0x1a0] sm:$0xff]
  %v83 = vld [vmem:[%s1 + $0x1a8] sm:$0xff]
  %v84 = vld [vmem:[%s1 + $0x1b0] sm:$0xff]
  %v85 = vld [vmem:[%s1 + $0x1b8] sm:$0xff]
  %v86 = vld [vmem:[%s1 + $0x1c0] sm:$0xff]
  %v87 = vld [vmem:[%s1 + $0x1c8] sm:$0xff]
  %v88 = vld [vmem:[%s1 + $0x1d0] sm:$0xff]
  %v89 = vld [vmem:[%s1 + $0x1d8] sm:$0xff]
  %v90 = vld [vmem:[%s1 + $0x1e0] sm:$0xff]
  %v91 = vld [vmem:[%s1 + $0x1e8] sm:$0xff]
  %v92 = vld [vmem:[%s1 + $0x1f0] sm:$0xff]
  %v93 = vld [vmem:[%s1 + $0x1f8] sm:$0xff]
  %v94 = vld [vmem:[%s1 + $0x200] sm:$0xff]
  %v95 = vld [vmem:[%s1 + $0x208] sm:$0xff]
  %v96 = vld [vmem:[%s1 + $0x210] sm:$0xff]
  %v97 = vld [vmem:[%s1 + $0x218] sm:$0xff]
  %v98 = vld [vmem:[%s1 + $0x220] sm:$0xff]
  %v99 = vld [vmem:[%s1 + $0x228] sm:$0xff]
  %v100 = vld [vmem:[%s1 + $0x230] sm:$0xff]
  %v101 = vld [vmem:[%s1 + $0x238] sm:$0xff]
  %v102 = vld [vmem:[%s1 + $0x240] sm:$0xff]
  %v103 = vld [vmem:[%s1 + $0x248] sm:$0xff]
  %v104 = vld [vmem:[%s1 + $0x250] sm:$0xff]
  %v105 = vld [vmem:[%s1 + $0x258] sm:$0xff]
  %v106 = vld [vmem:[%s1 + $0x260] sm:$0xff]
  %v107 = vld [vmem:[%s1 + $0x268] sm:$0xff]
  %v108 = vld [vmem:[%s1 + $0x270] sm:$0xff]
  %v109 = vld [vmem:[%s1 + $0x278] sm:$0xff]
  %v110 = vld [vmem:[%s1 + $0x280] sm:$0xff]
  %v111 = vld [vmem:[%s1 + $0x288] sm:$0xff]
  %v112 = vld [vmem:[%s1 + $0x290] sm:$0xff]
  %v113 = vld [vmem:[%s1 + $0x298] sm:$0xff]
  %v114 = vld [vmem:[%s1 + $0x2a0] sm:$0xff]
  %v115 = vld [vmem:[%s1 + $0x2a8] sm:$0xff]
  %v116 = vld [vmem:[%s1 + $0x2b0] sm:$0xff]
  %v117 = vld [vmem:[%s1 + $0x2b8] sm:$0xff]
  %v118 = vld [vmem:[%s1 + $0x2c0] sm:$0xff]
  %v119 = vld [vmem:[%s1 + $0x2c8] sm:$0xff]
  %v120 = vld [vmem:[%s1 + $0x2d0] sm:$0xff]
  %v121 = vld [vmem:[%s1 + $0x2d8] sm:$0xff]
  %v122 = vld [vmem:[%s1 + $0x2e0] sm:$0xff]
  %v123 = vld [vmem:[%s1 + $0x2e8] sm:$0xff]
  %v124 = vld [vmem:[%s1 + $0x2f0] sm:$0xff]
  %v125 = vld [vmem:[%s1 + $0x2f8] sm:$0xff]
  %v126 = vld [vmem:[%s1 + $0x300] sm:$0xff]
  %v127 = vld [vmem:[%s1 + $0x308] sm:$0xff]
  %v128 = vld [vmem:[%s1 + $0x310] sm:$0xff]
  %v129 = vld [vmem:[%s1 + $0x318] sm:$0xff]
  %v130 = vld [vmem:[%s1 + $0x320] sm:$0xff]
  %v131 = vld [vmem:[%s1 + $0x328] sm:$0xff]
  %v132 = vld [vmem:[%s1 + $0x330] sm:$0xff]
  %v133 = vld [vmem:[%s1 + $0x338] sm:$0xff]
  %v134 = vld [vmem:[%s1 + $0x340] sm:$0xff]
  %v135 = vld [vmem:[%s1 + $0x348] sm:$0xff]
  %v136 = vld [vmem:[%s1 + $0x350] sm:$0xff]
  %v137 = vld [vmem:[%s1 + $0x358] sm:$0xff]
  %v138 = vld [vmem:[%s1 + $0x360] sm:$0xff]
  %v139 = vld [vmem:[%s1 + $0x368] sm:$0xff]
  %v140 = vld [vmem:[%s1 + $0x370] sm:$0xff]
  %v141 = vld [vmem:[%s1 + $0x378] sm:$0xff]
  %v142 = vld [vmem:[%s1 + $0x380] sm:$0xff]
  %v143 = vld [vmem:[%s1 + $0x388] sm:$0xff]
  %v144 = vld [vmem:[%s1 + $0x390] sm:$0xff]
  %v145 = vld [vmem:[%s1 + $0x398] sm:$0xff]
  %v146 = vld [vmem:[%s1 + $0x3a0] sm:$0xff]
  %v147 = vld [vmem:[%s1 + $0x3a8] sm:$0xff]
  %v148 = vld [vmem:[%s1 + $0x3b0] sm:$0xff]
  %v149 = vld [vmem:[%s1 + $0x3b8] sm:$0xff]
  %v150 = vld [vmem:[%s1 + $0x3c0] sm:$0xff]
  %v151 = vld [vmem:[%s1 + $0x3c8] sm:$0xff]
  %v152 = vld [vmem:[%s1 + $0x3d0] sm:$0xff]
  %v153 = vld [vmem:[%s1 + $0x3d8] sm:$0xff]
  %v154 = vld [vmem:[%s1 + $0x3e0] sm:$0xff]
  %v155 = vld [vmem:[%s1 + $0x3e8] sm:$0xff]
  %v156 = vld [vmem:[%s1 + $0x3f0] sm:$0xff]
  %v157 = vld [vmem:[%s1 + $0x3f8] sm:$0xff]
  %v158 = vld [vmem:[%s1 + $0x400] sm:$0xff]
  %v159 = vld [vmem:[%s1 + $0x408] sm:$0xff]
  %v160 = vld [vmem:[%s1 + $0x410] sm:$0xff]
  %v161 = vld [vmem:[%s1 + $0x418] sm:$0xff]
  %v162 = vld [vmem:[%s1 + $0x420] sm:$0xff]
  %v163 = vld [vmem:[%s1 + $0x428] sm:$0xff]
  %v164 = vld [vmem:[%s1 + $0x430] sm:$0xff]
  %v165 = vld [vmem:[%s1 + $0x438] sm:$0xff]
  %v166 = vld [vmem:[%s1 + $0x440] sm:$0xff]
  %v167 = vld [vmem:[%s1 + $0x448] sm:$0xff]
  %v168 = vld [vmem:[%s1 + $0x450] sm:$0xff]
  %v169 = vld [vmem:[%s1 + $0x458] sm:$0xff]
  %v170 = vld [vmem:[%s1 + $0x460] sm:$0xff]
  %v171 = vld [vmem:[%s1 + $0x468] sm:$0xff]
  %v172 = vld [vmem:[%s1 + $0x470] sm:$0xff]
  %v173 = vld [vmem:[%s1 + $0x478] sm:$0xff]
  %v174 = vld [vmem:[%s1 + $0x480] sm:$0xff]
  %v175 = vld [vmem:[%s1 + $0x488] sm:$0xff]
  %v176 = vld [vmem:[%s1 + $0x490] sm:$0xff]
  %v177 = vld [vmem:[%s1 + $0x498] sm:$0xff]
  %v178 = vld [vmem:[%s1 + $0x4a0] sm:$0xff]
  %v179 = vld [vmem:[%s1 + $0x4a8] sm:$0xff]
  %v180 = vld [vmem:[%s1 + $0x4b0] sm:$0xff]
  %v181 = vld [vmem:[%s1 + $0x4b8] sm:$0xff]
  %v182 = vld [vmem:[%s1 + $0x4c0] sm:$0xff]
  %v183 = vld [vmem:[%s1 + $0x4c8] sm:$0xff]
  %v184 = vld [vmem:[%s1 + $0x4d0] sm:$0xff]
  %v185 = vld [vmem:[%s1 + $0x4d8] sm:$0xff]
  %v186 = vld [vmem:[%s1 + $0x4e0] sm:$0xff]
  %v187 = vld [vmem:[%s1 + $0x4e8] sm:$0xff]
  %v188 = vld [vmem:[%s1 + $0x4f0] sm:$0xff]
  %v189 = vld [vmem:[%s1 + $0x4f8] sm:$0xff]
  %v190 = vld [vmem:[%s1 + $0x500] sm:$0xff]
  %v191 = vld [vmem:[%s1 + $0x508] sm:$0xff]
  %v192 = vld [vmem:[%s1 + $0x510] sm:$0xff]
  %v193 = vld [vmem:[%s1 + $0x518] sm:$0xff]
  %v194 = vld [vmem:[%s1 + $0x520] sm:$0xff]
  %v195 = vld [vmem:[%s1 + $0x528] sm:$0xff]
  %v196 = vld [vmem:[%s1 + $0x530] sm:$0xff]
  %v197 = vld [vmem:[%s1 + $0x538] sm:$0xff]
  %v198 = vld [vmem:[%s1 + $0x540] sm:$0xff]
  %v199 = vld [vmem:[%s1 + $0x548] sm:$0xff]
  %v200 = vld [vmem:[%s1 + $0x550] sm:$0xff]
  %v201 = vld [vmem:[%s1 + $0x558] sm:$0xff]
  %v202 = vld [vmem:[%s1 + $0x560] sm:$0xff]
  %v203 = vld [vmem:[%s1 + $0x568] sm:$0xff]
  %v204 = vld [vmem:[%s1 + $0x570] sm:$0xff]
  %v205 = vld [vmem:[%s1 + $0x578] sm:$0xff]
  %v206 = vld [vmem:[%s1 + $0x580] sm:$0xff]
  %v207 = vld [vmem:[%s1 + $0x588] sm:$0xff]
  %v208 = vld [vmem:[%s1 + $0x590] sm:$0xff]
  %v209 = vld [vmem:[%s1 + $0x598] sm:$0xff]
  %v210 = vld [vmem:[%s1 + $0x5a0] sm:$0xff]
  %v211 = vld [vmem:[%s1 + $0x5a8] sm:$0xff]
  %v212 = vld [vmem:[%s1 + $0x5b0] sm:$0xff]
  %v213 = vld [vmem:[%s1 + $0x5b8] sm:$0xff]
  %v214 = vld [vmem:[%s1 + $0x5c0] sm:$0xff]
  %v215 = vld [vmem:[%s1 + $0x5c8] sm:$0xff]
  %v216 = vld [vmem:[%s1 + $0x5d0] sm:$0xff]
  %v217 = vld [vmem:[%s1 + $0x5d8] sm:$0xff]
  %v218 = vld [vmem:[%s1 + $0x5e0] sm:$0xff]
  %v219 = vld [vmem:[%s1 + $0x5e8] sm:$0xff]
  %v220 = vld [vmem:[%s1 + $0x5f0] sm:$0xff]
  %v221 = vld [vmem:[%s1 + $0x5f8] sm:$0xff]
  %v222 = vld [vmem:[%s1 + $0x600] sm:$0xff]
  %v223 = vld [vmem:[%s1 + $0x608] sm:$0xff]
  %v224 = vld [vmem:[%s1 + $0x610] sm:$0xff]
  %v225 = vld [vmem:[%s1 + $0x618] sm:$0xff]
  %v226 = vld [vmem:[%s1 + $0x620] sm:$0xff]
  %v227 = vld [vmem:[%s1 + $0x628] sm:$0xff]
  %v228 = vld [vmem:[%s1 + $0x630] sm:$0xff]
  %v229 = vld [vmem:[%s1 + $0x638] sm:$0xff]
  %v230 = vld [vmem:[%s1 + $0x640] sm:$0xff]
  %v231 = vld [vmem:[%s1 + $0x648] sm:$0xff]
  %v232 = vld [vmem:[%s1 + $0x650] sm:$0xff]
  %v233 = vld [vmem:[%s1 + $0x658] sm:$0xff]
  %v234 = vld [vmem:[%s1 + $0x660] sm:$0xff]
  %v235 = vld [vmem:[%s1 + $0x668] sm:$0xff]
  %v236 = vld [vmem:[%s1 + $0x670] sm:$0xff]
  %v237 = vld [vmem:[%s1 + $0x678] sm:$0xff]
  %v238 = vld [vmem:[%s1 + $0x680] sm:$0xff]
  %v239 = vld [vmem:[%s1 + $0x688] sm:$0xff]
  %v240 = vld [vmem:[%s1 + $0x690] sm:$0xff]
  %v241 = vld [vmem:[%s1 + $0x698] sm:$0xff]
  %v242 = vld [vmem:[%s1 + $0x6a0] sm:$0xff]
  %v243 = vld [vmem:[%s1 + $0x6a8] sm:$0xff]
  %v244 = vld [vmem:[%s1 + $0x6b0] sm:$0xff]
  %v245 = vld [vmem:[%s1 + $0x6b8] sm:$0xff]
  %v246 = vld [vmem:[%s1 + $0x6c0] sm:$0xff]
  %v247 = vld [vmem:[%s1 + $0x6c8] sm:$0xff]
  %v248 = vld [vmem:[%s1 + $0x6d0] sm:$0xff]
  %v249 = vld [vmem:[%s1 + $0x6d8] sm:$0xff]
  %v250 = vld [vmem:[%s1 + $0x6e0] sm:$0xff]
  %v251 = vld [vmem:[%s1 + $0x6e8] sm:$0xff]
  %v252 = vld [vmem:[%s1 + $0x6f0] sm:$0xff]
  %v253 = vld [vmem:[%s1 + $0x6f8] sm:$0xff]
  %v254 = vld [vmem:[%s1 + $0x700] sm:$0xff]
  %v255 = vld [vmem:[%s1 + $0x708] sm:$0xff]
  %v256 = vld [vmem:[%s1 + $0x710] sm:$0xff]
  %v257 = vld [vmem:[%s1 + $0x718] sm:$0xff]
  %v258 = vld [vmem:[%s1 + $0x720] sm:$0xff]
  %v259 = vld [vmem:[%s1 + $0x728] sm:$0xff]
  %v260 = vld [vmem:[%s1 + $0x730] sm:$0xff]
  %v261 = vld [vmem:[%s1 + $0x738] sm:$0xff]
  %v262 = vld [vmem:[%s1 + $0x740] sm:$0xff]
  %v263 = vld [vmem:[%s1 + $0x748] sm:$0xff]
  %v264 = vld [vmem:[%s1 + $0x750] sm:$0xff]
  %v265 = vld [vmem:[%s1 + $0x758] sm:$0xff]
  %v266 = vld [vmem:[%s1 + $0x760] sm:$0xff]
  %v267 = vld [vmem:[%s1 + $0x768] sm:$0xff]
  %v268 = vld [vmem:[%s1 + $0x770] sm:$0xff]
  %v269 = vld [vmem:[%s1 + $0x778] sm:$0xff]
  %v270 = vld [vmem:[%s1 + $0x780] sm:$0xff]
  %v271 = vld [vmem:[%s1 + $0x788] sm:$0xff]
  %v272 = vld [vmem:[%s1 + $0x790] sm:$0xff]
  %v273 = vld [vmem:[%s1 + $0x798] sm:$0xff]
  %v274 = vld [vmem:[%s1 + $0x7a0] sm:$0xff]
  %v275 = vld [vmem:[%s1 + $0x7a8] sm:$0xff]
  %v276 = vld [vmem:[%s1 + $0x7b0] sm:$0xff]
  %v277 = vld [vmem:[%s1 + $0x7b8] sm:$0xff]
  %v278 = vld [vmem:[%s1 + $0x7c0] sm:$0xff]
  %v279 = vld [vmem:[%s1 + $0x7c8] sm:$0xff]
  %v280 = vld [vmem:[%s1 + $0x7d0] sm:$0xff]
  %v281 = vld [vmem:[%s1 + $0x7d8] sm:$0xff]
  %v282 = vld [vmem:[%s1 + $0x7e0] sm:$0xff]
  %v283 = vld [vmem:[%s1 + $0x7e8] sm:$0xff]
  %v284 = vld [vmem:[%s1 + $0x7f0] sm:$0xff]
  %v285 = vld [vmem:[%s1 + $0x7f8] sm:$0xff]
  %v286 = vld [vmem:[%s2] sm:$0x3]
  %v288 = vlaneseq
  %v289 = vshrl.u32 %v288, 7
  %v290 = vsub.s32 0, %v289
  %v291 = vrot.slane %v286, %v290
  %v292 = vlaneseq
  %v293 = vshrl.u32 %v292, 7
  %v294 = vsub.s32 1, %v293
  %v295 = vrot.slane %v286, %v294
  %v314 = vunpack.c.l.b16 %v14
  %v315 = vunpack.c.h.b16 %v14
  %v316 = vunpack.c.l.b16 %v15
  %v317 = vunpack.c.h.b16 %v15
  %v318 = vunpack.c.l.b16 %v16
  %v319 = vunpack.c.h.b16 %v16
  %v320 = vunpack.c.l.b16 %v17
  %v321 = vunpack.c.h.b16 %v17
  %v322 = vunpack.c.l.b16 %v18
  %v323 = vunpack.c.h.b16 %v18
  %v324 = vunpack.c.l.b16 %v19
  %v325 = vunpack.c.h.b16 %v19
  %v326 = vunpack.c.l.b16 %v20
  %v327 = vunpack.c.h.b16 %v20
  %v328 = vunpack.c.l.b16 %v21
  %v329 = vunpack.c.h.b16 %v21
  %v330 = vunpack.c.l.b16 %v22
  %v331 = vunpack.c.h.b16 %v22
  %v332 = vunpack.c.l.b16 %v23
  %v333 = vunpack.c.h.b16 %v23
  %v334 = vunpack.c.l.b16 %v24
  %v335 = vunpack.c.h.b16 %v24
  %v336 = vunpack.c.l.b16 %v25
  %v337 = vunpack.c.h.b16 %v25
  %v338 = vunpack.c.l.b16 %v26
  %v339 = vunpack.c.h.b16 %v26
  %v340 = vunpack.c.l.b16 %v27
  %v341 = vunpack.c.h.b16 %v27
  %v342 = vunpack.c.l.b16 %v28
  %v343 = vunpack.c.h.b16 %v28
  %v344 = vunpack.c.l.b16 %v29
  %v345 = vunpack.c.h.b16 %v29
  %v346 = vpack.c.b16 %v330, %v314
  %v347 = vpack.c.b16 %v331, %v315
  %v348 = vpack.c.b16 %v332, %v316
  %v349 = vpack.c.b16 %v333, %v317
  %v350 = vpack.c.b16 %v334, %v318
  %v351 = vpack.c.b16 %v335, %v319
  %v352 = vpack.c.b16 %v336, %v320
  %v353 = vpack.c.b16 %v337, %v321
  %v354 = vpack.c.b16 %v338, %v322
  %v355 = vpack.c.b16 %v339, %v323
  %v356 = vpack.c.b16 %v340, %v324
  %v357 = vpack.c.b16 %v341, %v325
  %v358 = vpack.c.b16 %v342, %v326
  %v359 = vpack.c.b16 %v343, %v327
  %v360 = vpack.c.b16 %v344, %v328
  %v361 = vpack.c.b16 %v345, %v329
  %v634 = vunpack.c.l.b16 %v30
  %v635 = vunpack.c.h.b16 %v30
  %v636 = vunpack.c.l.b16 %v31
  %v637 = vunpack.c.h.b16 %v31
  %v638 = vunpack.c.l.b16 %v32
  %v639 = vunpack.c.h.b16 %v32
  %v640 = vunpack.c.l.b16 %v33
  %v641 = vunpack.c.h.b16 %v33
  %v642 = vunpack.c.l.b16 %v34
  %v643 = vunpack.c.h.b16 %v34
  %v644 = vunpack.c.l.b16 %v35
  %v645 = vunpack.c.h.b16 %v35
  %v646 = vunpack.c.l.b16 %v36
  %v647 = vunpack.c.h.b16 %v36
  %v648 = vunpack.c.l.b16 %v37
  %v649 = vunpack.c.h.b16 %v37
  %v650 = vunpack.c.l.b16 %v38
  %v651 = vunpack.c.h.b16 %v38
  %v652 = vunpack.c.l.b16 %v39
  %v653 = vunpack.c.h.b16 %v39
  %v654 = vunpack.c.l.b16 %v40
  %v655 = vunpack.c.h.b16 %v40
  %v656 = vunpack.c.l.b16 %v41
  %v657 = vunpack.c.h.b16 %v41
  %v658 = vunpack.c.l.b16 %v42
  %v659 = vunpack.c.h.b16 %v42
  %v660 = vunpack.c.l.b16 %v43
  %v661 = vunpack.c.h.b16 %v43
  %v662 = vunpack.c.l.b16 %v44
  %v663 = vunpack.c.h.b16 %v44
  %v664 = vunpack.c.l.b16 %v45
  %v665 = vunpack.c.h.b16 %v45
  %v666 = vunpack.c.l.b16 %v46
  %v667 = vunpack.c.h.b16 %v46
  %v668 = vunpack.c.l.b16 %v47
  %v669 = vunpack.c.h.b16 %v47
  %v670 = vunpack.c.l.b16 %v48
  %v671 = vunpack.c.h.b16 %v48
  %v672 = vunpack.c.l.b16 %v49
  %v673 = vunpack.c.h.b16 %v49
  %v674 = vunpack.c.l.b16 %v50
  %v675 = vunpack.c.h.b16 %v50
  %v676 = vunpack.c.l.b16 %v51
  %v677 = vunpack.c.h.b16 %v51
  %v678 = vunpack.c.l.b16 %v52
  %v679 = vunpack.c.h.b16 %v52
  %v680 = vunpack.c.l.b16 %v53
  %v681 = vunpack.c.h.b16 %v53
  %v682 = vunpack.c.l.b16 %v54
  %v683 = vunpack.c.h.b16 %v54
  %v684 = vunpack.c.l.b16 %v55
  %v685 = vunpack.c.h.b16 %v55
  %v686 = vunpack.c.l.b16 %v56
  %v687 = vunpack.c.h.b16 %v56
  %v688 = vunpack.c.l.b16 %v57
  %v689 = vunpack.c.h.b16 %v57
  %v690 = vunpack.c.l.b16 %v58
  %v691 = vunpack.c.h.b16 %v58
  %v692 = vunpack.c.l.b16 %v59
  %v693 = vunpack.c.h.b16 %v59
  %v694 = vunpack.c.l.b16 %v60
  %v695 = vunpack.c.h.b16 %v60
  %v696 = vunpack.c.l.b16 %v61
  %v697 = vunpack.c.h.b16 %v61
  %v698 = vunpack.c.l.b16 %v62
  %v699 = vunpack.c.h.b16 %v62
  %v700 = vunpack.c.l.b16 %v63
  %v701 = vunpack.c.h.b16 %v63
  %v702 = vunpack.c.l.b16 %v64
  %v703 = vunpack.c.h.b16 %v64
  %v704 = vunpack.c.l.b16 %v65
  %v705 = vunpack.c.h.b16 %v65
  %v706 = vunpack.c.l.b16 %v66
  %v707 = vunpack.c.h.b16 %v66
  %v708 = vunpack.c.l.b16 %v67
  %v709 = vunpack.c.h.b16 %v67
  %v710 = vunpack.c.l.b16 %v68
  %v711 = vunpack.c.h.b16 %v68
  %v712 = vunpack.c.l.b16 %v69
  %v713 = vunpack.c.h.b16 %v69
  %v714 = vunpack.c.l.b16 %v70
  %v715 = vunpack.c.h.b16 %v70
  %v716 = vunpack.c.l.b16 %v71
  %v717 = vunpack.c.h.b16 %v71
  %v718 = vunpack.c.l.b16 %v72
  %v719 = vunpack.c.h.b16 %v72
  %v720 = vunpack.c.l.b16 %v73
  %v721 = vunpack.c.h.b16 %v73
  %v722 = vunpack.c.l.b16 %v74
  %v723 = vunpack.c.h.b16 %v74
  %v724 = vunpack.c.l.b16 %v75
  %v725 = vunpack.c.h.b16 %v75
  %v726 = vunpack.c.l.b16 %v76
  %v727 = vunpack.c.h.b16 %v76
  %v728 = vunpack.c.l.b16 %v77
  %v729 = vunpack.c.h.b16 %v77
  %v730 = vunpack.c.l.b16 %v78
  %v731 = vunpack.c.h.b16 %v78
  %v732 = vunpack.c.l.b16 %v79
  %v733 = vunpack.c.h.b16 %v79
  %v734 = vunpack.c.l.b16 %v80
  %v735 = vunpack.c.h.b16 %v80
  %v736 = vunpack.c.l.b16 %v81
  %v737 = vunpack.c.h.b16 %v81
  %v738 = vunpack.c.l.b16 %v82
  %v739 = vunpack.c.h.b16 %v82
  %v740 = vunpack.c.l.b16 %v83
  %v741 = vunpack.c.h.b16 %v83
  %v742 = vunpack.c.l.b16 %v84
  %v743 = vunpack.c.h.b16 %v84
  %v744 = vunpack.c.l.b16 %v85
  %v745 = vunpack.c.h.b16 %v85
  %v746 = vunpack.c.l.b16 %v86
  %v747 = vunpack.c.h.b16 %v86
  %v748 = vunpack.c.l.b16 %v87
  %v749 = vunpack.c.h.b16 %v87
  %v750 = vunpack.c.l.b16 %v88
  %v751 = vunpack.c.h.b16 %v88
  %v752 = vunpack.c.l.b16 %v89
  %v753 = vunpack.c.h.b16 %v89
  %v754 = vunpack.c.l.b16 %v90
  %v755 = vunpack.c.h.b16 %v90
  %v756 = vunpack.c.l.b16 %v91
  %v757 = vunpack.c.h.b16 %v91
  %v758 = vunpack.c.l.b16 %v92
  %v759 = vunpack.c.h.b16 %v92
  %v760 = vunpack.c.l.b16 %v93
  %v761 = vunpack.c.h.b16 %v93
  %v762 = vunpack.c.l.b16 %v94
  %v763 = vunpack.c.h.b16 %v94
  %v764 = vunpack.c.l.b16 %v95
  %v765 = vunpack.c.h.b16 %v95
  %v766 = vunpack.c.l.b16 %v96
  %v767 = vunpack.c.h.b16 %v96
  %v768 = vunpack.c.l.b16 %v97
  %v769 = vunpack.c.h.b16 %v97
  %v770 = vunpack.c.l.b16 %v98
  %v771 = vunpack.c.h.b16 %v98
  %v772 = vunpack.c.l.b16 %v99
  %v773 = vunpack.c.h.b16 %v99
  %v774 = vunpack.c.l.b16 %v100
  %v775 = vunpack.c.h.b16 %v100
  %v776 = vunpack.c.l.b16 %v101
  %v777 = vunpack.c.h.b16 %v101
  %v778 = vunpack.c.l.b16 %v102
  %v779 = vunpack.c.h.b16 %v102
  %v780 = vunpack.c.l.b16 %v103
  %v781 = vunpack.c.h.b16 %v103
  %v782 = vunpack.c.l.b16 %v104
  %v783 = vunpack.c.h.b16 %v104
  %v784 = vunpack.c.l.b16 %v105
  %v785 = vunpack.c.h.b16 %v105
  %v786 = vunpack.c.l.b16 %v106
  %v787 = vunpack.c.h.b16 %v106
  %v788 = vunpack.c.l.b16 %v107
  %v789 = vunpack.c.h.b16 %v107
  %v790 = vunpack.c.l.b16 %v108
  %v791 = vunpack.c.h.b16 %v108
  %v792 = vunpack.c.l.b16 %v109
  %v793 = vunpack.c.h.b16 %v109
  %v794 = vunpack.c.l.b16 %v110
  %v795 = vunpack.c.h.b16 %v110
  %v796 = vunpack.c.l.b16 %v111
  %v797 = vunpack.c.h.b16 %v111
  %v798 = vunpack.c.l.b16 %v112
  %v799 = vunpack.c.h.b16 %v112
  %v800 = vunpack.c.l.b16 %v113
  %v801 = vunpack.c.h.b16 %v113
  %v802 = vunpack.c.l.b16 %v114
  %v803 = vunpack.c.h.b16 %v114
  %v804 = vunpack.c.l.b16 %v115
  %v805 = vunpack.c.h.b16 %v115
  %v806 = vunpack.c.l.b16 %v116
  %v807 = vunpack.c.h.b16 %v116
  %v808 = vunpack.c.l.b16 %v117
  %v809 = vunpack.c.h.b16 %v117
  %v810 = vunpack.c.l.b16 %v118
  %v811 = vunpack.c.h.b16 %v118
  %v812 = vunpack.c.l.b16 %v119
  %v813 = vunpack.c.h.b16 %v119
  %v814 = vunpack.c.l.b16 %v120
  %v815 = vunpack.c.h.b16 %v120
  %v816 = vunpack.c.l.b16 %v121
  %v817 = vunpack.c.h.b16 %v121
  %v818 = vunpack.c.l.b16 %v122
  %v819 = vunpack.c.h.b16 %v122
  %v820 = vunpack.c.l.b16 %v123
  %v821 = vunpack.c.h.b16 %v123
  %v822 = vunpack.c.l.b16 %v124
  %v823 = vunpack.c.h.b16 %v124
  %v824 = vunpack.c.l.b16 %v125
  %v825 = vunpack.c.h.b16 %v125
  %v826 = vunpack.c.l.b16 %v126
  %v827 = vunpack.c.h.b16 %v126
  %v828 = vunpack.c.l.b16 %v127
  %v829 = vunpack.c.h.b16 %v127
  %v830 = vunpack.c.l.b16 %v128
  %v831 = vunpack.c.h.b16 %v128
  %v832 = vunpack.c.l.b16 %v129
  %v833 = vunpack.c.h.b16 %v129
  %v834 = vunpack.c.l.b16 %v130
  %v835 = vunpack.c.h.b16 %v130
  %v836 = vunpack.c.l.b16 %v131
  %v837 = vunpack.c.h.b16 %v131
  %v838 = vunpack.c.l.b16 %v132
  %v839 = vunpack.c.h.b16 %v132
  %v840 = vunpack.c.l.b16 %v133
  %v841 = vunpack.c.h.b16 %v133
  %v842 = vunpack.c.l.b16 %v134
  %v843 = vunpack.c.h.b16 %v134
  %v844 = vunpack.c.l.b16 %v135
  %v845 = vunpack.c.h.b16 %v135
  %v846 = vunpack.c.l.b16 %v136
  %v847 = vunpack.c.h.b16 %v136
  %v848 = vunpack.c.l.b16 %v137
  %v849 = vunpack.c.h.b16 %v137
  %v850 = vunpack.c.l.b16 %v138
  %v851 = vunpack.c.h.b16 %v138
  %v852 = vunpack.c.l.b16 %v139
  %v853 = vunpack.c.h.b16 %v139
  %v854 = vunpack.c.l.b16 %v140
  %v855 = vunpack.c.h.b16 %v140
  %v856 = vunpack.c.l.b16 %v141
  %v857 = vunpack.c.h.b16 %v141
  %v858 = vunpack.c.l.b16 %v142
  %v859 = vunpack.c.h.b16 %v142
  %v860 = vunpack.c.l.b16 %v143
  %v861 = vunpack.c.h.b16 %v143
  %v862 = vunpack.c.l.b16 %v144
  %v863 = vunpack.c.h.b16 %v144
  %v864 = vunpack.c.l.b16 %v145
  %v865 = vunpack.c.h.b16 %v145
  %v866 = vunpack.c.l.b16 %v146
  %v867 = vunpack.c.h.b16 %v146
  %v868 = vunpack.c.l.b16 %v147
  %v869 = vunpack.c.h.b16 %v147
  %v870 = vunpack.c.l.b16 %v148
  %v871 = vunpack.c.h.b16 %v148
  %v872 = vunpack.c.l.b16 %v149
  %v873 = vunpack.c.h.b16 %v149
  %v874 = vunpack.c.l.b16 %v150
  %v875 = vunpack.c.h.b16 %v150
  %v876 = vunpack.c.l.b16 %v151
  %v877 = vunpack.c.h.b16 %v151
  %v878 = vunpack.c.l.b16 %v152
  %v879 = vunpack.c.h.b16 %v152
  %v880 = vunpack.c.l.b16 %v153
  %v881 = vunpack.c.h.b16 %v153
  %v882 = vunpack.c.l.b16 %v154
  %v883 = vunpack.c.h.b16 %v154
  %v884 = vunpack.c.l.b16 %v155
  %v885 = vunpack.c.h.b16 %v155
  %v886 = vunpack.c.l.b16 %v156
  %v887 = vunpack.c.h.b16 %v156
  %v888 = vunpack.c.l.b16 %v157
  %v889 = vunpack.c.h.b16 %v157
  %v890 = vunpack.c.l.b16 %v158
  %v891 = vunpack.c.h.b16 %v158
  %v892 = vunpack.c.l.b16 %v159
  %v893 = vunpack.c.h.b16 %v159
  %v894 = vunpack.c.l.b16 %v160
  %v895 = vunpack.c.h.b16 %v160
  %v896 = vunpack.c.l.b16 %v161
  %v897 = vunpack.c.h.b16 %v161
  %v898 = vunpack.c.l.b16 %v162
  %v899 = vunpack.c.h.b16 %v162
  %v900 = vunpack.c.l.b16 %v163
  %v901 = vunpack.c.h.b16 %v163
  %v902 = vunpack.c.l.b16 %v164
  %v903 = vunpack.c.h.b16 %v164
  %v904 = vunpack.c.l.b16 %v165
  %v905 = vunpack.c.h.b16 %v165
  %v906 = vunpack.c.l.b16 %v166
  %v907 = vunpack.c.h.b16 %v166
  %v908 = vunpack.c.l.b16 %v167
  %v909 = vunpack.c.h.b16 %v167
  %v910 = vunpack.c.l.b16 %v168
  %v911 = vunpack.c.h.b16 %v168
  %v912 = vunpack.c.l.b16 %v169
  %v913 = vunpack.c.h.b16 %v169
  %v914 = vunpack.c.l.b16 %v170
  %v915 = vunpack.c.h.b16 %v170
  %v916 = vunpack.c.l.b16 %v171
  %v917 = vunpack.c.h.b16 %v171
  %v918 = vunpack.c.l.b16 %v172
  %v919 = vunpack.c.h.b16 %v172
  %v920 = vunpack.c.l.b16 %v173
  %v921 = vunpack.c.h.b16 %v173
  %v922 = vunpack.c.l.b16 %v174
  %v923 = vunpack.c.h.b16 %v174
  %v924 = vunpack.c.l.b16 %v175
  %v925 = vunpack.c.h.b16 %v175
  %v926 = vunpack.c.l.b16 %v176
  %v927 = vunpack.c.h.b16 %v176
  %v928 = vunpack.c.l.b16 %v177
  %v929 = vunpack.c.h.b16 %v177
  %v930 = vunpack.c.l.b16 %v178
  %v931 = vunpack.c.h.b16 %v178
  %v932 = vunpack.c.l.b16 %v179
  %v933 = vunpack.c.h.b16 %v179
  %v934 = vunpack.c.l.b16 %v180
  %v935 = vunpack.c.h.b16 %v180
  %v936 = vunpack.c.l.b16 %v181
  %v937 = vunpack.c.h.b16 %v181
  %v938 = vunpack.c.l.b16 %v182
  %v939 = vunpack.c.h.b16 %v182
  %v940 = vunpack.c.l.b16 %v183
  %v941 = vunpack.c.h.b16 %v183
  %v942 = vunpack.c.l.b16 %v184
  %v943 = vunpack.c.h.b16 %v184
  %v944 = vunpack.c.l.b16 %v185
  %v945 = vunpack.c.h.b16 %v185
  %v946 = vunpack.c.l.b16 %v186
  %v947 = vunpack.c.h.b16 %v186
  %v948 = vunpack.c.l.b16 %v187
  %v949 = vunpack.c.h.b16 %v187
  %v950 = vunpack.c.l.b16 %v188
  %v951 = vunpack.c.h.b16 %v188
  %v952 = vunpack.c.l.b16 %v189
  %v953 = vunpack.c.h.b16 %v189
  %v954 = vunpack.c.l.b16 %v190
  %v955 = vunpack.c.h.b16 %v190
  %v956 = vunpack.c.l.b16 %v191
  %v957 = vunpack.c.h.b16 %v191
  %v958 = vunpack.c.l.b16 %v192
  %v959 = vunpack.c.h.b16 %v192
  %v960 = vunpack.c.l.b16 %v193
  %v961 = vunpack.c.h.b16 %v193
  %v962 = vunpack.c.l.b16 %v194
  %v963 = vunpack.c.h.b16 %v194
  %v964 = vunpack.c.l.b16 %v195
  %v965 = vunpack.c.h.b16 %v195
  %v966 = vunpack.c.l.b16 %v196
  %v967 = vunpack.c.h.b16 %v196
  %v968 = vunpack.c.l.b16 %v197
  %v969 = vunpack.c.h.b16 %v197
  %v970 = vunpack.c.l.b16 %v198
  %v971 = vunpack.c.h.b16 %v198
  %v972 = vunpack.c.l.b16 %v199
  %v973 = vunpack.c.h.b16 %v199
  %v974 = vunpack.c.l.b16 %v200
  %v975 = vunpack.c.h.b16 %v200
  %v976 = vunpack.c.l.b16 %v201
  %v977 = vunpack.c.h.b16 %v201
  %v978 = vunpack.c.l.b16 %v202
  %v979 = vunpack.c.h.b16 %v202
  %v980 = vunpack.c.l.b16 %v203
  %v981 = vunpack.c.h.b16 %v203
  %v982 = vunpack.c.l.b16 %v204
  %v983 = vunpack.c.h.b16 %v204
  %v984 = vunpack.c.l.b16 %v205
  %v985 = vunpack.c.h.b16 %v205
  %v986 = vunpack.c.l.b16 %v206
  %v987 = vunpack.c.h.b16 %v206
  %v988 = vunpack.c.l.b16 %v207
  %v989 = vunpack.c.h.b16 %v207
  %v990 = vunpack.c.l.b16 %v208
  %v991 = vunpack.c.h.b16 %v208
  %v992 = vunpack.c.l.b16 %v209
  %v993 = vunpack.c.h.b16 %v209
  %v994 = vunpack.c.l.b16 %v210
  %v995 = vunpack.c.h.b16 %v210
  %v996 = vunpack.c.l.b16 %v211
  %v997 = vunpack.c.h.b16 %v211
  %v998 = vunpack.c.l.b16 %v212
  %v999 = vunpack.c.h.b16 %v212
  %v1000 = vunpack.c.l.b16 %v213
  %v1001 = vunpack.c.h.b16 %v213
  %v1002 = vunpack.c.l.b16 %v214
  %v1003 = vunpack.c.h.b16 %v214
  %v1004 = vunpack.c.l.b16 %v215
  %v1005 = vunpack.c.h.b16 %v215
  %v1006 = vunpack.c.l.b16 %v216
  %v1007 = vunpack.c.h.b16 %v216
  %v1008 = vunpack.c.l.b16 %v217
  %v1009 = vunpack.c.h.b16 %v217
  %v1010 = vunpack.c.l.b16 %v218
  %v1011 = vunpack.c.h.b16 %v218
  %v1012 = vunpack.c.l.b16 %v219
  %v1013 = vunpack.c.h.b16 %v219
  %v1014 = vunpack.c.l.b16 %v220
  %v1015 = vunpack.c.h.b16 %v220
  %v1016 = vunpack.c.l.b16 %v221
  %v1017 = vunpack.c.h.b16 %v221
  %v1018 = vunpack.c.l.b16 %v222
  %v1019 = vunpack.c.h.b16 %v222
  %v1020 = vunpack.c.l.b16 %v223
  %v1021 = vunpack.c.h.b16 %v223
  %v1022 = vunpack.c.l.b16 %v224
  %v1023 = vunpack.c.h.b16 %v224
  %v1024 = vunpack.c.l.b16 %v225
  %v1025 = vunpack.c.h.b16 %v225
  %v1026 = vunpack.c.l.b16 %v226
  %v1027 = vunpack.c.h.b16 %v226
  %v1028 = vunpack.c.l.b16 %v227
  %v1029 = vunpack.c.h.b16 %v227
  %v1030 = vunpack.c.l.b16 %v228
  %v1031 = vunpack.c.h.b16 %v228
  %v1032 = vunpack.c.l.b16 %v229
  %v1033 = vunpack.c.h.b16 %v229
  %v1034 = vunpack.c.l.b16 %v230
  %v1035 = vunpack.c.h.b16 %v230
  %v1036 = vunpack.c.l.b16 %v231
  %v1037 = vunpack.c.h.b16 %v231
  %v1038 = vunpack.c.l.b16 %v232
  %v1039 = vunpack.c.h.b16 %v232
  %v1040 = vunpack.c.l.b16 %v233
  %v1041 = vunpack.c.h.b16 %v233
  %v1042 = vunpack.c.l.b16 %v234
  %v1043 = vunpack.c.h.b16 %v234
  %v1044 = vunpack.c.l.b16 %v235
  %v1045 = vunpack.c.h.b16 %v235
  %v1046 = vunpack.c.l.b16 %v236
  %v1047 = vunpack.c.h.b16 %v236
  %v1048 = vunpack.c.l.b16 %v237
  %v1049 = vunpack.c.h.b16 %v237
  %v1050 = vunpack.c.l.b16 %v238
  %v1051 = vunpack.c.h.b16 %v238
  %v1052 = vunpack.c.l.b16 %v239
  %v1053 = vunpack.c.h.b16 %v239
  %v1054 = vunpack.c.l.b16 %v240
  %v1055 = vunpack.c.h.b16 %v240
  %v1056 = vunpack.c.l.b16 %v241
  %v1057 = vunpack.c.h.b16 %v241
  %v1058 = vunpack.c.l.b16 %v242
  %v1059 = vunpack.c.h.b16 %v242
  %v1060 = vunpack.c.l.b16 %v243
  %v1061 = vunpack.c.h.b16 %v243
  %v1062 = vunpack.c.l.b16 %v244
  %v1063 = vunpack.c.h.b16 %v244
  %v1064 = vunpack.c.l.b16 %v245
  %v1065 = vunpack.c.h.b16 %v245
  %v1066 = vunpack.c.l.b16 %v246
  %v1067 = vunpack.c.h.b16 %v246
  %v1068 = vunpack.c.l.b16 %v247
  %v1069 = vunpack.c.h.b16 %v247
  %v1070 = vunpack.c.l.b16 %v248
  %v1071 = vunpack.c.h.b16 %v248
  %v1072 = vunpack.c.l.b16 %v249
  %v1073 = vunpack.c.h.b16 %v249
  %v1074 = vunpack.c.l.b16 %v250
  %v1075 = vunpack.c.h.b16 %v250
  %v1076 = vunpack.c.l.b16 %v251
  %v1077 = vunpack.c.h.b16 %v251
  %v1078 = vunpack.c.l.b16 %v252
  %v1079 = vunpack.c.h.b16 %v252
  %v1080 = vunpack.c.l.b16 %v253
  %v1081 = vunpack.c.h.b16 %v253
  %v1082 = vunpack.c.l.b16 %v254
  %v1083 = vunpack.c.h.b16 %v254
  %v1084 = vunpack.c.l.b16 %v255
  %v1085 = vunpack.c.h.b16 %v255
  %v1086 = vunpack.c.l.b16 %v256
  %v1087 = vunpack.c.h.b16 %v256
  %v1088 = vunpack.c.l.b16 %v257
  %v1089 = vunpack.c.h.b16 %v257
  %v1090 = vunpack.c.l.b16 %v258
  %v1091 = vunpack.c.h.b16 %v258
  %v1092 = vunpack.c.l.b16 %v259
  %v1093 = vunpack.c.h.b16 %v259
  %v1094 = vunpack.c.l.b16 %v260
  %v1095 = vunpack.c.h.b16 %v260
  %v1096 = vunpack.c.l.b16 %v261
  %v1097 = vunpack.c.h.b16 %v261
  %v1098 = vunpack.c.l.b16 %v262
  %v1099 = vunpack.c.h.b16 %v262
  %v1100 = vunpack.c.l.b16 %v263
  %v1101 = vunpack.c.h.b16 %v263
  %v1102 = vunpack.c.l.b16 %v264
  %v1103 = vunpack.c.h.b16 %v264
  %v1104 = vunpack.c.l.b16 %v265
  %v1105 = vunpack.c.h.b16 %v265
  %v1106 = vunpack.c.l.b16 %v266
  %v1107 = vunpack.c.h.b16 %v266
  %v1108 = vunpack.c.l.b16 %v267
  %v1109 = vunpack.c.h.b16 %v267
  %v1110 = vunpack.c.l.b16 %v268
  %v1111 = vunpack.c.h.b16 %v268
  %v1112 = vunpack.c.l.b16 %v269
  %v1113 = vunpack.c.h.b16 %v269
  %v1114 = vunpack.c.l.b16 %v270
  %v1115 = vunpack.c.h.b16 %v270
  %v1116 = vunpack.c.l.b16 %v271
  %v1117 = vunpack.c.h.b16 %v271
  %v1118 = vunpack.c.l.b16 %v272
  %v1119 = vunpack.c.h.b16 %v272
  %v1120 = vunpack.c.l.b16 %v273
  %v1121 = vunpack.c.h.b16 %v273
  %v1122 = vunpack.c.l.b16 %v274
  %v1123 = vunpack.c.h.b16 %v274
  %v1124 = vunpack.c.l.b16 %v275
  %v1125 = vunpack.c.h.b16 %v275
  %v1126 = vunpack.c.l.b16 %v276
  %v1127 = vunpack.c.h.b16 %v276
  %v1128 = vunpack.c.l.b16 %v277
  %v1129 = vunpack.c.h.b16 %v277
  %v1130 = vunpack.c.l.b16 %v278
  %v1131 = vunpack.c.h.b16 %v278
  %v1132 = vunpack.c.l.b16 %v279
  %v1133 = vunpack.c.h.b16 %v279
  %v1134 = vunpack.c.l.b16 %v280
  %v1135 = vunpack.c.h.b16 %v280
  %v1136 = vunpack.c.l.b16 %v281
  %v1137 = vunpack.c.h.b16 %v281
  %v1138 = vunpack.c.l.b16 %v282
  %v1139 = vunpack.c.h.b16 %v282
  %v1140 = vunpack.c.l.b16 %v283
  %v1141 = vunpack.c.h.b16 %v283
  %v1142 = vunpack.c.l.b16 %v284
  %v1143 = vunpack.c.h.b16 %v284
  %v1144 = vunpack.c.l.b16 %v285
  %v1145 = vunpack.c.h.b16 %v285
  %v1146 = vpack.c.b16 %v636, %v634
  %v1147 = vpack.c.b16 %v637, %v635
  %v1148 = vpack.c.b16 %v640, %v638
  %v1149 = vpack.c.b16 %v641, %v639
  %v1150 = vpack.c.b16 %v644, %v642
  %v1151 = vpack.c.b16 %v645, %v643
  %v1152 = vpack.c.b16 %v648, %v646
  %v1153 = vpack.c.b16 %v649, %v647
  %v1154 = vpack.c.b16 %v652, %v650
  %v1155 = vpack.c.b16 %v653, %v651
  %v1156 = vpack.c.b16 %v656, %v654
  %v1157 = vpack.c.b16 %v657, %v655
  %v1158 = vpack.c.b16 %v660, %v658
  %v1159 = vpack.c.b16 %v661, %v659
  %v1160 = vpack.c.b16 %v664, %v662
  %v1161 = vpack.c.b16 %v665, %v663
  %v1162 = vpack.c.b16 %v668, %v666
  %v1163 = vpack.c.b16 %v669, %v667
  %v1164 = vpack.c.b16 %v672, %v670
  %v1165 = vpack.c.b16 %v673, %v671
  %v1166 = vpack.c.b16 %v676, %v674
  %v1167 = vpack.c.b16 %v677, %v675
  %v1168 = vpack.c.b16 %v680, %v678
  %v1169 = vpack.c.b16 %v681, %v679
  %v1170 = vpack.c.b16 %v684, %v682
  %v1171 = vpack.c.b16 %v685, %v683
  %v1172 = vpack.c.b16 %v688, %v686
  %v1173 = vpack.c.b16 %v689, %v687
  %v1174 = vpack.c.b16 %v692, %v690
  %v1175 = vpack.c.b16 %v693, %v691
  %v1176 = vpack.c.b16 %v696, %v694
  %v1177 = vpack.c.b16 %v697, %v695
  %v1178 = vpack.c.b16 %v700, %v698
  %v1179 = vpack.c.b16 %v701, %v699
  %v1180 = vpack.c.b16 %v704, %v702
  %v1181 = vpack.c.b16 %v705, %v703
  %v1182 = vpack.c.b16 %v708, %v706
  %v1183 = vpack.c.b16 %v709, %v707
  %v1184 = vpack.c.b16 %v712, %v710
  %v1185 = vpack.c.b16 %v713, %v711
  %v1186 = vpack.c.b16 %v716, %v714
  %v1187 = vpack.c.b16 %v717, %v715
  %v1188 = vpack.c.b16 %v720, %v718
  %v1189 = vpack.c.b16 %v721, %v719
  %v1190 = vpack.c.b16 %v724, %v722
  %v1191 = vpack.c.b16 %v725, %v723
  %v1192 = vpack.c.b16 %v728, %v726
  %v1193 = vpack.c.b16 %v729, %v727
  %v1194 = vpack.c.b16 %v732, %v730
  %v1195 = vpack.c.b16 %v733, %v731
  %v1196 = vpack.c.b16 %v736, %v734
  %v1197 = vpack.c.b16 %v737, %v735
  %v1198 = vpack.c.b16 %v740, %v738
  %v1199 = vpack.c.b16 %v741, %v739
  %v1200 = vpack.c.b16 %v744, %v742
  %v1201 = vpack.c.b16 %v745, %v743
  %v1202 = vpack.c.b16 %v748, %v746
  %v1203 = vpack.c.b16 %v749, %v747
  %v1204 = vpack.c.b16 %v752, %v750
  %v1205 = vpack.c.b16 %v753, %v751
  %v1206 = vpack.c.b16 %v756, %v754
  %v1207 = vpack.c.b16 %v757, %v755
  %v1208 = vpack.c.b16 %v760, %v758
  %v1209 = vpack.c.b16 %v761, %v759
  %v1210 = vpack.c.b16 %v764, %v762
  %v1211 = vpack.c.b16 %v765, %v763
  %v1212 = vpack.c.b16 %v768, %v766
  %v1213 = vpack.c.b16 %v769, %v767
  %v1214 = vpack.c.b16 %v772, %v770
  %v1215 = vpack.c.b16 %v773, %v771
  %v1216 = vpack.c.b16 %v776, %v774
  %v1217 = vpack.c.b16 %v777, %v775
  %v1218 = vpack.c.b16 %v780, %v778
  %v1219 = vpack.c.b16 %v781, %v779
  %v1220 = vpack.c.b16 %v784, %v782
  %v1221 = vpack.c.b16 %v785, %v783
  %v1222 = vpack.c.b16 %v788, %v786
  %v1223 = vpack.c.b16 %v789, %v787
  %v1224 = vpack.c.b16 %v792, %v790
  %v1225 = vpack.c.b16 %v793, %v791
  %v1226 = vpack.c.b16 %v796, %v794
  %v1227 = vpack.c.b16 %v797, %v795
  %v1228 = vpack.c.b16 %v800, %v798
  %v1229 = vpack.c.b16 %v801, %v799
  %v1230 = vpack.c.b16 %v804, %v802
  %v1231 = vpack.c.b16 %v805, %v803
  %v1232 = vpack.c.b16 %v808, %v806
  %v1233 = vpack.c.b16 %v809, %v807
  %v1234 = vpack.c.b16 %v812, %v810
  %v1235 = vpack.c.b16 %v813, %v811
  %v1236 = vpack.c.b16 %v816, %v814
  %v1237 = vpack.c.b16 %v817, %v815
  %v1238 = vpack.c.b16 %v820, %v818
  %v1239 = vpack.c.b16 %v821, %v819
  %v1240 = vpack.c.b16 %v824, %v822
  %v1241 = vpack.c.b16 %v825, %v823
  %v1242 = vpack.c.b16 %v828, %v826
  %v1243 = vpack.c.b16 %v829, %v827
  %v1244 = vpack.c.b16 %v832, %v830
  %v1245 = vpack.c.b16 %v833, %v831
  %v1246 = vpack.c.b16 %v836, %v834
  %v1247 = vpack.c.b16 %v837, %v835
  %v1248 = vpack.c.b16 %v840, %v838
  %v1249 = vpack.c.b16 %v841, %v839
  %v1250 = vpack.c.b16 %v844, %v842
  %v1251 = vpack.c.b16 %v845, %v843
  %v1252 = vpack.c.b16 %v848, %v846
  %v1253 = vpack.c.b16 %v849, %v847
  %v1254 = vpack.c.b16 %v852, %v850
  %v1255 = vpack.c.b16 %v853, %v851
  %v1256 = vpack.c.b16 %v856, %v854
  %v1257 = vpack.c.b16 %v857, %v855
  %v1258 = vpack.c.b16 %v860, %v858
  %v1259 = vpack.c.b16 %v861, %v859
  %v1260 = vpack.c.b16 %v864, %v862
  %v1261 = vpack.c.b16 %v865, %v863
  %v1262 = vpack.c.b16 %v868, %v866
  %v1263 = vpack.c.b16 %v869, %v867
  %v1264 = vpack.c.b16 %v872, %v870
  %v1265 = vpack.c.b16 %v873, %v871
  %v1266 = vpack.c.b16 %v876, %v874
  %v1267 = vpack.c.b16 %v877, %v875
  %v1268 = vpack.c.b16 %v880, %v878
  %v1269 = vpack.c.b16 %v881, %v879
  %v1270 = vpack.c.b16 %v884, %v882
  %v1271 = vpack.c.b16 %v885, %v883
  %v1272 = vpack.c.b16 %v888, %v886
  %v1273 = vpack.c.b16 %v889, %v887
  %v1274 = vpack.c.b16 %v892, %v890
  %v1275 = vpack.c.b16 %v893, %v891
  %v1276 = vpack.c.b16 %v896, %v894
  %v1277 = vpack.c.b16 %v897, %v895
  %v1278 = vpack.c.b16 %v900, %v898
  %v1279 = vpack.c.b16 %v901, %v899
  %v1280 = vpack.c.b16 %v904, %v902
  %v1281 = vpack.c.b16 %v905, %v903
  %v1282 = vpack.c.b16 %v908, %v906
  %v1283 = vpack.c.b16 %v909, %v907
  %v1284 = vpack.c.b16 %v912, %v910
  %v1285 = vpack.c.b16 %v913, %v911
  %v1286 = vpack.c.b16 %v916, %v914
  %v1287 = vpack.c.b16 %v917, %v915
  %v1288 = vpack.c.b16 %v920, %v918
  %v1289 = vpack.c.b16 %v921, %v919
  %v1290 = vpack.c.b16 %v924, %v922
  %v1291 = vpack.c.b16 %v925, %v923
  %v1292 = vpack.c.b16 %v928, %v926
  %v1293 = vpack.c.b16 %v929, %v927
  %v1294 = vpack.c.b16 %v932, %v930
  %v1295 = vpack.c.b16 %v933, %v931
  %v1296 = vpack.c.b16 %v936, %v934
  %v1297 = vpack.c.b16 %v937, %v935
  %v1298 = vpack.c.b16 %v940, %v938
  %v1299 = vpack.c.b16 %v941, %v939
  %v1300 = vpack.c.b16 %v944, %v942
  %v1301 = vpack.c.b16 %v945, %v943
  %v1302 = vpack.c.b16 %v948, %v946
  %v1303 = vpack.c.b16 %v949, %v947
  %v1304 = vpack.c.b16 %v952, %v950
  %v1305 = vpack.c.b16 %v953, %v951
  %v1306 = vpack.c.b16 %v956, %v954
  %v1307 = vpack.c.b16 %v957, %v955
  %v1308 = vpack.c.b16 %v960, %v958
  %v1309 = vpack.c.b16 %v961, %v959
  %v1310 = vpack.c.b16 %v964, %v962
  %v1311 = vpack.c.b16 %v965, %v963
  %v1312 = vpack.c.b16 %v968, %v966
  %v1313 = vpack.c.b16 %v969, %v967
  %v1314 = vpack.c.b16 %v972, %v970
  %v1315 = vpack.c.b16 %v973, %v971
  %v1316 = vpack.c.b16 %v976, %v974
  %v1317 = vpack.c.b16 %v977, %v975
  %v1318 = vpack.c.b16 %v980, %v978
  %v1319 = vpack.c.b16 %v981, %v979
  %v1320 = vpack.c.b16 %v984, %v982
  %v1321 = vpack.c.b16 %v985, %v983
  %v1322 = vpack.c.b16 %v988, %v986
  %v1323 = vpack.c.b16 %v989, %v987
  %v1324 = vpack.c.b16 %v992, %v990
  %v1325 = vpack.c.b16 %v993, %v991
  %v1326 = vpack.c.b16 %v996, %v994
  %v1327 = vpack.c.b16 %v997, %v995
  %v1328 = vpack.c.b16 %v1000, %v998
  %v1329 = vpack.c.b16 %v1001, %v999
  %v1330 = vpack.c.b16 %v1004, %v1002
  %v1331 = vpack.c.b16 %v1005, %v1003
  %v1332 = vpack.c.b16 %v1008, %v1006
  %v1333 = vpack.c.b16 %v1009, %v1007
  %v1334 = vpack.c.b16 %v1012, %v1010
  %v1335 = vpack.c.b16 %v1013, %v1011
  %v1336 = vpack.c.b16 %v1016, %v1014
  %v1337 = vpack.c.b16 %v1017, %v1015
  %v1338 = vpack.c.b16 %v1020, %v1018
  %v1339 = vpack.c.b16 %v1021, %v1019
  %v1340 = vpack.c.b16 %v1024, %v1022
  %v1341 = vpack.c.b16 %v1025, %v1023
  %v1342 = vpack.c.b16 %v1028, %v1026
  %v1343 = vpack.c.b16 %v1029, %v1027
  %v1344 = vpack.c.b16 %v1032, %v1030
  %v1345 = vpack.c.b16 %v1033, %v1031
  %v1346 = vpack.c.b16 %v1036, %v1034
  %v1347 = vpack.c.b16 %v1037, %v1035
  %v1348 = vpack.c.b16 %v1040, %v1038
  %v1349 = vpack.c.b16 %v1041, %v1039
  %v1350 = vpack.c.b16 %v1044, %v1042
  %v1351 = vpack.c.b16 %v1045, %v1043
  %v1352 = vpack.c.b16 %v1048, %v1046
  %v1353 = vpack.c.b16 %v1049, %v1047
  %v1354 = vpack.c.b16 %v1052, %v1050
  %v1355 = vpack.c.b16 %v1053, %v1051
  %v1356 = vpack.c.b16 %v1056, %v1054
  %v1357 = vpack.c.b16 %v1057, %v1055
  %v1358 = vpack.c.b16 %v1060, %v1058
  %v1359 = vpack.c.b16 %v1061, %v1059
  %v1360 = vpack.c.b16 %v1064, %v1062
  %v1361 = vpack.c.b16 %v1065, %v1063
  %v1362 = vpack.c.b16 %v1068, %v1066
  %v1363 = vpack.c.b16 %v1069, %v1067
  %v1364 = vpack.c.b16 %v1072, %v1070
  %v1365 = vpack.c.b16 %v1073, %v1071
  %v1366 = vpack.c.b16 %v1076, %v1074
  %v1367 = vpack.c.b16 %v1077, %v1075
  %v1368 = vpack.c.b16 %v1080, %v1078
  %v1369 = vpack.c.b16 %v1081, %v1079
  %v1370 = vpack.c.b16 %v1084, %v1082
  %v1371 = vpack.c.b16 %v1085, %v1083
  %v1372 = vpack.c.b16 %v1088, %v1086
  %v1373 = vpack.c.b16 %v1089, %v1087
  %v1374 = vpack.c.b16 %v1092, %v1090
  %v1375 = vpack.c.b16 %v1093, %v1091
  %v1376 = vpack.c.b16 %v1096, %v1094
  %v1377 = vpack.c.b16 %v1097, %v1095
  %v1378 = vpack.c.b16 %v1100, %v1098
  %v1379 = vpack.c.b16 %v1101, %v1099
  %v1380 = vpack.c.b16 %v1104, %v1102
  %v1381 = vpack.c.b16 %v1105, %v1103
  %v1382 = vpack.c.b16 %v1108, %v1106
  %v1383 = vpack.c.b16 %v1109, %v1107
  %v1384 = vpack.c.b16 %v1112, %v1110
  %v1385 = vpack.c.b16 %v1113, %v1111
  %v1386 = vpack.c.b16 %v1116, %v1114
  %v1387 = vpack.c.b16 %v1117, %v1115
  %v1388 = vpack.c.b16 %v1120, %v1118
  %v1389 = vpack.c.b16 %v1121, %v1119
  %v1390 = vpack.c.b16 %v1124, %v1122
  %v1391 = vpack.c.b16 %v1125, %v1123
  %v1392 = vpack.c.b16 %v1128, %v1126
  %v1393 = vpack.c.b16 %v1129, %v1127
  %v1394 = vpack.c.b16 %v1132, %v1130
  %v1395 = vpack.c.b16 %v1133, %v1131
  %v1396 = vpack.c.b16 %v1136, %v1134
  %v1397 = vpack.c.b16 %v1137, %v1135
  %v1398 = vpack.c.b16 %v1140, %v1138
  %v1399 = vpack.c.b16 %v1141, %v1139
  %v1400 = vpack.c.b16 %v1144, %v1142
  %v1401 = vpack.c.b16 %v1145, %v1143
  %1658 = vmatprep.subr.bf16.mxu0 %v1161
  %1659 = vmatpush1.bf16.msra.mxu0 %v1160
  %1660 = vmatprep.subr.bf16.mxu0 %v1159
  %1661 = vmatpush1.bf16.msra.mxu0 %v1158
  %1662 = vmatprep.subr.bf16.mxu0 %v1157
  %1663 = vmatpush1.bf16.msra.mxu0 %v1156
  %1664 = vmatprep.subr.bf16.mxu0 %v1155
  %1665 = vmatpush1.bf16.msra.mxu0 %v1154
  %1666 = vmatprep.subr.bf16.mxu0 %v1153
  %1667 = vmatpush1.bf16.msra.mxu0 %v1152
  %1668 = vmatprep.subr.bf16.mxu0 %v1151
  %1669 = vmatpush1.bf16.msra.mxu0 %v1150
  %1670 = vmatprep.subr.bf16.mxu0 %v1149
  %1671 = vmatpush1.bf16.msra.mxu0 %v1148
  %1672 = vmatprep.subr.bf16.mxu0 %v1147
  %1673 = vmatpush1.bf16.msra.mxu0 %v1146
  %1674 = vmatprep.subr.bf16.mxu0 %v1177
  %1675 = vmatpush2.bf16.msra.mxu0 %v1176
  %1676 = vmatprep.subr.bf16.mxu0 %v1175
  %1677 = vmatpush2.bf16.msra.mxu0 %v1174
  %1678 = vmatprep.subr.bf16.mxu0 %v1173
  %1679 = vmatpush2.bf16.msra.mxu0 %v1172
  %1680 = vmatprep.subr.bf16.mxu0 %v1171
  %1681 = vmatpush2.bf16.msra.mxu0 %v1170
  %1682 = vmatprep.subr.bf16.mxu0 %v1169
  %1683 = vmatpush2.bf16.msra.mxu0 %v1168
  %1684 = vmatprep.subr.bf16.mxu0 %v1167
  %1685 = vmatpush2.bf16.msra.mxu0 %v1166
  %1686 = vmatprep.subr.bf16.mxu0 %v1165
  %1687 = vmatpush2.bf16.msra.mxu0 %v1164
  %1688 = vmatprep.subr.bf16.mxu0 %v1163
  %1689 = vmatpush2.bf16.msra.mxu0 %v1162
  %1690 = vmatprep.mubr.bf16.mxu0 %v347
  %1691 = vmatmul.mubr.bf16.gmra.mxu0 %v346
  %v1692 = vpop.f32.mrf.mxu0
  %v1693 = vadd.f32 %v291, %v1692
  %v1694 = vpop.f32.mrf.mxu0
  %v1695 = vadd.f32 %v295, %v1694
  %v1696 = vpop.f32.mrf.mxu0
  %v1697 = vadd.f32 %v291, %v1696
  %v1698 = vpop.f32.mrf.mxu0
  %v1699 = vadd.f32 %v295, %v1698
  %1700 = vdwg.mxu0
  %1701 = vmatprep.subr.bf16.mxu0 %v1193
  %1702 = vmatpush1.bf16.msra.mxu0 %v1192
  %1703 = vmatprep.subr.bf16.mxu0 %v1191
  %1704 = vmatpush1.bf16.msra.mxu0 %v1190
  %1705 = vmatprep.subr.bf16.mxu0 %v1189
  %1706 = vmatpush1.bf16.msra.mxu0 %v1188
  %1707 = vmatprep.subr.bf16.mxu0 %v1187
  %1708 = vmatpush1.bf16.msra.mxu0 %v1186
  %1709 = vmatprep.subr.bf16.mxu0 %v1185
  %1710 = vmatpush1.bf16.msra.mxu0 %v1184
  %1711 = vmatprep.subr.bf16.mxu0 %v1183
  %1712 = vmatpush1.bf16.msra.mxu0 %v1182
  %1713 = vmatprep.subr.bf16.mxu0 %v1181
  %1714 = vmatpush1.bf16.msra.mxu0 %v1180
  %1715 = vmatprep.subr.bf16.mxu0 %v1179
  %1716 = vmatpush1.bf16.msra.mxu0 %v1178
  %1717 = vmatprep.subr.bf16.mxu0 %v1209
  %1718 = vmatpush2.bf16.msra.mxu0 %v1208
  %1719 = vmatprep.subr.bf16.mxu0 %v1207
  %1720 = vmatpush2.bf16.msra.mxu0 %v1206
  %1721 = vmatprep.subr.bf16.mxu0 %v1205
  %1722 = vmatpush2.bf16.msra.mxu0 %v1204
  %1723 = vmatprep.subr.bf16.mxu0 %v1203
  %1724 = vmatpush2.bf16.msra.mxu0 %v1202
  %1725 = vmatprep.subr.bf16.mxu0 %v1201
  %1726 = vmatpush2.bf16.msra.mxu0 %v1200
  %1727 = vmatprep.subr.bf16.mxu0 %v1199
  %1728 = vmatpush2.bf16.msra.mxu0 %v1198
  %1729 = vmatprep.subr.bf16.mxu0 %v1197
  %1730 = vmatpush2.bf16.msra.mxu0 %v1196
  %1731 = vmatprep.subr.bf16.mxu0 %v1195
  %1732 = vmatpush2.bf16.msra.mxu0 %v1194
  %1733 = vmatprep.mubr.bf16.mxu0 %v349
  %1734 = vmatmul.mubr.bf16.gmra.mxu0 %v348
  %v1735 = vpop.f32.mrf.mxu0
  %v1736 = vadd.f32 %v1693, %v1735
  %v1737 = vpop.f32.mrf.mxu0
  %v1738 = vadd.f32 %v1695, %v1737
  %v1739 = vpop.f32.mrf.mxu0
  %v1740 = vadd.f32 %v1697, %v1739
  %v1741 = vpop.f32.mrf.mxu0
  %v1742 = vadd.f32 %v1699, %v1741
  %1743 = vdwg.mxu0
  %1744 = vmatprep.subr.bf16.mxu0 %v1225
  %1745 = vmatpush1.bf16.msra.mxu0 %v1224
  %1746 = vmatprep.subr.bf16.mxu0 %v1223
  %1747 = vmatpush1.bf16.msra.mxu0 %v1222
  %1748 = vmatprep.subr.bf16.mxu0 %v1221
  %1749 = vmatpush1.bf16.msra.mxu0 %v1220
  %1750 = vmatprep.subr.bf16.mxu0 %v1219
  %1751 = vmatpush1.bf16.msra.mxu0 %v1218
  %1752 = vmatprep.subr.bf16.mxu0 %v1217
  %1753 = vmatpush1.bf16.msra.mxu0 %v1216
  %1754 = vmatprep.subr.bf16.mxu0 %v1215
  %1755 = vmatpush1.bf16.msra.mxu0 %v1214
  %1756 = vmatprep.subr.bf16.mxu0 %v1213
  %1757 = vmatpush1.bf16.msra.mxu0 %v1212
  %1758 = vmatprep.subr.bf16.mxu0 %v1211
  %1759 = vmatpush1.bf16.msra.mxu0 %v1210
  %1760 = vmatprep.subr.bf16.mxu0 %v1241
  %1761 = vmatpush2.bf16.msra.mxu0 %v1240
  %1762 = vmatprep.subr.bf16.mxu0 %v1239
  %1763 = vmatpush2.bf16.msra.mxu0 %v1238
  %1764 = vmatprep.subr.bf16.mxu0 %v1237
  %1765 = vmatpush2.bf16.msra.mxu0 %v1236
  %1766 = vmatprep.subr.bf16.mxu0 %v1235
  %1767 = vmatpush2.bf16.msra.mxu0 %v1234
  %1768 = vmatprep.subr.bf16.mxu0 %v1233
  %1769 = vmatpush2.bf16.msra.mxu0 %v1232
  %1770 = vmatprep.subr.bf16.mxu0 %v1231
  %1771 = vmatpush2.bf16.msra.mxu0 %v1230
  %1772 = vmatprep.subr.bf16.mxu0 %v1229
  %1773 = vmatpush2.bf16.msra.mxu0 %v1228
  %1774 = vmatprep.subr.bf16.mxu0 %v1227
  %1775 = vmatpush2.bf16.msra.mxu0 %v1226
  %1776 = vmatprep.mubr.bf16.mxu0 %v351
  %1777 = vmatmul.mubr.bf16.gmra.mxu0 %v350
  %v1778 = vpop.f32.mrf.mxu0
  %v1779 = vadd.f32 %v1736, %v1778
  %v1780 = vpop.f32.mrf.mxu0
  %v1781 = vadd.f32 %v1738, %v1780
  %v1782 = vpop.f32.mrf.mxu0
  %v1783 = vadd.f32 %v1740, %v1782
  %v1784 = vpop.f32.mrf.mxu0
  %v1785 = vadd.f32 %v1742, %v1784
  %1786 = vdwg.mxu0
  %1787 = vmatprep.subr.bf16.mxu0 %v1257
  %1788 = vmatpush1.bf16.msra.mxu0 %v1256
  %1789 = vmatprep.subr.bf16.mxu0 %v1255
  %1790 = vmatpush1.bf16.msra.mxu0 %v1254
  %1791 = vmatprep.subr.bf16.mxu0 %v1253
  %1792 = vmatpush1.bf16.msra.mxu0 %v1252
  %1793 = vmatprep.subr.bf16.mxu0 %v1251
  %1794 = vmatpush1.bf16.msra.mxu0 %v1250
  %1795 = vmatprep.subr.bf16.mxu0 %v1249
  %1796 = vmatpush1.bf16.msra.mxu0 %v1248
  %1797 = vmatprep.subr.bf16.mxu0 %v1247
  %1798 = vmatpush1.bf16.msra.mxu0 %v1246
  %1799 = vmatprep.subr.bf16.mxu0 %v1245
  %1800 = vmatpush1.bf16.msra.mxu0 %v1244
  %1801 = vmatprep.subr.bf16.mxu0 %v1243
  %1802 = vmatpush1.bf16.msra.mxu0 %v1242
  %1803 = vmatprep.subr.bf16.mxu0 %v1273
  %1804 = vmatpush2.bf16.msra.mxu0 %v1272
  %1805 = vmatprep.subr.bf16.mxu0 %v1271
  %1806 = vmatpush2.bf16.msra.mxu0 %v1270
  %1807 = vmatprep.subr.bf16.mxu0 %v1269
  %1808 = vmatpush2.bf16.msra.mxu0 %v1268
  %1809 = vmatprep.subr.bf16.mxu0 %v1267
  %1810 = vmatpush2.bf16.msra.mxu0 %v1266
  %1811 = vmatprep.subr.bf16.mxu0 %v1265
  %1812 = vmatpush2.bf16.msra.mxu0 %v1264
  %1813 = vmatprep.subr.bf16.mxu0 %v1263
  %1814 = vmatpush2.bf16.msra.mxu0 %v1262
  %1815 = vmatprep.subr.bf16.mxu0 %v1261
  %1816 = vmatpush2.bf16.msra.mxu0 %v1260
  %1817 = vmatprep.subr.bf16.mxu0 %v1259
  %1818 = vmatpush2.bf16.msra.mxu0 %v1258
  %1819 = vmatprep.mubr.bf16.mxu0 %v353
  %1820 = vmatmul.mubr.bf16.gmra.mxu0 %v352
  %v1821 = vpop.f32.mrf.mxu0
  %v1822 = vadd.f32 %v1779, %v1821
  %v1823 = vpop.f32.mrf.mxu0
  %v1824 = vadd.f32 %v1781, %v1823
  %v1825 = vpop.f32.mrf.mxu0
  %v1826 = vadd.f32 %v1783, %v1825
  %v1827 = vpop.f32.mrf.mxu0
  %v1828 = vadd.f32 %v1785, %v1827
  %1829 = vdwg.mxu0
  %1830 = vmatprep.subr.bf16.mxu0 %v1289
  %1831 = vmatpush1.bf16.msra.mxu0 %v1288
  %1832 = vmatprep.subr.bf16.mxu0 %v1287
  %1833 = vmatpush1.bf16.msra.mxu0 %v1286
  %1834 = vmatprep.subr.bf16.mxu0 %v1285
  %1835 = vmatpush1.bf16.msra.mxu0 %v1284
  %1836 = vmatprep.subr.bf16.mxu0 %v1283
  %1837 = vmatpush1.bf16.msra.mxu0 %v1282
  %1838 = vmatprep.subr.bf16.mxu0 %v1281
  %1839 = vmatpush1.bf16.msra.mxu0 %v1280
  %1840 = vmatprep.subr.bf16.mxu0 %v1279
  %1841 = vmatpush1.bf16.msra.mxu0 %v1278
  %1842 = vmatprep.subr.bf16.mxu0 %v1277
  %1843 = vmatpush1.bf16.msra.mxu0 %v1276
  %1844 = vmatprep.subr.bf16.mxu0 %v1275
  %1845 = vmatpush1.bf16.msra.mxu0 %v1274
  %1846 = vmatprep.subr.bf16.mxu0 %v1305
  %1847 = vmatpush2.bf16.msra.mxu0 %v1304
  %1848 = vmatprep.subr.bf16.mxu0 %v1303
  %1849 = vmatpush2.bf16.msra.mxu0 %v1302
  %1850 = vmatprep.subr.bf16.mxu0 %v1301
  %1851 = vmatpush2.bf16.msra.mxu0 %v1300
  %1852 = vmatprep.subr.bf16.mxu0 %v1299
  %1853 = vmatpush2.bf16.msra.mxu0 %v1298
  %1854 = vmatprep.subr.bf16.mxu0 %v1297
  %1855 = vmatpush2.bf16.msra.mxu0 %v1296
  %1856 = vmatprep.subr.bf16.mxu0 %v1295
  %1857 = vmatpush2.bf16.msra.mxu0 %v1294
  %1858 = vmatprep.subr.bf16.mxu0 %v1293
  %1859 = vmatpush2.bf16.msra.mxu0 %v1292
  %1860 = vmatprep.subr.bf16.mxu0 %v1291
  %1861 = vmatpush2.bf16.msra.mxu0 %v1290
  %1862 = vmatprep.mubr.bf16.mxu0 %v355
  %1863 = vmatmul.mubr.bf16.gmra.mxu0 %v354
  %v1864 = vpop.f32.mrf.mxu0
  %v1865 = vadd.f32 %v1822, %v1864
  %v1866 = vpop.f32.mrf.mxu0
  %v1867 = vadd.f32 %v1824, %v1866
  %v1868 = vpop.f32.mrf.mxu0
  %v1869 = vadd.f32 %v1826, %v1868
  %v1870 = vpop.f32.mrf.mxu0
  %v1871 = vadd.f32 %v1828, %v1870
  %1872 = vdwg.mxu0
  %1873 = vmatprep.subr.bf16.mxu0 %v1321
  %1874 = vmatpush1.bf16.msra.mxu0 %v1320
  %1875 = vmatprep.subr.bf16.mxu0 %v1319
  %1876 = vmatpush1.bf16.msra.mxu0 %v1318
  %1877 = vmatprep.subr.bf16.mxu0 %v1317
  %1878 = vmatpush1.bf16.msra.mxu0 %v1316
  %1879 = vmatprep.subr.bf16.mxu0 %v1315
  %1880 = vmatpush1.bf16.msra.mxu0 %v1314
  %1881 = vmatprep.subr.bf16.mxu0 %v1313
  %1882 = vmatpush1.bf16.msra.mxu0 %v1312
  %1883 = vmatprep.subr.bf16.mxu0 %v1311
  %1884 = vmatpush1.bf16.msra.mxu0 %v1310
  %1885 = vmatprep.subr.bf16.mxu0 %v1309
  %1886 = vmatpush1.bf16.msra.mxu0 %v1308
  %1887 = vmatprep.subr.bf16.mxu0 %v1307
  %1888 = vmatpush1.bf16.msra.mxu0 %v1306
  %1889 = vmatprep.subr.bf16.mxu0 %v1337
  %1890 = vmatpush2.bf16.msra.mxu0 %v1336
  %1891 = vmatprep.subr.bf16.mxu0 %v1335
  %1892 = vmatpush2.bf16.msra.mxu0 %v1334
  %1893 = vmatprep.subr.bf16.mxu0 %v1333
  %1894 = vmatpush2.bf16.msra.mxu0 %v1332
  %1895 = vmatprep.subr.bf16.mxu0 %v1331
  %1896 = vmatpush2.bf16.msra.mxu0 %v1330
  %1897 = vmatprep.subr.bf16.mxu0 %v1329
  %1898 = vmatpush2.bf16.msra.mxu0 %v1328
  %1899 = vmatprep.subr.bf16.mxu0 %v1327
  %1900 = vmatpush2.bf16.msra.mxu0 %v1326
  %1901 = vmatprep.subr.bf16.mxu0 %v1325
  %1902 = vmatpush2.bf16.msra.mxu0 %v1324
  %1903 = vmatprep.subr.bf16.mxu0 %v1323
  %1904 = vmatpush2.bf16.msra.mxu0 %v1322
  %1905 = vmatprep.mubr.bf16.mxu0 %v357
  %1906 = vmatmul.mubr.bf16.gmra.mxu0 %v356
  %v1907 = vpop.f32.mrf.mxu0
  %v1908 = vadd.f32 %v1865, %v1907
  %v1909 = vpop.f32.mrf.mxu0
  %v1910 = vadd.f32 %v1867, %v1909
  %v1911 = vpop.f32.mrf.mxu0
  %v1912 = vadd.f32 %v1869, %v1911
  %v1913 = vpop.f32.mrf.mxu0
  %v1914 = vadd.f32 %v1871, %v1913
  %1915 = vdwg.mxu0
  %1916 = vmatprep.subr.bf16.mxu0 %v1353
  %1917 = vmatpush1.bf16.msra.mxu0 %v1352
  %1918 = vmatprep.subr.bf16.mxu0 %v1351
  %1919 = vmatpush1.bf16.msra.mxu0 %v1350
  %1920 = vmatprep.subr.bf16.mxu0 %v1349
  %1921 = vmatpush1.bf16.msra.mxu0 %v1348
  %1922 = vmatprep.subr.bf16.mxu0 %v1347
  %1923 = vmatpush1.bf16.msra.mxu0 %v1346
  %1924 = vmatprep.subr.bf16.mxu0 %v1345
  %1925 = vmatpush1.bf16.msra.mxu0 %v1344
  %1926 = vmatprep.subr.bf16.mxu0 %v1343
  %1927 = vmatpush1.bf16.msra.mxu0 %v1342
  %1928 = vmatprep.subr.bf16.mxu0 %v1341
  %1929 = vmatpush1.bf16.msra.mxu0 %v1340
  %1930 = vmatprep.subr.bf16.mxu0 %v1339
  %1931 = vmatpush1.bf16.msra.mxu0 %v1338
  %1932 = vmatprep.subr.bf16.mxu0 %v1369
  %1933 = vmatpush2.bf16.msra.mxu0 %v1368
  %1934 = vmatprep.subr.bf16.mxu0 %v1367
  %1935 = vmatpush2.bf16.msra.mxu0 %v1366
  %1936 = vmatprep.subr.bf16.mxu0 %v1365
  %1937 = vmatpush2.bf16.msra.mxu0 %v1364
  %1938 = vmatprep.subr.bf16.mxu0 %v1363
  %1939 = vmatpush2.bf16.msra.mxu0 %v1362
  %1940 = vmatprep.subr.bf16.mxu0 %v1361
  %1941 = vmatpush2.bf16.msra.mxu0 %v1360
  %1942 = vmatprep.subr.bf16.mxu0 %v1359
  %1943 = vmatpush2.bf16.msra.mxu0 %v1358
  %1944 = vmatprep.subr.bf16.mxu0 %v1357
  %1945 = vmatpush2.bf16.msra.mxu0 %v1356
  %1946 = vmatprep.subr.bf16.mxu0 %v1355
  %1947 = vmatpush2.bf16.msra.mxu0 %v1354
  %1948 = vmatprep.mubr.bf16.mxu0 %v359
  %1949 = vmatmul.mubr.bf16.gmra.mxu0 %v358
  %v1950 = vpop.f32.mrf.mxu0
  %v1951 = vadd.f32 %v1908, %v1950
  %v1952 = vpop.f32.mrf.mxu0
  %v1953 = vadd.f32 %v1910, %v1952
  %v1954 = vpop.f32.mrf.mxu0
  %v1955 = vadd.f32 %v1912, %v1954
  %v1956 = vpop.f32.mrf.mxu0
  %v1957 = vadd.f32 %v1914, %v1956
  %1958 = vdwg.mxu0
  %1959 = vmatprep.subr.bf16.mxu0 %v1385
  %1960 = vmatpush1.bf16.msra.mxu0 %v1384
  %1961 = vmatprep.subr.bf16.mxu0 %v1383
  %1962 = vmatpush1.bf16.msra.mxu0 %v1382
  %1963 = vmatprep.subr.bf16.mxu0 %v1381
  %1964 = vmatpush1.bf16.msra.mxu0 %v1380
  %1965 = vmatprep.subr.bf16.mxu0 %v1379
  %1966 = vmatpush1.bf16.msra.mxu0 %v1378
  %1967 = vmatprep.subr.bf16.mxu0 %v1377
  %1968 = vmatpush1.bf16.msra.mxu0 %v1376
  %1969 = vmatprep.subr.bf16.mxu0 %v1375
  %1970 = vmatpush1.bf16.msra.mxu0 %v1374
  %1971 = vmatprep.subr.bf16.mxu0 %v1373
  %1972 = vmatpush1.bf16.msra.mxu0 %v1372
  %1973 = vmatprep.subr.bf16.mxu0 %v1371
  %1974 = vmatpush1.bf16.msra.mxu0 %v1370
  %1975 = vmatprep.subr.bf16.mxu0 %v1401
  %1976 = vmatpush2.bf16.msra.mxu0 %v1400
  %1977 = vmatprep.subr.bf16.mxu0 %v1399
  %1978 = vmatpush2.bf16.msra.mxu0 %v1398
  %1979 = vmatprep.subr.bf16.mxu0 %v1397
  %1980 = vmatpush2.bf16.msra.mxu0 %v1396
  %1981 = vmatprep.subr.bf16.mxu0 %v1395
  %1982 = vmatpush2.bf16.msra.mxu0 %v1394
  %1983 = vmatprep.subr.bf16.mxu0 %v1393
  %1984 = vmatpush2.bf16.msra.mxu0 %v1392
  %1985 = vmatprep.subr.bf16.mxu0 %v1391
  %1986 = vmatpush2.bf16.msra.mxu0 %v1390
  %1987 = vmatprep.subr.bf16.mxu0 %v1389
  %1988 = vmatpush2.bf16.msra.mxu0 %v1388
  %1989 = vmatprep.subr.bf16.mxu0 %v1387
  %1990 = vmatpush2.bf16.msra.mxu0 %v1386
  %1991 = vmatprep.mubr.bf16.mxu0 %v361
  %1992 = vmatmul.mubr.bf16.gmra.mxu0 %v360
  %v1993 = vpop.f32.mrf.mxu0
  %v1994 = vadd.f32 %v1951, %v1993
  %v1995 = vpop.f32.mrf.mxu0
  %v1996 = vadd.f32 %v1953, %v1995
  %v1997 = vpop.f32.mrf.mxu0
  %v1998 = vadd.f32 %v1955, %v1997
  %v1999 = vpop.f32.mrf.mxu0
  %v2000 = vadd.f32 %v1957, %v1999
  %2001 = vdwg.mxu0
  %v2002 = vmax.f32 %v1994, 0.0
  %v2003 = vmax.f32 %v1996, 0.0
  %v2004 = vmax.f32 %v1998, 0.0
  %v2005 = vmax.f32 %v2000, 0.0
  %v2006 = vpack.c.bf16 %v2004, %v2002
  %v2007 = vpack.c.bf16 %v2005, %v2003
  %v2010 = vunpack.c.l.b16 %v2006
  %v2011 = vunpack.c.l.b16 %v2007
  %v2012 = vunpack.c.h.b16 %v2006
  %v2013 = vunpack.c.h.b16 %v2007
  %v2014 = vpack.c.b16 %v2011, %v2010
  %v2015 = vpack.c.b16 %v2013, %v2012
  %2018 = vst [vmem:[%s3] sm:$0xff] %v2014
  %2019 = vst [vmem:[%s3 + $0x8] sm:$0xff] %v2015
  // Predicated region
  $region14: #{encoder_forward.8} parent=0 // pred_check
    _
  $region15: #{encoder_forward.8} parent=0 // pred_check_branch
    %2021 = sbr.rel (0) target = $region17
  $region16: #{encoder_forward.8} parent=0 // pred_region
    _
  $region17: #{encoder_forward.8} parent=0 // pred_fallthru
    _
  // Predicated region
  $region18: #{encoder_forward.8} parent=0 // pred_check
    _
  $region19: #{encoder_forward.8} parent=0 // pred_check_branch
    %2023 = sbr.rel (0) target = $region21
  $region20: #{encoder_forward.8} parent=0 // pred_region
    _
  $region21: #{encoder_forward.8} parent=0 // pred_fallthru
    _

</llo_original>
